<compile_context>
chip_gen: v7x
topology: tpu7x:2x2x1
jax: 0.10.0
libtpu: 0.0.40
codegen_flags: <defaults>
</compile_context>

<pallas_src>
import jax
import jax.numpy as jnp
from jax import lax
from jax.experimental import pallas as pl
from jax.experimental.pallas import tpu as pltpu


def _layer_norm(x, gamma, beta, eps=1e-5):
    u = jnp.mean(x, axis=-1, keepdims=True)
    d = x - u
    s = jnp.mean(d * d, axis=-1, keepdims=True)
    return gamma * (d * lax.rsqrt(s + eps)) + beta


def make_kernel(N, D, num_heads):
    P = N * N
    out_dim = 3 * D
    assert out_dim % num_heads == 0
    hd = out_dim // num_heads
    f32 = jnp.float32
    bf16 = jnp.bfloat16

    def kernel(feat_ref, nei_ref, hc_ref, dv_ref, wbig_ref, bbig_ref, sm_ref,
               ww_ref, out_ref, f5_ref):
        feats = feat_ref[...]                      # (P, 8) f32
        cx, cy = feats[:, 0:1], feats[:, 1:2]
        speed, angle = feats[:, 2:3], feats[:, 3:4]
        mask = feats[:, 4:5]                       # 1.0 = active pair (query side)
        nei_lane = nei_ref[...]                    # (1, P) 1.0 = active pair (key side)
        key_bias = jnp.where(nei_lane > 0.0, jnp.float32(0.0), jnp.float32(-1e30))

        hc = hc_ref[...]                           # (2N, D) = [hidden_state; cn]
        h = hc[0:N, :]
        cnv = hc[N:2 * N, :]
        dv = dv_ref[...]                           # (16, D) packed D-sized vectors

        # --- relative-feature MLPs: K=1/2 contractions stay on the VPU -------
        r_t = jax.nn.relu(_layer_norm(cx * dv[0:1, :] + cy * dv[1:2, :] + dv[2:3, :],
                                      dv[3:4, :], dv[4:5, :]))
        s_t = jax.nn.relu(_layer_norm(speed * dv[5:6, :] + dv[6:7, :],
                                      dv[7:8, :], dv[8:9, :]))
        a_t = jax.nn.relu(_layer_norm(angle * dv[5:6, :] + dv[6:7, :],
                                      dv[7:8, :], dv[8:9, :]))

        # --- pair-indexed hidden-state copies via exact layout ops -----------
        # hi[p = i*N + j] = h[i],   hj[p] = h[j]   (no matmul, no rounding)
        hi = jnp.broadcast_to(h[:, None, :], (N, N, D)).reshape(P, D)
        hj = jnp.broadcast_to(h[None, :, :], (N, N, D)).reshape(P, D)

        # --- assemble the (P, 5D) bf16 feature slab once in VMEM scratch -----
        f5_ref[:, 0 * D:1 * D] = r_t.astype(bf16)
        f5_ref[:, 1 * D:2 * D] = s_t.astype(bf16)
        f5_ref[:, 2 * D:3 * D] = a_t.astype(bf16)
        f5_ref[:, 3 * D:4 * D] = hi.astype(bf16)
        f5_ref[:, 4 * D:5 * D] = hj.astype(bf16)
        feat5 = f5_ref[...]                        # (P, 5D) bf16

        # --- ONE fused matmul: ngate-pre | Q | K | V --------------------------
        # (1/sqrt(head_dim) is already folded into wq/bq by the wrapper)
        big = jnp.dot(feat5, wbig_ref[...], preferred_element_type=f32) + bbig_ref[...]
        gpre = big[:, 0:D]
        Q = big[:, D:D + out_dim]
        K = big[:, D + out_dim:D + 2 * out_dim]
        V = big[:, D + 2 * out_dim:D + 3 * out_dim]

        ngate = jax.nn.sigmoid(_layer_norm(gpre, dv[9:10, :], dv[10:11, :]))

        # --- tiny head-dim MLPs (VPU + lane reduce) ---------------------------
        sm = sm_ref[...]                           # (10, 3D) packed small params
        sb_h = jax.nn.relu(cx * sm[0:1, 0:hd] + cy * sm[1:2, 0:hd] + sm[2:3, 0:hd])
        sbias = jnp.sum(sb_h * sm[3:4, 0:hd], axis=-1, keepdims=True) + sm[9:10, 0:1]
        mg_h = jax.nn.relu(speed * sm[4:5, 0:hd] + angle * sm[5:6, 0:hd] + sm[6:7, 0:hd])
        gate = jax.nn.sigmoid(jnp.sum(mg_h * sm[7:8, 0:hd], axis=-1, keepdims=True)
                              + sm[9:10, 1:2])     # per key pair, (P, 1)

        # --- stacked-head attention: one score matmul, one softmax, one value
        #     matmul, then a lane-masked recombine ------------------------------
        lane = lax.broadcasted_iota(jnp.int32, (1, out_dim), 1)
        hms = [((lane >= hx * hd) & (lane < (hx + 1) * hd)).astype(f32)
               for hx in range(num_heads)]
        Qstack = jnp.concatenate([Q * hm for hm in hms], axis=0).astype(bf16)   # (H*P, 3D)
        Kb = K.astype(bf16)
        Vgb = (V * gate).astype(bf16)              # motion gate folded into V (per key)
        sb_stack = jnp.concatenate([sbias] * num_heads, axis=0)                 # (H*P, 1)

        scores = lax.dot_general(Qstack, Kb, (((1,), (1,)), ((), ())),
                                 preferred_element_type=f32) + sb_stack + key_bias
        m = jnp.max(scores, axis=-1, keepdims=True)
        e = jnp.exp(scores - m)
        attn = e * pl.reciprocal(jnp.sum(e, axis=-1, keepdims=True), approx=True)
        out4 = jnp.dot(attn.astype(bf16), Vgb, preferred_element_type=f32)      # (H*P, 3D)
        out_all = None
        for hx in range(num_heads):
            blk = out4[hx * P:(hx + 1) * P, :] * hms[hx]
            out_all = blk if out_all is None else out_all + blk                 # (P, 3D)

        # fc_out(3D -> 1), produced directly in lane layout: tt (1, P)
        tt_lane = lax.dot_general(sm[8:9, :], out_all, (((1,), (1,)), ((), ())),
                                  preferred_element_type=f32) + sm[9:10, 2:3]

        # --- Pos: reference quirk (zeros -> -10000), exact per-target softmax
        #     over the N neighbour slots, fully vectorised via iota masks ------
        pos_vals = jnp.where(nei_lane > 0.0, tt_lane, jnp.float32(0.0))         # (1, P)
        pos_log = jnp.where(pos_vals == 0.0, jnp.float32(-10000.0), pos_vals)
        tgt = lax.broadcasted_iota(jnp.int32, (N, P), 0)
        col = lax.broadcasted_iota(jnp.int32, (N, P), 1)
        S = (col >= tgt * N) & (col < (tgt + 1) * N)                            # (N, P) row-of-target mask
        rmax = jnp.max(jnp.where(S, pos_log, jnp.float32(-1e30)),
                       axis=-1, keepdims=True)                                  # exact per-target max
        e_pos = jnp.exp(jnp.where(S, pos_log - rmax, jnp.float32(-1e30)))       # (N, P)
        pos_w = e_pos / jnp.sum(e_pos, axis=-1, keepdims=True)                  # exact division

        # gated neighbour messages, aggregated per target
        h_rows = mask * hj * ngate                                              # (P, D)
        # f32 operands on the output path (no bf16 pre-cast of hidden-state data)
        hsum = jnp.dot(pos_w, h_rows, preferred_element_type=f32)               # (N, D)

        # weight MLP(D -> D) + residuals
        hw = jax.nn.relu(_layer_norm(
            jnp.dot(hsum, ww_ref[...], preferred_element_type=f32) + dv[11:12, :],
            dv[12:13, :], dv[13:14, :]))
        C = hw + cnv
        out_ref[...] = jnp.concatenate([h + jnp.tanh(C), C], axis=0)            # (2N, D)

    return kernel


def init_params(key, D, num_heads):
    out_dim = 3 * D
    hd = out_dim // num_heads

    def lin(k, fan_in, fan_out):
        k1, k2 = jax.random.split(k)
        w = jax.random.normal(k1, (fan_in, fan_out), jnp.float32) * 0.1
        b = jax.random.normal(k2, (1, fan_out), jnp.float32) * 0.1
        return w, b

    def ones():
        return jnp.ones((1, D), jnp.float32)

    def zeros():
        return jnp.zeros((1, D), jnp.float32)

    keys = jax.random.split(key, 12)
    wr, br = lin(keys[0], 2, D)
    wsa, bsa = lin(keys[1], 1, D)
    wg, bg = lin(keys[2], 5 * D, D)
    ww, bw = lin(keys[3], D, D)
    wq, bq = lin(keys[4], 5 * D, out_dim)
    wk, bk = lin(keys[5], 5 * D, out_dim)
    wv, bv = lin(keys[6], 5 * D, out_dim)
    wsb1, bsb1 = lin(keys[7], 2, hd)
    wsb2, bsb2 = lin(keys[8], hd, 1)
    wmg1, bmg1 = lin(keys[9], 2, hd)
    wmg2, bmg2 = lin(keys[10], hd, 1)
    wfc, bfc = lin(keys[11], out_dim, 1)

    return dict(
        wr=wr, br=br, gr=ones(), betr=zeros(),
        wsa=wsa, bsa=bsa, gsa=ones(), betsa=zeros(),
        wg=wg, bg=bg, gg=ones(), betg=zeros(),
        ww=ww, bw=bw, gw=ones(), betw=zeros(),
        wq=wq, bq=bq, wk=wk, bk=bk, wv=wv, bv=bv,
        wsb1=wsb1, bsb1=bsb1, wsb2t=wsb2.T, bsb2=bsb2,
        wmg1=wmg1, bmg1=bmg1, wmg2t=wmg2.T, bmg2=bmg2,
        wfct=wfc.T, bfc=bfc)


def global_interaction_batched(params, corr_index, speed_index, angle_index,
                               nei_index, hidden_state, cn, num_heads):
    """Batched (over scenes/timesteps) version: grid=(B,) with weights pinned
    via constant index_maps; the batch axis is marked 'parallel' (megacore on v7x)."""
    B, N = corr_index.shape[0], corr_index.shape[1]
    D = hidden_state.shape[-1]
    P = N * N
    out_dim = 3 * D
    hd = out_dim // num_heads
    f32 = jnp.float32

    corr = corr_index.reshape(B, P, 2).astype(f32)
    speed = speed_index.reshape(B, P, 1).astype(f32)
    angle = angle_index.reshape(B, P, 1).astype(f32)
    nei = nei_index.reshape(B, P).astype(f32)
    mask = (nei > 0).astype(f32)[..., None]                                      # (B, P, 1)

    # ---- packed per-scene inputs (3 arrays instead of ~8) ----
    feats = jnp.concatenate([corr, speed, angle, mask,
                             jnp.zeros((B, P, 3), f32)], axis=-1)                # (B, P, 8)
    nei_lane = (nei > 0).astype(f32)[:, None, :]                                 # (B, 1, P)
    hc = jnp.concatenate([hidden_state.astype(f32), cn.astype(f32)], axis=1)     # (B, 2N, D)

    # ---- packed parameter slabs (5 arrays instead of ~35; fold under jit) ----
    p = params
    scale = 1.0 / (hd ** 0.5)
    dvecs = jnp.concatenate([
        p['wr'][0:1], p['wr'][1:2], p['br'], p['gr'], p['betr'],
        p['wsa'], p['bsa'], p['gsa'], p['betsa'],
        p['gg'], p['betg'],
        p['bw'], p['gw'], p['betw'],
        jnp.zeros((2, D), f32)], axis=0)                                         # (16, D)
    wbig = jnp.concatenate([p['wg'], p['wq'] * scale, p['wk'], p['wv']],
                           axis=1).astype(jnp.bfloat16)                          # (5D, 10D) bf16
    bbig = jnp.concatenate([p['bg'], p['bq'] * scale, p['bk'], p['bv']], axis=1) # (1, 10D)

    def pad_row(v):
        return jnp.pad(v, ((0, 0), (0, out_dim - v.shape[1])))
    scalars = (jnp.zeros((1, out_dim), f32)
               .at[0, 0].set(p['bsb2'][0, 0])
               .at[0, 1].set(p['bmg2'][0, 0])
               .at[0, 2].set(p['bfc'][0, 0]))
    wsmall = jnp.concatenate([
        pad_row(p['wsb1'][0:1]), pad_row(p['wsb1'][1:2]), pad_row(p['bsb1']),
        pad_row(p['wsb2t']),
        pad_row(p['wmg1'][0:1]), pad_row(p['wmg1'][1:2]), pad_row(p['bmg1']),
        pad_row(p['wmg2t']),
        p['wfct'], scalars], axis=0)                                             # (10, 3D)
    ww = p['ww']                                                                 # (D, D) f32

    kernel = make_kernel(N, D, num_heads)
    out = pl.pallas_call(
        kernel,
        grid=(B,),
        out_shape=jax.ShapeDtypeStruct((B, 2 * N, D), f32),
        in_specs=[
            pl.BlockSpec((None, P, 8), lambda b: (b, 0, 0)),       # per-scene
            pl.BlockSpec((None, 1, P), lambda b: (b, 0, 0)),       # per-scene
            pl.BlockSpec((None, 2 * N, D), lambda b: (b, 0, 0)),   # per-scene
            pl.BlockSpec((16, D), lambda b: (0, 0)),               # weights (resident)
            pl.BlockSpec((5 * D, 10 * D), lambda b: (0, 0)),
            pl.BlockSpec((1, 10 * D), lambda b: (0, 0)),
            pl.BlockSpec((10, out_dim), lambda b: (0, 0)),
            pl.BlockSpec((D, D), lambda b: (0, 0)),
        ],
        out_specs=pl.BlockSpec((None, 2 * N, D), lambda b: (b, 0, 0)),
        scratch_shapes=[pltpu.VMEM((P, 5 * D), jnp.bfloat16)],
        compiler_params=pltpu.CompilerParams(dimension_semantics=("parallel",)),
    )(feats, nei_lane, hc, dvecs, wbig, bbig, wsmall, ww)

    h_k = out[:, 0:N, :]
    c_k = out[:, N:2 * N, :]
    # PyTorch early-returns (hidden_state, cn) when a scene has no active neighbours.
    has_nei = jnp.any(nei > 0, axis=-1)[:, None, None]
    H = jnp.where(has_nei, h_k, hidden_state.astype(f32))
    C = jnp.where(has_nei, c_k, cn.astype(f32))
    return H, C


def global_interaction(params, corr_index, speed_index, angle_index, nei_index,
                       hidden_state, cn, num_heads):
    """Single-scene call, matching the PyTorch module's forward() signature."""
    H, C = global_interaction_batched(
        params, corr_index[None], speed_index[None], angle_index[None],
        nei_index[None], hidden_state[None], cn[None], num_heads)
    return H[0], C[0]


if __name__ == "__main__":
    N, D, num_heads = 8, 32, 4   # N agents, hidden_size D, args.num_heads
    key = jax.random.PRNGKey(0)
    kp, ki = jax.random.split(key)
    params = init_params(kp, D, num_heads)

    k = jax.random.split(ki, 6)
    corr_index = jax.random.normal(k[0], (N, N, 2), jnp.float32)
    speed_index = jax.random.normal(k[1], (N, N, 1), jnp.float32)
    angle_index = jax.random.normal(k[2], (N, N, 1), jnp.float32)
    nei_index = (jax.random.uniform(k[3], (N, N)) > 0.4).astype(jnp.float32)
    hidden_state = jax.random.normal(k[4], (N, D), jnp.float32)
    cn = jax.random.normal(k[5], (N, D), jnp.float32)

    gi = jax.jit(global_interaction, static_argnums=(7,))
    H, C = gi(params, corr_index, speed_index, angle_index, nei_index,
              hidden_state, cn, num_heads)
    jax.block_until_ready((H, C))

    # Batched path: grid over scenes (parallel axis -> both TCs on v7x),
    # weights fetched once and kept resident via constant index_maps.
    B = 2
    gib = jax.jit(global_interaction_batched, static_argnums=(7,))
    Hb, Cb = gib(params,
                 jnp.stack([corr_index] * B), jnp.stack([speed_index] * B),
                 jnp.stack([angle_index] * B), jnp.stack([nei_index] * B),
                 jnp.stack([hidden_state] * B), jnp.stack([cn] * B), num_heads)
    jax.block_until_ready((Hb, Cb))

    print("KERNEL_OK")
</pallas_src>

<mosaic_0001>
module attributes {stable_mosaic.version = 11 : i64} {
  func.func @kernel(%arg0: i32, %arg1: memref<1x64x8xf32, #tpu.memory_space<vmem>>, %arg2: memref<1x1x64xf32, #tpu.memory_space<vmem>>, %arg3: memref<1x16x32xf32, #tpu.memory_space<vmem>>, %arg4: memref<16x32xf32, #tpu.memory_space<vmem>>, %arg5: memref<160x320xbf16, #tpu.memory_space<vmem>>, %arg6: memref<1x320xf32, #tpu.memory_space<vmem>>, %arg7: memref<10x96xf32, #tpu.memory_space<vmem>>, %arg8: memref<32x32xf32, #tpu.memory_space<vmem>>, %arg9: memref<1x16x32xf32, #tpu.memory_space<vmem>>, %arg10: memref<64x160xbf16, #tpu.memory_space<vmem>>) attributes {dimension_semantics = [#tpu.dimension_semantics<parallel>], iteration_bounds = array<i64: 1>, scalar_prefetch = 0 : i64, scratch_operands = 1 : i64, tpu.core_type = #tpu.core_type<tc>, window_params = [{transform_indices = @transform_0, window_bounds = array<i64: 1, 64, 8>}, {transform_indices = @transform_1, window_bounds = array<i64: 1, 1, 64>}, {transform_indices = @transform_2, window_bounds = array<i64: 1, 16, 32>}, {pipeline_mode = #tpu.pipeline_mode<synchronous>, transform_indices = @transform_3, window_bounds = array<i64: 16, 32>}, {pipeline_mode = #tpu.pipeline_mode<synchronous>, transform_indices = @transform_4, window_bounds = array<i64: 160, 320>}, {pipeline_mode = #tpu.pipeline_mode<synchronous>, transform_indices = @transform_5, window_bounds = array<i64: 1, 320>}, {pipeline_mode = #tpu.pipeline_mode<synchronous>, transform_indices = @transform_6, window_bounds = array<i64: 10, 96>}, {pipeline_mode = #tpu.pipeline_mode<synchronous>, transform_indices = @transform_7, window_bounds = array<i64: 32, 32>}, {transform_indices = @transform_8, window_bounds = array<i64: 1, 16, 32>}]} {
    %c0 = arith.constant 0 : index
    %c0_0 = arith.constant 0 : index
    %c0_1 = arith.constant 0 : index
    %0 = vector.load %arg1[%c0, %c0_0, %c0_1] : memref<1x64x8xf32, #tpu.memory_space<vmem>>, vector<1x64x8xf32>
    %1 = vector.shape_cast %0 : vector<1x64x8xf32> to vector<64x8xf32>
    %2 = vector.extract_strided_slice %1 {offsets = [0, 0], sizes = [64, 1], strides = [1, 1]} : vector<64x8xf32> to vector<64x1xf32>
    %3 = vector.extract_strided_slice %1 {offsets = [0, 1], sizes = [64, 1], strides = [1, 1]} : vector<64x8xf32> to vector<64x1xf32>
    %4 = vector.extract_strided_slice %1 {offsets = [0, 2], sizes = [64, 1], strides = [1, 1]} : vector<64x8xf32> to vector<64x1xf32>
    %5 = vector.extract_strided_slice %1 {offsets = [0, 3], sizes = [64, 1], strides = [1, 1]} : vector<64x8xf32> to vector<64x1xf32>
    %6 = vector.extract_strided_slice %1 {offsets = [0, 4], sizes = [64, 1], strides = [1, 1]} : vector<64x8xf32> to vector<64x1xf32>
    %c0_2 = arith.constant 0 : index
    %c0_3 = arith.constant 0 : index
    %c0_4 = arith.constant 0 : index
    %7 = vector.load %arg2[%c0_2, %c0_3, %c0_4] : memref<1x1x64xf32, #tpu.memory_space<vmem>>, vector<1x1x64xf32>
    %8 = vector.shape_cast %7 : vector<1x1x64xf32> to vector<1x64xf32>
    %cst = arith.constant 0.000000e+00 : f32
    %9 = vector.broadcast %cst : f32 to vector<1x64xf32>
    %10 = arith.cmpf ogt, %8, %9 : vector<1x64xf32>
    %cst_5 = arith.constant 0.000000e+00 : f32
    %cst_6 = arith.constant -1.000000e+30 : f32
    %11 = vector.broadcast %cst_5 : f32 to vector<1x64xf32>
    %12 = vector.broadcast %cst_6 : f32 to vector<1x64xf32>
    %13 = arith.select %10, %11, %12 : vector<1x64xi1>, vector<1x64xf32>
    %c0_7 = arith.constant 0 : index
    %c0_8 = arith.constant 0 : index
    %c0_9 = arith.constant 0 : index
    %14 = vector.load %arg3[%c0_7, %c0_8, %c0_9] : memref<1x16x32xf32, #tpu.memory_space<vmem>>, vector<1x16x32xf32>
    %15 = vector.shape_cast %14 : vector<1x16x32xf32> to vector<16x32xf32>
    %16 = vector.extract_strided_slice %15 {offsets = [0, 0], sizes = [8, 32], strides = [1, 1]} : vector<16x32xf32> to vector<8x32xf32>
    %17 = vector.extract_strided_slice %15 {offsets = [8, 0], sizes = [8, 32], strides = [1, 1]} : vector<16x32xf32> to vector<8x32xf32>
    %c0_10 = arith.constant 0 : index
    %c0_11 = arith.constant 0 : index
    %18 = vector.load %arg4[%c0_10, %c0_11] : memref<16x32xf32, #tpu.memory_space<vmem>>, vector<16x32xf32>
    %19 = vector.extract_strided_slice %18 {offsets = [0, 0], sizes = [1, 32], strides = [1, 1]} : vector<16x32xf32> to vector<1x32xf32>
    %20 = vector.broadcast %2 : vector<64x1xf32> to vector<64x32xf32>
    %21 = vector.broadcast %19 : vector<1x32xf32> to vector<64x32xf32>
    %22 = arith.mulf %20, %21 : vector<64x32xf32>
    %23 = vector.extract_strided_slice %18 {offsets = [1, 0], sizes = [1, 32], strides = [1, 1]} : vector<16x32xf32> to vector<1x32xf32>
    %24 = vector.broadcast %3 : vector<64x1xf32> to vector<64x32xf32>
    %25 = vector.broadcast %23 : vector<1x32xf32> to vector<64x32xf32>
    %26 = arith.mulf %24, %25 : vector<64x32xf32>
    %27 = arith.addf %22, %26 : vector<64x32xf32>
    %28 = vector.extract_strided_slice %18 {offsets = [2, 0], sizes = [1, 32], strides = [1, 1]} : vector<16x32xf32> to vector<1x32xf32>
    %29 = vector.broadcast %28 : vector<1x32xf32> to vector<64x32xf32>
    %30 = arith.addf %27, %29 : vector<64x32xf32>
    %31 = vector.extract_strided_slice %18 {offsets = [3, 0], sizes = [1, 32], strides = [1, 1]} : vector<16x32xf32> to vector<1x32xf32>
    %32 = vector.extract_strided_slice %18 {offsets = [4, 0], sizes = [1, 32], strides = [1, 1]} : vector<16x32xf32> to vector<1x32xf32>
    %cst_12 = arith.constant dense<0.000000e+00> : vector<64xf32>
    %33 = vector.multi_reduction <add>, %30, %cst_12 [1] : vector<64x32xf32> to vector<64xf32>
    %34 = vector.shape_cast %33 : vector<64xf32> to vector<64x1xf32>
    %cst_13 = arith.constant 3.200000e+01 : f32
    %35 = vector.broadcast %cst_13 : f32 to vector<64x1xf32>
    %36 = arith.divf %34, %35 : vector<64x1xf32>
    %37 = vector.broadcast %36 : vector<64x1xf32> to vector<64x32xf32>
    %38 = arith.subf %30, %37 : vector<64x32xf32>
    %39 = arith.mulf %38, %38 : vector<64x32xf32>
    %cst_14 = arith.constant dense<0.000000e+00> : vector<64xf32>
    %40 = vector.multi_reduction <add>, %39, %cst_14 [1] : vector<64x32xf32> to vector<64xf32>
    %41 = vector.shape_cast %40 : vector<64xf32> to vector<64x1xf32>
    %cst_15 = arith.constant 3.200000e+01 : f32
    %42 = vector.broadcast %cst_15 : f32 to vector<64x1xf32>
    %43 = arith.divf %41, %42 : vector<64x1xf32>
    %cst_16 = arith.constant 9.99999974E-6 : f32
    %44 = vector.broadcast %cst_16 : f32 to vector<64x1xf32>
    %45 = arith.addf %43, %44 : vector<64x1xf32>
    %46 = math.rsqrt %45 : vector<64x1xf32>
    %47 = vector.broadcast %46 : vector<64x1xf32> to vector<64x32xf32>
    %48 = arith.mulf %38, %47 : vector<64x32xf32>
    %49 = vector.broadcast %31 : vector<1x32xf32> to vector<64x32xf32>
    %50 = arith.mulf %49, %48 : vector<64x32xf32>
    %51 = vector.broadcast %32 : vector<1x32xf32> to vector<64x32xf32>
    %52 = arith.addf %50, %51 : vector<64x32xf32>
    %cst_17 = arith.constant 0.000000e+00 : f32
    %53 = vector.broadcast %cst_17 : f32 to vector<64x32xf32>
    %54 = arith.maximumf %52, %53 : vector<64x32xf32>
    %55 = vector.extract_strided_slice %18 {offsets = [5, 0], sizes = [1, 32], strides = [1, 1]} : vector<16x32xf32> to vector<1x32xf32>
    %56 = vector.broadcast %4 : vector<64x1xf32> to vector<64x32xf32>
    %57 = vector.broadcast %55 : vector<1x32xf32> to vector<64x32xf32>
    %58 = arith.mulf %56, %57 : vector<64x32xf32>
    %59 = vector.extract_strided_slice %18 {offsets = [6, 0], sizes = [1, 32], strides = [1, 1]} : vector<16x32xf32> to vector<1x32xf32>
    %60 = vector.broadcast %59 : vector<1x32xf32> to vector<64x32xf32>
    %61 = arith.addf %58, %60 : vector<64x32xf32>
    %62 = vector.extract_strided_slice %18 {offsets = [7, 0], sizes = [1, 32], strides = [1, 1]} : vector<16x32xf32> to vector<1x32xf32>
    %63 = vector.extract_strided_slice %18 {offsets = [8, 0], sizes = [1, 32], strides = [1, 1]} : vector<16x32xf32> to vector<1x32xf32>
    %cst_18 = arith.constant dense<0.000000e+00> : vector<64xf32>
    %64 = vector.multi_reduction <add>, %61, %cst_18 [1] : vector<64x32xf32> to vector<64xf32>
    %65 = vector.shape_cast %64 : vector<64xf32> to vector<64x1xf32>
    %cst_19 = arith.constant 3.200000e+01 : f32
    %66 = vector.broadcast %cst_19 : f32 to vector<64x1xf32>
    %67 = arith.divf %65, %66 : vector<64x1xf32>
    %68 = vector.broadcast %67 : vector<64x1xf32> to vector<64x32xf32>
    %69 = arith.subf %61, %68 : vector<64x32xf32>
    %70 = arith.mulf %69, %69 : vector<64x32xf32>
    %cst_20 = arith.constant dense<0.000000e+00> : vector<64xf32>
    %71 = vector.multi_reduction <add>, %70, %cst_20 [1] : vector<64x32xf32> to vector<64xf32>
    %72 = vector.shape_cast %71 : vector<64xf32> to vector<64x1xf32>
    %cst_21 = arith.constant 3.200000e+01 : f32
    %73 = vector.broadcast %cst_21 : f32 to vector<64x1xf32>
    %74 = arith.divf %72, %73 : vector<64x1xf32>
    %cst_22 = arith.constant 9.99999974E-6 : f32
    %75 = vector.broadcast %cst_22 : f32 to vector<64x1xf32>
    %76 = arith.addf %74, %75 : vector<64x1xf32>
    %77 = math.rsqrt %76 : vector<64x1xf32>
    %78 = vector.broadcast %77 : vector<64x1xf32> to vector<64x32xf32>
    %79 = arith.mulf %69, %78 : vector<64x32xf32>
    %80 = vector.broadcast %62 : vector<1x32xf32> to vector<64x32xf32>
    %81 = arith.mulf %80, %79 : vector<64x32xf32>
    %82 = vector.broadcast %63 : vector<1x32xf32> to vector<64x32xf32>
    %83 = arith.addf %81, %82 : vector<64x32xf32>
    %cst_23 = arith.constant 0.000000e+00 : f32
    %84 = vector.broadcast %cst_23 : f32 to vector<64x32xf32>
    %85 = arith.maximumf %83, %84 : vector<64x32xf32>
    %86 = vector.extract_strided_slice %18 {offsets = [5, 0], sizes = [1, 32], strides = [1, 1]} : vector<16x32xf32> to vector<1x32xf32>
    %87 = vector.broadcast %5 : vector<64x1xf32> to vector<64x32xf32>
    %88 = vector.broadcast %86 : vector<1x32xf32> to vector<64x32xf32>
    %89 = arith.mulf %87, %88 : vector<64x32xf32>
    %90 = vector.extract_strided_slice %18 {offsets = [6, 0], sizes = [1, 32], strides = [1, 1]} : vector<16x32xf32> to vector<1x32xf32>
    %91 = vector.broadcast %90 : vector<1x32xf32> to vector<64x32xf32>
    %92 = arith.addf %89, %91 : vector<64x32xf32>
    %93 = vector.extract_strided_slice %18 {offsets = [7, 0], sizes = [1, 32], strides = [1, 1]} : vector<16x32xf32> to vector<1x32xf32>
    %94 = vector.extract_strided_slice %18 {offsets = [8, 0], sizes = [1, 32], strides = [1, 1]} : vector<16x32xf32> to vector<1x32xf32>
    %cst_24 = arith.constant dense<0.000000e+00> : vector<64xf32>
    %95 = vector.multi_reduction <add>, %92, %cst_24 [1] : vector<64x32xf32> to vector<64xf32>
    %96 = vector.shape_cast %95 : vector<64xf32> to vector<64x1xf32>
    %cst_25 = arith.constant 3.200000e+01 : f32
    %97 = vector.broadcast %cst_25 : f32 to vector<64x1xf32>
    %98 = arith.divf %96, %97 : vector<64x1xf32>
    %99 = vector.broadcast %98 : vector<64x1xf32> to vector<64x32xf32>
    %100 = arith.subf %92, %99 : vector<64x32xf32>
    %101 = arith.mulf %100, %100 : vector<64x32xf32>
    %cst_26 = arith.constant dense<0.000000e+00> : vector<64xf32>
    %102 = vector.multi_reduction <add>, %101, %cst_26 [1] : vector<64x32xf32> to vector<64xf32>
    %103 = vector.shape_cast %102 : vector<64xf32> to vector<64x1xf32>
    %cst_27 = arith.constant 3.200000e+01 : f32
    %104 = vector.broadcast %cst_27 : f32 to vector<64x1xf32>
    %105 = arith.divf %103, %104 : vector<64x1xf32>
    %cst_28 = arith.constant 9.99999974E-6 : f32
    %106 = vector.broadcast %cst_28 : f32 to vector<64x1xf32>
    %107 = arith.addf %105, %106 : vector<64x1xf32>
    %108 = math.rsqrt %107 : vector<64x1xf32>
    %109 = vector.broadcast %108 : vector<64x1xf32> to vector<64x32xf32>
    %110 = arith.mulf %100, %109 : vector<64x32xf32>
    %111 = vector.broadcast %93 : vector<1x32xf32> to vector<64x32xf32>
    %112 = arith.mulf %111, %110 : vector<64x32xf32>
    %113 = vector.broadcast %94 : vector<1x32xf32> to vector<64x32xf32>
    %114 = arith.addf %112, %113 : vector<64x32xf32>
    %cst_29 = arith.constant 0.000000e+00 : f32
    %115 = vector.broadcast %cst_29 : f32 to vector<64x32xf32>
    %116 = arith.maximumf %114, %115 : vector<64x32xf32>
    %117 = vector.shape_cast %16 : vector<8x32xf32> to vector<8x1x32xf32>
    %118 = vector.shape_cast %117 : vector<8x1x32xf32> to vector<8x1x32xf32>
    %119 = vector.broadcast %118 : vector<8x1x32xf32> to vector<8x8x32xf32>
    %120 = vector.shape_cast %119 : vector<8x8x32xf32> to vector<64x32xf32>
    %121 = vector.shape_cast %16 : vector<8x32xf32> to vector<1x8x32xf32>
    %122 = vector.shape_cast %121 : vector<1x8x32xf32> to vector<1x8x32xf32>
    %123 = vector.broadcast %122 : vector<1x8x32xf32> to vector<8x8x32xf32>
    %124 = vector.shape_cast %123 : vector<8x8x32xf32> to vector<64x32xf32>
    %125 = arith.truncf %54 : vector<64x32xf32> to vector<64x32xbf16>
    %c0_30 = arith.constant 0 : index
    %c0_31 = arith.constant 0 : index
    %126 = vector.load %arg10[%c0_30, %c0_31] : memref<64x160xbf16, #tpu.memory_space<vmem>>, vector<64x32xbf16>
    tpu.vector_store %arg10[%c0_30, %c0_31], %125 {strides = array<i32>} : memref<64x160xbf16, #tpu.memory_space<vmem>>, vector<64x32xbf16>,
    %127 = arith.truncf %85 : vector<64x32xf32> to vector<64x32xbf16>
    %c0_32 = arith.constant 0 : index
    %c32 = arith.constant 32 : index
    %128 = vector.load %arg10[%c0_32, %c32] : memref<64x160xbf16, #tpu.memory_space<vmem>>, vector<64x32xbf16>
    tpu.vector_store %arg10[%c0_32, %c32], %127 {strides = array<i32>} : memref<64x160xbf16, #tpu.memory_space<vmem>>, vector<64x32xbf16>,
    %129 = arith.truncf %116 : vector<64x32xf32> to vector<64x32xbf16>
    %c0_33 = arith.constant 0 : index
    %c64 = arith.constant 64 : index
    %130 = vector.load %arg10[%c0_33, %c64] : memref<64x160xbf16, #tpu.memory_space<vmem>>, vector<64x32xbf16>
    tpu.vector_store %arg10[%c0_33, %c64], %129 {strides = array<i32>} : memref<64x160xbf16, #tpu.memory_space<vmem>>, vector<64x32xbf16>,
    %131 = arith.truncf %120 : vector<64x32xf32> to vector<64x32xbf16>
    %c0_34 = arith.constant 0 : index
    %c96 = arith.constant 96 : index
    %132 = vector.load %arg10[%c0_34, %c96] : memref<64x160xbf16, #tpu.memory_space<vmem>>, vector<64x32xbf16>
    tpu.vector_store %arg10[%c0_34, %c96], %131 {strides = array<i32>} : memref<64x160xbf16, #tpu.memory_space<vmem>>, vector<64x32xbf16>,
    %133 = arith.truncf %124 : vector<64x32xf32> to vector<64x32xbf16>
    %c0_35 = arith.constant 0 : index
    %c128 = arith.constant 128 : index
    %134 = vector.load %arg10[%c0_35, %c128] : memref<64x160xbf16, #tpu.memory_space<vmem>>, vector<64x32xbf16>
    tpu.vector_store %arg10[%c0_35, %c128], %133 {strides = array<i32>} : memref<64x160xbf16, #tpu.memory_space<vmem>>, vector<64x32xbf16>,
    %c0_36 = arith.constant 0 : index
    %c0_37 = arith.constant 0 : index
    %135 = vector.load %arg10[%c0_36, %c0_37] : memref<64x160xbf16, #tpu.memory_space<vmem>>, vector<64x160xbf16>
    %c0_38 = arith.constant 0 : index
    %c0_39 = arith.constant 0 : index
    %136 = vector.load %arg5[%c0_38, %c0_39] : memref<160x320xbf16, #tpu.memory_space<vmem>>, vector<160x320xbf16>
    %cst_40 = arith.constant dense<0.000000e+00> : vector<64x320xf32>
    %137 = tpu.matmul %135, %136, %cst_40 {dimension_numbers = #tpu.dot_dimension_numbers<[1], [0], [0], [1], [0, 0, 1, 1], [], []>} : vector<64x160xbf16>, vector<160x320xbf16>, vector<64x320xf32> -> vector<64x320xf32>
    %c0_41 = arith.constant 0 : index
    %c0_42 = arith.constant 0 : index
    %138 = vector.load %arg6[%c0_41, %c0_42] : memref<1x320xf32, #tpu.memory_space<vmem>>, vector<1x320xf32>
    %139 = vector.broadcast %138 : vector<1x320xf32> to vector<64x320xf32>
    %140 = arith.addf %137, %139 : vector<64x320xf32>
    %141 = vector.extract_strided_slice %140 {offsets = [0, 0], sizes = [64, 32], strides = [1, 1]} : vector<64x320xf32> to vector<64x32xf32>
    %142 = vector.extract_strided_slice %140 {offsets = [0, 32], sizes = [64, 96], strides = [1, 1]} : vector<64x320xf32> to vector<64x96xf32>
    %143 = vector.extract_strided_slice %140 {offsets = [0, 128], sizes = [64, 96], strides = [1, 1]} : vector<64x320xf32> to vector<64x96xf32>
    %144 = vector.extract_strided_slice %140 {offsets = [0, 224], sizes = [64, 96], strides = [1, 1]} : vector<64x320xf32> to vector<64x96xf32>
    %145 = vector.extract_strided_slice %18 {offsets = [9, 0], sizes = [1, 32], strides = [1, 1]} : vector<16x32xf32> to vector<1x32xf32>
    %146 = vector.extract_strided_slice %18 {offsets = [10, 0], sizes = [1, 32], strides = [1, 1]} : vector<16x32xf32> to vector<1x32xf32>
    %cst_43 = arith.constant dense<0.000000e+00> : vector<64xf32>
    %147 = vector.multi_reduction <add>, %141, %cst_43 [1] : vector<64x32xf32> to vector<64xf32>
    %148 = vector.shape_cast %147 : vector<64xf32> to vector<64x1xf32>
    %cst_44 = arith.constant 3.200000e+01 : f32
    %149 = vector.broadcast %cst_44 : f32 to vector<64x1xf32>
    %150 = arith.divf %148, %149 : vector<64x1xf32>
    %151 = vector.broadcast %150 : vector<64x1xf32> to vector<64x32xf32>
    %152 = arith.subf %141, %151 : vector<64x32xf32>
    %153 = arith.mulf %152, %152 : vector<64x32xf32>
    %cst_45 = arith.constant dense<0.000000e+00> : vector<64xf32>
    %154 = vector.multi_reduction <add>, %153, %cst_45 [1] : vector<64x32xf32> to vector<64xf32>
    %155 = vector.shape_cast %154 : vector<64xf32> to vector<64x1xf32>
    %cst_46 = arith.constant 3.200000e+01 : f32
    %156 = vector.broadcast %cst_46 : f32 to vector<64x1xf32>
    %157 = arith.divf %155, %156 : vector<64x1xf32>
    %cst_47 = arith.constant 9.99999974E-6 : f32
    %158 = vector.broadcast %cst_47 : f32 to vector<64x1xf32>
    %159 = arith.addf %157, %158 : vector<64x1xf32>
    %160 = math.rsqrt %159 : vector<64x1xf32>
    %161 = vector.broadcast %160 : vector<64x1xf32> to vector<64x32xf32>
    %162 = arith.mulf %152, %161 : vector<64x32xf32>
    %163 = vector.broadcast %145 : vector<1x32xf32> to vector<64x32xf32>
    %164 = arith.mulf %163, %162 : vector<64x32xf32>
    %165 = vector.broadcast %146 : vector<1x32xf32> to vector<64x32xf32>
    %166 = arith.addf %164, %165 : vector<64x32xf32>
    %167 = arith.negf %166 : vector<64x32xf32>
    %168 = math.exp %167 : vector<64x32xf32>
    %cst_48 = arith.constant 1.000000e+00 : f32
    %169 = vector.broadcast %cst_48 : f32 to vector<64x32xf32>
    %170 = arith.addf %169, %168 : vector<64x32xf32>
    %171 = arith.divf %169, %170 : vector<64x32xf32>
    %c0_49 = arith.constant 0 : index
    %c0_50 = arith.constant 0 : index
    %172 = vector.load %arg7[%c0_49, %c0_50] : memref<10x96xf32, #tpu.memory_space<vmem>>, vector<10x96xf32>
    %173 = vector.extract_strided_slice %172 {offsets = [0, 0], sizes = [1, 24], strides = [1, 1]} : vector<10x96xf32> to vector<1x24xf32>
    %174 = vector.broadcast %2 : vector<64x1xf32> to vector<64x24xf32>
    %175 = vector.broadcast %173 : vector<1x24xf32> to vector<64x24xf32>
    %176 = arith.mulf %174, %175 : vector<64x24xf32>
    %177 = vector.extract_strided_slice %172 {offsets = [1, 0], sizes = [1, 24], strides = [1, 1]} : vector<10x96xf32> to vector<1x24xf32>
    %178 = vector.broadcast %3 : vector<64x1xf32> to vector<64x24xf32>
    %179 = vector.broadcast %177 : vector<1x24xf32> to vector<64x24xf32>
    %180 = arith.mulf %178, %179 : vector<64x24xf32>
    %181 = arith.addf %176, %180 : vector<64x24xf32>
    %182 = vector.extract_strided_slice %172 {offsets = [2, 0], sizes = [1, 24], strides = [1, 1]} : vector<10x96xf32> to vector<1x24xf32>
    %183 = vector.broadcast %182 : vector<1x24xf32> to vector<64x24xf32>
    %184 = arith.addf %181, %183 : vector<64x24xf32>
    %cst_51 = arith.constant 0.000000e+00 : f32
    %185 = vector.broadcast %cst_51 : f32 to vector<64x24xf32>
    %186 = arith.maximumf %184, %185 : vector<64x24xf32>
    %187 = vector.extract_strided_slice %172 {offsets = [3, 0], sizes = [1, 24], strides = [1, 1]} : vector<10x96xf32> to vector<1x24xf32>
    %188 = vector.broadcast %187 : vector<1x24xf32> to vector<64x24xf32>
    %189 = arith.mulf %186, %188 : vector<64x24xf32>
    %cst_52 = arith.constant dense<0.000000e+00> : vector<64xf32>
    %190 = vector.multi_reduction <add>, %189, %cst_52 [1] : vector<64x24xf32> to vector<64xf32>
    %191 = vector.shape_cast %190 : vector<64xf32> to vector<64x1xf32>
    %192 = vector.extract_strided_slice %172 {offsets = [9, 0], sizes = [1, 1], strides = [1, 1]} : vector<10x96xf32> to vector<1x1xf32>
    %193 = vector.broadcast %192 : vector<1x1xf32> to vector<64x1xf32>
    %194 = arith.addf %191, %193 : vector<64x1xf32>
    %195 = vector.extract_strided_slice %172 {offsets = [4, 0], sizes = [1, 24], strides = [1, 1]} : vector<10x96xf32> to vector<1x24xf32>
    %196 = vector.broadcast %4 : vector<64x1xf32> to vector<64x24xf32>
    %197 = vector.broadcast %195 : vector<1x24xf32> to vector<64x24xf32>
    %198 = arith.mulf %196, %197 : vector<64x24xf32>
    %199 = vector.extract_strided_slice %172 {offsets = [5, 0], sizes = [1, 24], strides = [1, 1]} : vector<10x96xf32> to vector<1x24xf32>
    %200 = vector.broadcast %5 : vector<64x1xf32> to vector<64x24xf32>
    %201 = vector.broadcast %199 : vector<1x24xf32> to vector<64x24xf32>
    %202 = arith.mulf %200, %201 : vector<64x24xf32>
    %203 = arith.addf %198, %202 : vector<64x24xf32>
    %204 = vector.extract_strided_slice %172 {offsets = [6, 0], sizes = [1, 24], strides = [1, 1]} : vector<10x96xf32> to vector<1x24xf32>
    %205 = vector.broadcast %204 : vector<1x24xf32> to vector<64x24xf32>
    %206 = arith.addf %203, %205 : vector<64x24xf32>
    %cst_53 = arith.constant 0.000000e+00 : f32
    %207 = vector.broadcast %cst_53 : f32 to vector<64x24xf32>
    %208 = arith.maximumf %206, %207 : vector<64x24xf32>
    %209 = vector.extract_strided_slice %172 {offsets = [7, 0], sizes = [1, 24], strides = [1, 1]} : vector<10x96xf32> to vector<1x24xf32>
    %210 = vector.broadcast %209 : vector<1x24xf32> to vector<64x24xf32>
    %211 = arith.mulf %208, %210 : vector<64x24xf32>
    %cst_54 = arith.constant dense<0.000000e+00> : vector<64xf32>
    %212 = vector.multi_reduction <add>, %211, %cst_54 [1] : vector<64x24xf32> to vector<64xf32>
    %213 = vector.shape_cast %212 : vector<64xf32> to vector<64x1xf32>
    %214 = vector.extract_strided_slice %172 {offsets = [9, 1], sizes = [1, 1], strides = [1, 1]} : vector<10x96xf32> to vector<1x1xf32>
    %215 = vector.broadcast %214 : vector<1x1xf32> to vector<64x1xf32>
    %216 = arith.addf %213, %215 : vector<64x1xf32>
    %217 = arith.negf %216 : vector<64x1xf32>
    %218 = math.exp %217 : vector<64x1xf32>
    %cst_55 = arith.constant 1.000000e+00 : f32
    %219 = vector.broadcast %cst_55 : f32 to vector<64x1xf32>
    %220 = arith.addf %219, %218 : vector<64x1xf32>
    %221 = arith.divf %219, %220 : vector<64x1xf32>
    %222 = tpu.iota {dimensions = array<i32: 1>} : vector<1x96xi32>
    %c0_i32 = arith.constant 0 : i32
    %223 = vector.broadcast %c0_i32 : i32 to vector<1x96xi32>
    %224 = arith.cmpi sge, %222, %223 : vector<1x96xi32>
    %c24_i32 = arith.constant 24 : i32
    %225 = vector.broadcast %c24_i32 : i32 to vector<1x96xi32>
    %226 = arith.cmpi slt, %222, %225 : vector<1x96xi32>
    %227 = arith.andi %224, %226 : vector<1x96xi1>
    %228 = arith.extui %227 : vector<1x96xi1> to vector<1x96xi32>
    %229 = arith.sitofp %228 : vector<1x96xi32> to vector<1x96xf32>
    %c24_i32_56 = arith.constant 24 : i32
    %230 = vector.broadcast %c24_i32_56 : i32 to vector<1x96xi32>
    %231 = arith.cmpi sge, %222, %230 : vector<1x96xi32>
    %c48_i32 = arith.constant 48 : i32
    %232 = vector.broadcast %c48_i32 : i32 to vector<1x96xi32>
    %233 = arith.cmpi slt, %222, %232 : vector<1x96xi32>
    %234 = arith.andi %231, %233 : vector<1x96xi1>
    %235 = arith.extui %234 : vector<1x96xi1> to vector<1x96xi32>
    %236 = arith.sitofp %235 : vector<1x96xi32> to vector<1x96xf32>
    %c48_i32_57 = arith.constant 48 : i32
    %237 = vector.broadcast %c48_i32_57 : i32 to vector<1x96xi32>
    %238 = arith.cmpi sge, %222, %237 : vector<1x96xi32>
    %c72_i32 = arith.constant 72 : i32
    %239 = vector.broadcast %c72_i32 : i32 to vector<1x96xi32>
    %240 = arith.cmpi slt, %222, %239 : vector<1x96xi32>
    %241 = arith.andi %238, %240 : vector<1x96xi1>
    %242 = arith.extui %241 : vector<1x96xi1> to vector<1x96xi32>
    %243 = arith.sitofp %242 : vector<1x96xi32> to vector<1x96xf32>
    %c72_i32_58 = arith.constant 72 : i32
    %244 = vector.broadcast %c72_i32_58 : i32 to vector<1x96xi32>
    %245 = arith.cmpi sge, %222, %244 : vector<1x96xi32>
    %c96_i32 = arith.constant 96 : i32
    %246 = vector.broadcast %c96_i32 : i32 to vector<1x96xi32>
    %247 = arith.cmpi slt, %222, %246 : vector<1x96xi32>
    %248 = arith.andi %245, %247 : vector<1x96xi1>
    %249 = arith.extui %248 : vector<1x96xi1> to vector<1x96xi32>
    %250 = arith.sitofp %249 : vector<1x96xi32> to vector<1x96xf32>
    %251 = vector.broadcast %229 : vector<1x96xf32> to vector<64x96xf32>
    %252 = arith.mulf %142, %251 : vector<64x96xf32>
    %253 = vector.broadcast %236 : vector<1x96xf32> to vector<64x96xf32>
    %254 = arith.mulf %142, %253 : vector<64x96xf32>
    %255 = vector.broadcast %243 : vector<1x96xf32> to vector<64x96xf32>
    %256 = arith.mulf %142, %255 : vector<64x96xf32>
    %257 = vector.broadcast %250 : vector<1x96xf32> to vector<64x96xf32>
    %258 = arith.mulf %142, %257 : vector<64x96xf32>
    %259 = tpu.concatenate %252, %254, %256, %258 in 0 : vector<64x96xf32>, vector<64x96xf32>, vector<64x96xf32>, vector<64x96xf32> -> vector<256x96xf32>
    %260 = arith.truncf %259 : vector<256x96xf32> to vector<256x96xbf16>
    %261 = arith.truncf %143 : vector<64x96xf32> to vector<64x96xbf16>
    %262 = vector.broadcast %221 : vector<64x1xf32> to vector<64x96xf32>
    %263 = arith.mulf %144, %262 : vector<64x96xf32>
    %264 = arith.truncf %263 : vector<64x96xf32> to vector<64x96xbf16>
    %265 = tpu.concatenate %194, %194, %194, %194 in 0 : vector<64x1xf32>, vector<64x1xf32>, vector<64x1xf32>, vector<64x1xf32> -> vector<256x1xf32>
    %cst_59 = arith.constant dense<0.000000e+00> : vector<256x64xf32>
    %266 = tpu.matmul %260, %261, %cst_59 {dimension_numbers = #tpu.dot_dimension_numbers<[1], [1], [0], [0], [0, 0, 1, 0], [], []>} : vector<256x96xbf16>, vector<64x96xbf16>, vector<256x64xf32> -> vector<256x64xf32>
    %267 = vector.broadcast %265 : vector<256x1xf32> to vector<256x64xf32>
    %268 = arith.addf %266, %267 : vector<256x64xf32>
    %269 = vector.broadcast %13 : vector<1x64xf32> to vector<256x64xf32>
    %270 = arith.addf %268, %269 : vector<256x64xf32>
    %cst_60 = arith.constant dense<0xFF800000> : vector<256xf32>
    %271 = vector.multi_reduction <maximumf>, %270, %cst_60 [1] : vector<256x64xf32> to vector<256xf32>
    %272 = vector.shape_cast %271 : vector<256xf32> to vector<256x1xf32>
    %273 = vector.broadcast %272 : vector<256x1xf32> to vector<256x64xf32>
    %274 = arith.subf %270, %273 : vector<256x64xf32>
    %275 = math.exp %274 : vector<256x64xf32>
    %cst_61 = arith.constant dense<0.000000e+00> : vector<256xf32>
    %276 = vector.multi_reduction <add>, %275, %cst_61 [1] : vector<256x64xf32> to vector<256xf32>
    %277 = vector.shape_cast %276 : vector<256xf32> to vector<256x1xf32>
    %278 = tpu.reciprocal %277 {approx = true} : vector<256x1xf32> -> vector<256x1xf32>
    %279 = vector.broadcast %278 : vector<256x1xf32> to vector<256x64xf32>
    %280 = arith.mulf %275, %279 : vector<256x64xf32>
    %281 = arith.truncf %280 : vector<256x64xf32> to vector<256x64xbf16>
    %cst_62 = arith.constant dense<0.000000e+00> : vector<256x96xf32>
    %282 = tpu.matmul %281, %264, %cst_62 {dimension_numbers = #tpu.dot_dimension_numbers<[1], [0], [0], [1], [0, 0, 1, 1], [], []>} : vector<256x64xbf16>, vector<64x96xbf16>, vector<256x96xf32> -> vector<256x96xf32>
    %283 = vector.extract_strided_slice %282 {offsets = [0, 0], sizes = [64, 96], strides = [1, 1]} : vector<256x96xf32> to vector<64x96xf32>
    %284 = vector.broadcast %229 : vector<1x96xf32> to vector<64x96xf32>
    %285 = arith.mulf %283, %284 : vector<64x96xf32>
    %286 = vector.extract_strided_slice %282 {offsets = [64, 0], sizes = [64, 96], strides = [1, 1]} : vector<256x96xf32> to vector<64x96xf32>
    %287 = vector.broadcast %236 : vector<1x96xf32> to vector<64x96xf32>
    %288 = arith.mulf %286, %287 : vector<64x96xf32>
    %289 = arith.addf %285, %288 : vector<64x96xf32>
    %290 = vector.extract_strided_slice %282 {offsets = [128, 0], sizes = [64, 96], strides = [1, 1]} : vector<256x96xf32> to vector<64x96xf32>
    %291 = vector.broadcast %243 : vector<1x96xf32> to vector<64x96xf32>
    %292 = arith.mulf %290, %291 : vector<64x96xf32>
    %293 = arith.addf %289, %292 : vector<64x96xf32>
    %294 = vector.extract_strided_slice %282 {offsets = [192, 0], sizes = [64, 96], strides = [1, 1]} : vector<256x96xf32> to vector<64x96xf32>
    %295 = vector.broadcast %250 : vector<1x96xf32> to vector<64x96xf32>
    %296 = arith.mulf %294, %295 : vector<64x96xf32>
    %297 = arith.addf %293, %296 : vector<64x96xf32>
    %298 = vector.extract_strided_slice %172 {offsets = [8, 0], sizes = [1, 96], strides = [1, 1]} : vector<10x96xf32> to vector<1x96xf32>
    %cst_63 = arith.constant dense<0.000000e+00> : vector<1x64xf32>
    %299 = tpu.matmul %298, %297, %cst_63 {dimension_numbers = #tpu.dot_dimension_numbers<[1], [1], [0], [0], [0, 0, 1, 0], [], []>} : vector<1x96xf32>, vector<64x96xf32>, vector<1x64xf32> -> vector<1x64xf32>
    %300 = vector.extract_strided_slice %172 {offsets = [9, 2], sizes = [1, 1], strides = [1, 1]} : vector<10x96xf32> to vector<1x1xf32>
    %301 = vector.broadcast %300 : vector<1x1xf32> to vector<1x64xf32>
    %302 = arith.addf %299, %301 : vector<1x64xf32>
    %cst_64 = arith.constant 0.000000e+00 : f32
    %303 = vector.broadcast %cst_64 : f32 to vector<1x64xf32>
    %304 = arith.cmpf ogt, %8, %303 : vector<1x64xf32>
    %cst_65 = arith.constant 0.000000e+00 : f32
    %305 = vector.broadcast %cst_65 : f32 to vector<1x64xf32>
    %306 = arith.select %304, %302, %305 : vector<1x64xi1>, vector<1x64xf32>
    %cst_66 = arith.constant 0.000000e+00 : f32
    %307 = vector.broadcast %cst_66 : f32 to vector<1x64xf32>
    %308 = arith.cmpf oeq, %306, %307 : vector<1x64xf32>
    %cst_67 = arith.constant -1.000000e+04 : f32
    %309 = vector.broadcast %cst_67 : f32 to vector<1x64xf32>
    %310 = arith.select %308, %309, %306 : vector<1x64xi1>, vector<1x64xf32>
    %311 = tpu.iota {dimensions = array<i32: 0>} : vector<8x64xi32>
    %312 = tpu.iota {dimensions = array<i32: 1>} : vector<8x64xi32>
    %c8_i32 = arith.constant 8 : i32
    %313 = vector.broadcast %c8_i32 : i32 to vector<8x64xi32>
    %314 = arith.muli %311, %313 : vector<8x64xi32>
    %315 = arith.cmpi sge, %312, %314 : vector<8x64xi32>
    %c1_i32 = arith.constant 1 : i32
    %316 = vector.broadcast %c1_i32 : i32 to vector<8x64xi32>
    %317 = arith.addi %311, %316 : vector<8x64xi32>
    %c8_i32_68 = arith.constant 8 : i32
    %318 = vector.broadcast %c8_i32_68 : i32 to vector<8x64xi32>
    %319 = arith.muli %317, %318 : vector<8x64xi32>
    %320 = arith.cmpi slt, %312, %319 : vector<8x64xi32>
    %321 = arith.andi %315, %320 : vector<8x64xi1>
    %cst_69 = arith.constant -1.000000e+30 : f32
    %322 = vector.shape_cast %310 : vector<1x64xf32> to vector<1x64xf32>
    %323 = vector.broadcast %322 : vector<1x64xf32> to vector<8x64xf32>
    %324 = vector.broadcast %cst_69 : f32 to vector<8x64xf32>
    %325 = arith.select %321, %323, %324 : vector<8x64xi1>, vector<8x64xf32>
    %cst_70 = arith.constant dense<0xFF800000> : vector<8xf32>
    %326 = vector.multi_reduction <maximumf>, %325, %cst_70 [1] : vector<8x64xf32> to vector<8xf32>
    %327 = vector.shape_cast %326 : vector<8xf32> to vector<8x1xf32>
    %328 = vector.broadcast %310 : vector<1x64xf32> to vector<8x64xf32>
    %329 = vector.broadcast %327 : vector<8x1xf32> to vector<8x64xf32>
    %330 = arith.subf %328, %329 : vector<8x64xf32>
    %cst_71 = arith.constant -1.000000e+30 : f32
    %331 = vector.broadcast %cst_71 : f32 to vector<8x64xf32>
    %332 = arith.select %321, %330, %331 : vector<8x64xi1>, vector<8x64xf32>
    %333 = math.exp %332 : vector<8x64xf32>
    %cst_72 = arith.constant dense<0.000000e+00> : vector<8xf32>
    %334 = vector.multi_reduction <add>, %333, %cst_72 [1] : vector<8x64xf32> to vector<8xf32>
    %335 = vector.shape_cast %334 : vector<8xf32> to vector<8x1xf32>
    %336 = vector.broadcast %335 : vector<8x1xf32> to vector<8x64xf32>
    %337 = arith.divf %333, %336 : vector<8x64xf32>
    %338 = vector.broadcast %6 : vector<64x1xf32> to vector<64x32xf32>
    %339 = arith.mulf %338, %124 : vector<64x32xf32>
    %340 = arith.mulf %339, %171 : vector<64x32xf32>
    %cst_73 = arith.constant dense<0.000000e+00> : vector<8x32xf32>
    %341 = tpu.matmul %337, %340, %cst_73 {dimension_numbers = #tpu.dot_dimension_numbers<[1], [0], [0], [1], [0, 0, 1, 1], [], []>} : vector<8x64xf32>, vector<64x32xf32>, vector<8x32xf32> -> vector<8x32xf32>
    %c0_74 = arith.constant 0 : index
    %c0_75 = arith.constant 0 : index
    %342 = vector.load %arg8[%c0_74, %c0_75] : memref<32x32xf32, #tpu.memory_space<vmem>>, vector<32x32xf32>
    %cst_76 = arith.constant dense<0.000000e+00> : vector<8x32xf32>
    %343 = tpu.matmul %341, %342, %cst_76 {dimension_numbers = #tpu.dot_dimension_numbers<[1], [0], [0], [1], [0, 0, 1, 1], [], []>} : vector<8x32xf32>, vector<32x32xf32>, vector<8x32xf32> -> vector<8x32xf32>
    %344 = vector.extract_strided_slice %18 {offsets = [11, 0], sizes = [1, 32], strides = [1, 1]} : vector<16x32xf32> to vector<1x32xf32>
    %345 = vector.broadcast %344 : vector<1x32xf32> to vector<8x32xf32>
    %346 = arith.addf %343, %345 : vector<8x32xf32>
    %347 = vector.extract_strided_slice %18 {offsets = [12, 0], sizes = [1, 32], strides = [1, 1]} : vector<16x32xf32> to vector<1x32xf32>
    %348 = vector.extract_strided_slice %18 {offsets = [13, 0], sizes = [1, 32], strides = [1, 1]} : vector<16x32xf32> to vector<1x32xf32>
    %cst_77 = arith.constant dense<0.000000e+00> : vector<8xf32>
    %349 = vector.multi_reduction <add>, %346, %cst_77 [1] : vector<8x32xf32> to vector<8xf32>
    %350 = vector.shape_cast %349 : vector<8xf32> to vector<8x1xf32>
    %cst_78 = arith.constant 3.200000e+01 : f32
    %351 = vector.broadcast %cst_78 : f32 to vector<8x1xf32>
    %352 = arith.divf %350, %351 : vector<8x1xf32>
    %353 = vector.broadcast %352 : vector<8x1xf32> to vector<8x32xf32>
    %354 = arith.subf %346, %353 : vector<8x32xf32>
    %355 = arith.mulf %354, %354 : vector<8x32xf32>
    %cst_79 = arith.constant dense<0.000000e+00> : vector<8xf32>
    %356 = vector.multi_reduction <add>, %355, %cst_79 [1] : vector<8x32xf32> to vector<8xf32>
    %357 = vector.shape_cast %356 : vector<8xf32> to vector<8x1xf32>
    %cst_80 = arith.constant 3.200000e+01 : f32
    %358 = vector.broadcast %cst_80 : f32 to vector<8x1xf32>
    %359 = arith.divf %357, %358 : vector<8x1xf32>
    %cst_81 = arith.constant 9.99999974E-6 : f32
    %360 = vector.broadcast %cst_81 : f32 to vector<8x1xf32>
    %361 = arith.addf %359, %360 : vector<8x1xf32>
    %362 = math.rsqrt %361 : vector<8x1xf32>
    %363 = vector.broadcast %362 : vector<8x1xf32> to vector<8x32xf32>
    %364 = arith.mulf %354, %363 : vector<8x32xf32>
    %365 = vector.broadcast %347 : vector<1x32xf32> to vector<8x32xf32>
    %366 = arith.mulf %365, %364 : vector<8x32xf32>
    %367 = vector.broadcast %348 : vector<1x32xf32> to vector<8x32xf32>
    %368 = arith.addf %366, %367 : vector<8x32xf32>
    %cst_82 = arith.constant 0.000000e+00 : f32
    %369 = vector.broadcast %cst_82 : f32 to vector<8x32xf32>
    %370 = arith.maximumf %368, %369 : vector<8x32xf32>
    %371 = arith.addf %370, %17 : vector<8x32xf32>
    %372 = math.tanh %371 : vector<8x32xf32>
    %373 = arith.addf %16, %372 : vector<8x32xf32>
    %374 = tpu.concatenate %373, %371 in 0 : vector<8x32xf32>, vector<8x32xf32> -> vector<16x32xf32>
    %c0_83 = arith.constant 0 : index
    %c0_84 = arith.constant 0 : index
    %c0_85 = arith.constant 0 : index
    %375 = vector.load %arg9[%c0_83, %c0_84, %c0_85] : memref<1x16x32xf32, #tpu.memory_space<vmem>>, vector<1x16x32xf32>
    %376 = vector.shape_cast %375 : vector<1x16x32xf32> to vector<16x32xf32>
    %377 = vector.shape_cast %374 : vector<16x32xf32> to vector<1x16x32xf32>
    tpu.vector_store %arg9[%c0_83, %c0_84, %c0_85], %377 {strides = array<i32>} : memref<1x16x32xf32, #tpu.memory_space<vmem>>, vector<1x16x32xf32>,
    return
  }
  func.func @transform_0(%arg0: i32) -> (i32, i32, i32) {
    %c0_i32 = arith.constant 0 : i32
    %c0_i32_0 = arith.constant 0 : i32
    %c0_i32_1 = arith.constant 0 : i32
    return %arg0, %c0_i32, %c0_i32_0 : i32, i32, i32
  }
  func.func @transform_1(%arg0: i32) -> (i32, i32, i32) {
    %c0_i32 = arith.constant 0 : i32
    %c0_i32_0 = arith.constant 0 : i32
    %c0_i32_1 = arith.constant 0 : i32
    return %arg0, %c0_i32, %c0_i32_0 : i32, i32, i32
  }
  func.func @transform_2(%arg0: i32) -> (i32, i32, i32) {
    %c0_i32 = arith.constant 0 : i32
    %c0_i32_0 = arith.constant 0 : i32
    %c0_i32_1 = arith.constant 0 : i32
    return %arg0, %c0_i32, %c0_i32_0 : i32, i32, i32
  }
  func.func @transform_3(%arg0: i32) -> (i32, i32) {
    %c0_i32 = arith.constant 0 : i32
    %c0_i32_0 = arith.constant 0 : i32
    %c0_i32_1 = arith.constant 0 : i32
    return %c0_i32, %c0_i32_0 : i32, i32
  }
  func.func @transform_4(%arg0: i32) -> (i32, i32) {
    %c0_i32 = arith.constant 0 : i32
    %c0_i32_0 = arith.constant 0 : i32
    %c0_i32_1 = arith.constant 0 : i32
    return %c0_i32, %c0_i32_0 : i32, i32
  }
  func.func @transform_5(%arg0: i32) -> (i32, i32) {
    %c0_i32 = arith.constant 0 : i32
    %c0_i32_0 = arith.constant 0 : i32
    %c0_i32_1 = arith.constant 0 : i32
    return %c0_i32, %c0_i32_0 : i32, i32
  }
  func.func @transform_6(%arg0: i32) -> (i32, i32) {
    %c0_i32 = arith.constant 0 : i32
    %c0_i32_0 = arith.constant 0 : i32
    %c0_i32_1 = arith.constant 0 : i32
    return %c0_i32, %c0_i32_0 : i32, i32
  }
  func.func @transform_7(%arg0: i32) -> (i32, i32) {
    %c0_i32 = arith.constant 0 : i32
    %c0_i32_0 = arith.constant 0 : i32
    %c0_i32_1 = arith.constant 0 : i32
    return %c0_i32, %c0_i32_0 : i32, i32
  }
  func.func @transform_8(%arg0: i32) -> (i32, i32, i32) {
    %c0_i32 = arith.constant 0 : i32
    %c0_i32_0 = arith.constant 0 : i32
    %c0_i32_1 = arith.constant 0 : i32
    return %arg0, %c0_i32, %c0_i32_0 : i32, i32, i32
  }
}

</mosaic_0001>

<llo_original>
// kernel: global_interaction.1
$region0: #{global_interaction.1}
  #allocation0 [shape = 'u32[]', space=smem, size = 0x4, offset = 0x4, fixed_abs, tag = 'smem constant byte address 0x4 - core index']
  #allocation1 [shape = 'u32[144,128]{1,0:T(1,128)}', space=vmem, size = 0x12000, scoped, tag = 'internal scratch']
  #allocation2 [shape = 'bf16[64,160]{1,0:T(16,128)(2,1)}', space=vmem, size = 0x8000, scoped, tag = 'scratch operand']
  %s0 = inlined_call_operand.vmem [shape: f32[1,64,8], index: 0, kind: input, shape index: {}]
  %s1 = inlined_call_operand.vmem [shape: f32[1,1,64], index: 1, kind: input, shape index: {}]
  %s2 = inlined_call_operand.vmem [shape: f32[1,16,32], index: 2, kind: input, shape index: {}]
  %s3 = inlined_call_operand.vmem [shape: f32[16,32], index: 3, kind: input, shape index: {}]
  %s4 = inlined_call_operand.vmem [shape: bf16[160,320], index: 4, kind: input, shape index: {}]
  %s5 = inlined_call_operand.vmem [shape: f32[1,320], index: 5, kind: input, shape index: {}]
  %s6 = inlined_call_operand.vmem [shape: f32[10,96], index: 6, kind: input, shape index: {}]
  %s7 = inlined_call_operand.vmem [shape: f32[32,32], index: 7, kind: input, shape index: {}]
  %s8 = inlined_call_operand.vmem [shape: f32[1,16,32], index: 8, kind: output, shape index: {}]
  %s9 = sld [smem:[#allocation0]]
  $region42: #{global_interaction.1} parent=0
    _
  %s11 = ssub.s32 1, %s9
  %s12 = scalar_select 0, %s11, %s9
  // Predicated region
  $region2: #{global_interaction.1} parent=0 // pred_check
    _
  $region3: #{global_interaction.1} parent=0 // pred_check_branch
    %14 = sbr.rel (0) target = $region5
  $region4: #{global_interaction.1} parent=0 // pred_region
    _
  $region5: #{global_interaction.1} parent=0 // pred_fallthru
    _
  // Predicated region
  $region6: #{global_interaction.1} parent=0 // pred_check
    _
  $region7: #{global_interaction.1} parent=0 // pred_check_branch
    %16 = sbr.rel (0) target = $region9
  $region8: #{global_interaction.1} parent=0 // pred_region
    _
  $region9: #{global_interaction.1} parent=0 // pred_fallthru
    _
  // Predicated region
  $region10: #{global_interaction.1} parent=0 // pred_check
    _
  $region11: #{global_interaction.1} parent=0 // pred_check_branch
    %18 = sbr.rel (0) target = $region13
  $region12: #{global_interaction.1} parent=0 // pred_region
    _
  $region13: #{global_interaction.1} parent=0 // pred_fallthru
    _
  // Predicated region
  $region14: #{global_interaction.1} parent=0 // pred_check
    _
  $region15: #{global_interaction.1} parent=0 // pred_check_branch
    %20 = sbr.rel (0) target = $region17
  $region16: #{global_interaction.1} parent=0 // pred_region
    _
  $region17: #{global_interaction.1} parent=0 // pred_fallthru
    _
  // Predicated region
  $region18: #{global_interaction.1} parent=0 // pred_check
    _
  $region19: #{global_interaction.1} parent=0 // pred_check_branch
    %22 = sbr.rel (0) target = $region21
  $region20: #{global_interaction.1} parent=0 // pred_region
    _
  $region21: #{global_interaction.1} parent=0 // pred_fallthru
    _
  // Predicated region
  $region22: #{global_interaction.1} parent=0 // pred_check
    _
  $region23: #{global_interaction.1} parent=0 // pred_check_branch
    %24 = sbr.rel (0) target = $region25
  $region24: #{global_interaction.1} parent=0 // pred_region
    _
  $region25: #{global_interaction.1} parent=0 // pred_fallthru
    _
  // Predicated region
  $region26: #{global_interaction.1} parent=0 // pred_check
    _
  $region27: #{global_interaction.1} parent=0 // pred_check_branch
    %26 = sbr.rel (0) target = $region29
  $region28: #{global_interaction.1} parent=0 // pred_region
    _
  $region29: #{global_interaction.1} parent=0 // pred_fallthru
    _
  // Predicated region
  $region30: #{global_interaction.1} parent=0 // pred_check
    _
  $region31: #{global_interaction.1} parent=0 // pred_check_branch
    %28 = sbr.rel (0) target = $region33
  $region32: #{global_interaction.1} parent=0 // pred_region
    _
  $region33: #{global_interaction.1} parent=0 // pred_fallthru
    _
  %v30 = vld [vmem:[%s0] sm:$0xff]
  %v31 = vld [vmem:[%s0 + $0x8] sm:$0xff]
  %v32 = vld [vmem:[%s0 + $0x10] sm:$0xff]
  %v33 = vld [vmem:[%s0 + $0x18] sm:$0xff]
  %v34 = vld [vmem:[%s0 + $0x20] sm:$0xff]
  %v35 = vld [vmem:[%s0 + $0x28] sm:$0xff]
  %v36 = vld [vmem:[%s0 + $0x30] sm:$0xff]
  %v37 = vld [vmem:[%s0 + $0x38] sm:$0xff]
  %v38 = vld [vmem:[%s1] sm:$0x1]
  %vm39 = vcmp.gt.f32.partialorder %v38, 0.0
  %v40 = vsel %vm39, 0.0, -1e+30
  %v41 = vld [vmem:[%s2] sm:$0xff]
  %v42 = vld [vmem:[%s2 + $0x8] sm:$0xff]
  %v43 = vld [vmem:[%s3] sm:$0xff]
  %v44 = vld [vmem:[%s3 + $0x8] sm:$0xff]
  %46 = vset.pattern.permute.xlu0 0
  %47 = vperm.xlu0 %46, %v30
  %v48 = vpop.permute.xlu0 %47
  %51 = vset.pattern.permute.xlu0 0
  %52 = vperm.xlu0 %51, %v31
  %v53 = vpop.permute.xlu0 %52
  %56 = vset.pattern.permute.xlu0 0
  %57 = vperm.xlu0 %56, %v32
  %v58 = vpop.permute.xlu0 %57
  %61 = vset.pattern.permute.xlu0 0
  %62 = vperm.xlu0 %61, %v33
  %v63 = vpop.permute.xlu0 %62
  %66 = vset.pattern.permute.xlu0 0
  %67 = vperm.xlu0 %66, %v34
  %v68 = vpop.permute.xlu0 %67
  %71 = vset.pattern.permute.xlu0 0
  %72 = vperm.xlu0 %71, %v35
  %v73 = vpop.permute.xlu0 %72
  %76 = vset.pattern.permute.xlu0 0
  %77 = vperm.xlu0 %76, %v36
  %v78 = vpop.permute.xlu0 %77
  %81 = vset.pattern.permute.xlu0 0
  %82 = vperm.xlu0 %81, %v37
  %v83 = vpop.permute.xlu0 %82
  %v85 = vlaneseq
  %v86 = vshrl.u32 %v85, 7
  %v87 = vsub.s32 0, %v86
  %v88 = vrot.slane %v43, %v87
  %v89 = vmul.f32 %v48, %v88
  %v90 = vmul.f32 %v53, %v88
  %v91 = vmul.f32 %v58, %v88
  %v92 = vmul.f32 %v63, %v88
  %v93 = vmul.f32 %v68, %v88
  %v94 = vmul.f32 %v73, %v88
  %v95 = vmul.f32 %v78, %v88
  %v96 = vmul.f32 %v83, %v88
  %97 = vset.pattern.permute.xlu0 1
  %98 = vperm.xlu0 %97, %v30
  %v99 = vpop.permute.xlu0 %98
  %101 = vset.pattern.permute.xlu0 1
  %102 = vperm.xlu0 %101, %v31
  %v103 = vpop.permute.xlu0 %102
  %105 = vset.pattern.permute.xlu0 1
  %106 = vperm.xlu0 %105, %v32
  %v107 = vpop.permute.xlu0 %106
  %109 = vset.pattern.permute.xlu0 1
  %110 = vperm.xlu0 %109, %v33
  %v111 = vpop.permute.xlu0 %110
  %113 = vset.pattern.permute.xlu0 1
  %114 = vperm.xlu0 %113, %v34
  %v115 = vpop.permute.xlu0 %114
  %117 = vset.pattern.permute.xlu0 1
  %118 = vperm.xlu0 %117, %v35
  %v119 = vpop.permute.xlu0 %118
  %121 = vset.pattern.permute.xlu0 1
  %122 = vperm.xlu0 %121, %v36
  %v123 = vpop.permute.xlu0 %122
  %125 = vset.pattern.permute.xlu0 1
  %126 = vperm.xlu0 %125, %v37
  %v127 = vpop.permute.xlu0 %126
  %v129 = vlaneseq
  %v130 = vshrl.u32 %v129, 7
  %v131 = vsub.s32 1, %v130
  %v132 = vrot.slane %v43, %v131
  %v133 = vmul.f32 %v99, %v132
  %v134 = vmul.f32 %v103, %v132
  %v135 = vmul.f32 %v107, %v132
  %v136 = vmul.f32 %v111, %v132
  %v137 = vmul.f32 %v115, %v132
  %v138 = vmul.f32 %v119, %v132
  %v139 = vmul.f32 %v123, %v132
  %v140 = vmul.f32 %v127, %v132
  %v141 = vadd.f32 %v89, %v133
  %v142 = vadd.f32 %v90, %v134
  %v143 = vadd.f32 %v91, %v135
  %v144 = vadd.f32 %v92, %v136
  %v145 = vadd.f32 %v93, %v137
  %v146 = vadd.f32 %v94, %v138
  %v147 = vadd.f32 %v95, %v139
  %v148 = vadd.f32 %v96, %v140
  %v149 = vlaneseq
  %v150 = vshrl.u32 %v149, 7
  %v151 = vsub.s32 2, %v150
  %v152 = vrot.slane %v43, %v151
  %v153 = vadd.f32 %v141, %v152
  %v154 = vadd.f32 %v142, %v152
  %v155 = vadd.f32 %v143, %v152
  %v156 = vadd.f32 %v144, %v152
  %v157 = vadd.f32 %v145, %v152
  %v158 = vadd.f32 %v146, %v152
  %v159 = vadd.f32 %v147, %v152
  %v160 = vadd.f32 %v148, %v152
  %vm161 = vcmask 261120
  %v162 = vsel %vm161, %v153, 0.0
  %163 = vadd.xlane.f32.xlu0 %v162
  %v164 = vpop.xlane.xlu0 %163
  %v165 = vsel %vm161, %v154, 0.0
  %166 = vadd.xlane.f32.xlu0 %v165
  %v167 = vpop.xlane.xlu0 %166
  %v168 = vsel %vm161, %v155, 0.0
  %169 = vadd.xlane.f32.xlu0 %v168
  %v170 = vpop.xlane.xlu0 %169
  %v171 = vsel %vm161, %v156, 0.0
  %172 = vadd.xlane.f32.xlu0 %v171
  %v173 = vpop.xlane.xlu0 %172
  %v174 = vsel %vm161, %v157, 0.0
  %175 = vadd.xlane.f32.xlu0 %v174
  %v176 = vpop.xlane.xlu0 %175
  %v177 = vsel %vm161, %v158, 0.0
  %178 = vadd.xlane.f32.xlu0 %v177
  %v179 = vpop.xlane.xlu0 %178
  %v180 = vsel %vm161, %v159, 0.0
  %181 = vadd.xlane.f32.xlu0 %v180
  %v182 = vpop.xlane.xlu0 %181
  %v183 = vsel %vm161, %v160, 0.0
  %184 = vadd.xlane.f32.xlu0 %v183
  %v185 = vpop.xlane.xlu0 %184
  %v186 = vrcp.pop 32.0
  %v187 = vmul.f32 %v164, %v186
  %v188 = vmul.f32 %v167, %v186
  %v189 = vmul.f32 %v170, %v186
  %v190 = vmul.f32 %v173, %v186
  %v191 = vmul.f32 %v176, %v186
  %v192 = vmul.f32 %v179, %v186
  %v193 = vmul.f32 %v182, %v186
  %v194 = vmul.f32 %v185, %v186
  %v195 = vsub.f32 %v153, %v187
  %v196 = vsub.f32 %v154, %v188
  %v197 = vsub.f32 %v155, %v189
  %v198 = vsub.f32 %v156, %v190
  %v199 = vsub.f32 %v157, %v191
  %v200 = vsub.f32 %v158, %v192
  %v201 = vsub.f32 %v159, %v193
  %v202 = vsub.f32 %v160, %v194
  %v203 = vmul.f32 %v195, %v195
  %v204 = vmul.f32 %v196, %v196
  %v205 = vmul.f32 %v197, %v197
  %v206 = vmul.f32 %v198, %v198
  %v207 = vmul.f32 %v199, %v199
  %v208 = vmul.f32 %v200, %v200
  %v209 = vmul.f32 %v201, %v201
  %v210 = vmul.f32 %v202, %v202
  %v211 = vsel %vm161, %v203, 0.0
  %212 = vadd.xlane.f32.xlu0 %v211
  %v213 = vpop.xlane.xlu0 %212
  %v214 = vsel %vm161, %v204, 0.0
  %215 = vadd.xlane.f32.xlu0 %v214
  %v216 = vpop.xlane.xlu0 %215
  %v217 = vsel %vm161, %v205, 0.0
  %218 = vadd.xlane.f32.xlu0 %v217
  %v219 = vpop.xlane.xlu0 %218
  %v220 = vsel %vm161, %v206, 0.0
  %221 = vadd.xlane.f32.xlu0 %v220
  %v222 = vpop.xlane.xlu0 %221
  %v223 = vsel %vm161, %v207, 0.0
  %224 = vadd.xlane.f32.xlu0 %v223
  %v225 = vpop.xlane.xlu0 %224
  %v226 = vsel %vm161, %v208, 0.0
  %227 = vadd.xlane.f32.xlu0 %v226
  %v228 = vpop.xlane.xlu0 %227
  %v229 = vsel %vm161, %v209, 0.0
  %230 = vadd.xlane.f32.xlu0 %v229
  %v231 = vpop.xlane.xlu0 %230
  %v232 = vsel %vm161, %v210, 0.0
  %233 = vadd.xlane.f32.xlu0 %v232
  %v234 = vpop.xlane.xlu0 %233
  %v235 = vmul.f32 %v213, %v186
  %v236 = vmul.f32 %v216, %v186
  %v237 = vmul.f32 %v219, %v186
  %v238 = vmul.f32 %v222, %v186
  %v239 = vmul.f32 %v225, %v186
  %v240 = vmul.f32 %v228, %v186
  %v241 = vmul.f32 %v231, %v186
  %v242 = vmul.f32 %v234, %v186
  %v243 = vadd.f32 %v235, 1e-05
  %v244 = vadd.f32 %v236, 1e-05
  %v245 = vadd.f32 %v237, 1e-05
  %v246 = vadd.f32 %v238, 1e-05
  %v247 = vadd.f32 %v239, 1e-05
  %v248 = vadd.f32 %v240, 1e-05
  %v249 = vadd.f32 %v241, 1e-05
  %v250 = vadd.f32 %v242, 1e-05
  %v251 = vrsqrt.pop %v243
  %v252 = vrsqrt.pop %v244
  %v253 = vrsqrt.pop %v245
  %v254 = vrsqrt.pop %v246
  %v255 = vrsqrt.pop %v247
  %v256 = vrsqrt.pop %v248
  %v257 = vrsqrt.pop %v249
  %v258 = vrsqrt.pop %v250
  %v259 = vmul.f32 %v195, %v251
  %v260 = vmul.f32 %v196, %v252
  %v261 = vmul.f32 %v197, %v253
  %v262 = vmul.f32 %v198, %v254
  %v263 = vmul.f32 %v199, %v255
  %v264 = vmul.f32 %v200, %v256
  %v265 = vmul.f32 %v201, %v257
  %v266 = vmul.f32 %v202, %v258
  %v267 = vlaneseq
  %v268 = vshrl.u32 %v267, 7
  %v269 = vsub.s32 3, %v268
  %v270 = vrot.slane %v43, %v269
  %v271 = vmul.f32 %v270, %v259
  %v272 = vmul.f32 %v270, %v260
  %v273 = vmul.f32 %v270, %v261
  %v274 = vmul.f32 %v270, %v262
  %v275 = vmul.f32 %v270, %v263
  %v276 = vmul.f32 %v270, %v264
  %v277 = vmul.f32 %v270, %v265
  %v278 = vmul.f32 %v270, %v266
  %v279 = vlaneseq
  %v280 = vshrl.u32 %v279, 7
  %v281 = vsub.s32 4, %v280
  %v282 = vrot.slane %v43, %v281
  %v283 = vadd.f32 %v271, %v282
  %v284 = vadd.f32 %v272, %v282
  %v285 = vadd.f32 %v273, %v282
  %v286 = vadd.f32 %v274, %v282
  %v287 = vadd.f32 %v275, %v282
  %v288 = vadd.f32 %v276, %v282
  %v289 = vadd.f32 %v277, %v282
  %v290 = vadd.f32 %v278, %v282
  %v291 = vmax.f32 %v283, 0.0
  %v292 = vmax.f32 %v284, 0.0
  %v293 = vmax.f32 %v285, 0.0
  %v294 = vmax.f32 %v286, 0.0
  %v295 = vmax.f32 %v287, 0.0
  %v296 = vmax.f32 %v288, 0.0
  %v297 = vmax.f32 %v289, 0.0
  %v298 = vmax.f32 %v290, 0.0
  %299 = vset.pattern.permute.xlu0 2
  %300 = vperm.xlu0 %299, %v30
  %v301 = vpop.permute.xlu0 %300
  %303 = vset.pattern.permute.xlu0 2
  %304 = vperm.xlu0 %303, %v31
  %v305 = vpop.permute.xlu0 %304
  %307 = vset.pattern.permute.xlu0 2
  %308 = vperm.xlu0 %307, %v32
  %v309 = vpop.permute.xlu0 %308
  %311 = vset.pattern.permute.xlu0 2
  %312 = vperm.xlu0 %311, %v33
  %v313 = vpop.permute.xlu0 %312
  %315 = vset.pattern.permute.xlu0 2
  %316 = vperm.xlu0 %315, %v34
  %v317 = vpop.permute.xlu0 %316
  %319 = vset.pattern.permute.xlu0 2
  %320 = vperm.xlu0 %319, %v35
  %v321 = vpop.permute.xlu0 %320
  %323 = vset.pattern.permute.xlu0 2
  %324 = vperm.xlu0 %323, %v36
  %v325 = vpop.permute.xlu0 %324
  %327 = vset.pattern.permute.xlu0 2
  %328 = vperm.xlu0 %327, %v37
  %v329 = vpop.permute.xlu0 %328
  %v331 = vlaneseq
  %v332 = vshrl.u32 %v331, 7
  %v333 = vsub.s32 5, %v332
  %v334 = vrot.slane %v43, %v333
  %v335 = vmul.f32 %v301, %v334
  %v336 = vmul.f32 %v305, %v334
  %v337 = vmul.f32 %v309, %v334
  %v338 = vmul.f32 %v313, %v334
  %v339 = vmul.f32 %v317, %v334
  %v340 = vmul.f32 %v321, %v334
  %v341 = vmul.f32 %v325, %v334
  %v342 = vmul.f32 %v329, %v334
  %v343 = vlaneseq
  %v344 = vshrl.u32 %v343, 7
  %v345 = vsub.s32 6, %v344
  %v346 = vrot.slane %v43, %v345
  %v347 = vadd.f32 %v335, %v346
  %v348 = vadd.f32 %v336, %v346
  %v349 = vadd.f32 %v337, %v346
  %v350 = vadd.f32 %v338, %v346
  %v351 = vadd.f32 %v339, %v346
  %v352 = vadd.f32 %v340, %v346
  %v353 = vadd.f32 %v341, %v346
  %v354 = vadd.f32 %v342, %v346
  %v355 = vsel %vm161, %v347, 0.0
  %356 = vadd.xlane.f32.xlu0 %v355
  %v357 = vpop.xlane.xlu0 %356
  %v358 = vsel %vm161, %v348, 0.0
  %359 = vadd.xlane.f32.xlu0 %v358
  %v360 = vpop.xlane.xlu0 %359
  %v361 = vsel %vm161, %v349, 0.0
  %362 = vadd.xlane.f32.xlu0 %v361
  %v363 = vpop.xlane.xlu0 %362
  %v364 = vsel %vm161, %v350, 0.0
  %365 = vadd.xlane.f32.xlu0 %v364
  %v366 = vpop.xlane.xlu0 %365
  %v367 = vsel %vm161, %v351, 0.0
  %368 = vadd.xlane.f32.xlu0 %v367
  %v369 = vpop.xlane.xlu0 %368
  %v370 = vsel %vm161, %v352, 0.0
  %371 = vadd.xlane.f32.xlu0 %v370
  %v372 = vpop.xlane.xlu0 %371
  %v373 = vsel %vm161, %v353, 0.0
  %374 = vadd.xlane.f32.xlu0 %v373
  %v375 = vpop.xlane.xlu0 %374
  %v376 = vsel %vm161, %v354, 0.0
  %377 = vadd.xlane.f32.xlu0 %v376
  %v378 = vpop.xlane.xlu0 %377
  %v379 = vmul.f32 %v357, %v186
  %v380 = vmul.f32 %v360, %v186
  %v381 = vmul.f32 %v363, %v186
  %v382 = vmul.f32 %v366, %v186
  %v383 = vmul.f32 %v369, %v186
  %v384 = vmul.f32 %v372, %v186
  %v385 = vmul.f32 %v375, %v186
  %v386 = vmul.f32 %v378, %v186
  %v387 = vsub.f32 %v347, %v379
  %v388 = vsub.f32 %v348, %v380
  %v389 = vsub.f32 %v349, %v381
  %v390 = vsub.f32 %v350, %v382
  %v391 = vsub.f32 %v351, %v383
  %v392 = vsub.f32 %v352, %v384
  %v393 = vsub.f32 %v353, %v385
  %v394 = vsub.f32 %v354, %v386
  %v395 = vmul.f32 %v387, %v387
  %v396 = vmul.f32 %v388, %v388
  %v397 = vmul.f32 %v389, %v389
  %v398 = vmul.f32 %v390, %v390
  %v399 = vmul.f32 %v391, %v391
  %v400 = vmul.f32 %v392, %v392
  %v401 = vmul.f32 %v393, %v393
  %v402 = vmul.f32 %v394, %v394
  %v403 = vsel %vm161, %v395, 0.0
  %404 = vadd.xlane.f32.xlu0 %v403
  %v405 = vpop.xlane.xlu0 %404
  %v406 = vsel %vm161, %v396, 0.0
  %407 = vadd.xlane.f32.xlu0 %v406
  %v408 = vpop.xlane.xlu0 %407
  %v409 = vsel %vm161, %v397, 0.0
  %410 = vadd.xlane.f32.xlu0 %v409
  %v411 = vpop.xlane.xlu0 %410
  %v412 = vsel %vm161, %v398, 0.0
  %413 = vadd.xlane.f32.xlu0 %v412
  %v414 = vpop.xlane.xlu0 %413
  %v415 = vsel %vm161, %v399, 0.0
  %416 = vadd.xlane.f32.xlu0 %v415
  %v417 = vpop.xlane.xlu0 %416
  %v418 = vsel %vm161, %v400, 0.0
  %419 = vadd.xlane.f32.xlu0 %v418
  %v420 = vpop.xlane.xlu0 %419
  %v421 = vsel %vm161, %v401, 0.0
  %422 = vadd.xlane.f32.xlu0 %v421
  %v423 = vpop.xlane.xlu0 %422
  %v424 = vsel %vm161, %v402, 0.0
  %425 = vadd.xlane.f32.xlu0 %v424
  %v426 = vpop.xlane.xlu0 %425
  %v427 = vmul.f32 %v405, %v186
  %v428 = vmul.f32 %v408, %v186
  %v429 = vmul.f32 %v411, %v186
  %v430 = vmul.f32 %v414, %v186
  %v431 = vmul.f32 %v417, %v186
  %v432 = vmul.f32 %v420, %v186
  %v433 = vmul.f32 %v423, %v186
  %v434 = vmul.f32 %v426, %v186
  %v435 = vadd.f32 %v427, 1e-05
  %v436 = vadd.f32 %v428, 1e-05
  %v437 = vadd.f32 %v429, 1e-05
  %v438 = vadd.f32 %v430, 1e-05
  %v439 = vadd.f32 %v431, 1e-05
  %v440 = vadd.f32 %v432, 1e-05
  %v441 = vadd.f32 %v433, 1e-05
  %v442 = vadd.f32 %v434, 1e-05
  %v443 = vrsqrt.pop %v435
  %v444 = vrsqrt.pop %v436
  %v445 = vrsqrt.pop %v437
  %v446 = vrsqrt.pop %v438
  %v447 = vrsqrt.pop %v439
  %v448 = vrsqrt.pop %v440
  %v449 = vrsqrt.pop %v441
  %v450 = vrsqrt.pop %v442
  %v451 = vmul.f32 %v387, %v443
  %v452 = vmul.f32 %v388, %v444
  %v453 = vmul.f32 %v389, %v445
  %v454 = vmul.f32 %v390, %v446
  %v455 = vmul.f32 %v391, %v447
  %v456 = vmul.f32 %v392, %v448
  %v457 = vmul.f32 %v393, %v449
  %v458 = vmul.f32 %v394, %v450
  %v459 = vlaneseq
  %v460 = vshrl.u32 %v459, 7
  %v461 = vsub.s32 7, %v460
  %v462 = vrot.slane %v43, %v461
  %v463 = vmul.f32 %v462, %v451
  %v464 = vmul.f32 %v462, %v452
  %v465 = vmul.f32 %v462, %v453
  %v466 = vmul.f32 %v462, %v454
  %v467 = vmul.f32 %v462, %v455
  %v468 = vmul.f32 %v462, %v456
  %v469 = vmul.f32 %v462, %v457
  %v470 = vmul.f32 %v462, %v458
  %v471 = vlaneseq
  %v472 = vshrl.u32 %v471, 7
  %v473 = vsub.s32 0, %v472
  %v474 = vrot.slane %v44, %v473
  %v475 = vadd.f32 %v463, %v474
  %v476 = vadd.f32 %v464, %v474
  %v477 = vadd.f32 %v465, %v474
  %v478 = vadd.f32 %v466, %v474
  %v479 = vadd.f32 %v467, %v474
  %v480 = vadd.f32 %v468, %v474
  %v481 = vadd.f32 %v469, %v474
  %v482 = vadd.f32 %v470, %v474
  %v483 = vmax.f32 %v475, 0.0
  %v484 = vmax.f32 %v476, 0.0
  %v485 = vmax.f32 %v477, 0.0
  %v486 = vmax.f32 %v478, 0.0
  %v487 = vmax.f32 %v479, 0.0
  %v488 = vmax.f32 %v480, 0.0
  %v489 = vmax.f32 %v481, 0.0
  %v490 = vmax.f32 %v482, 0.0
  %491 = vset.pattern.permute.xlu0 3
  %492 = vperm.xlu0 %491, %v30
  %v493 = vpop.permute.xlu0 %492
  %495 = vset.pattern.permute.xlu0 3
  %496 = vperm.xlu0 %495, %v31
  %v497 = vpop.permute.xlu0 %496
  %499 = vset.pattern.permute.xlu0 3
  %500 = vperm.xlu0 %499, %v32
  %v501 = vpop.permute.xlu0 %500
  %503 = vset.pattern.permute.xlu0 3
  %504 = vperm.xlu0 %503, %v33
  %v505 = vpop.permute.xlu0 %504
  %507 = vset.pattern.permute.xlu0 3
  %508 = vperm.xlu0 %507, %v34
  %v509 = vpop.permute.xlu0 %508
  %511 = vset.pattern.permute.xlu0 3
  %512 = vperm.xlu0 %511, %v35
  %v513 = vpop.permute.xlu0 %512
  %515 = vset.pattern.permute.xlu0 3
  %516 = vperm.xlu0 %515, %v36
  %v517 = vpop.permute.xlu0 %516
  %519 = vset.pattern.permute.xlu0 3
  %520 = vperm.xlu0 %519, %v37
  %v521 = vpop.permute.xlu0 %520
  %v523 = vmul.f32 %v493, %v334
  %v524 = vmul.f32 %v497, %v334
  %v525 = vmul.f32 %v501, %v334
  %v526 = vmul.f32 %v505, %v334
  %v527 = vmul.f32 %v509, %v334
  %v528 = vmul.f32 %v513, %v334
  %v529 = vmul.f32 %v517, %v334
  %v530 = vmul.f32 %v521, %v334
  %v531 = vadd.f32 %v523, %v346
  %v532 = vadd.f32 %v524, %v346
  %v533 = vadd.f32 %v525, %v346
  %v534 = vadd.f32 %v526, %v346
  %v535 = vadd.f32 %v527, %v346
  %v536 = vadd.f32 %v528, %v346
  %v537 = vadd.f32 %v529, %v346
  %v538 = vadd.f32 %v530, %v346
  %v539 = vsel %vm161, %v531, 0.0
  %540 = vadd.xlane.f32.xlu0 %v539
  %v541 = vpop.xlane.xlu0 %540
  %v542 = vsel %vm161, %v532, 0.0
  %543 = vadd.xlane.f32.xlu0 %v542
  %v544 = vpop.xlane.xlu0 %543
  %v545 = vsel %vm161, %v533, 0.0
  %546 = vadd.xlane.f32.xlu0 %v545
  %v547 = vpop.xlane.xlu0 %546
  %v548 = vsel %vm161, %v534, 0.0
  %549 = vadd.xlane.f32.xlu0 %v548
  %v550 = vpop.xlane.xlu0 %549
  %v551 = vsel %vm161, %v535, 0.0
  %552 = vadd.xlane.f32.xlu0 %v551
  %v553 = vpop.xlane.xlu0 %552
  %v554 = vsel %vm161, %v536, 0.0
  %555 = vadd.xlane.f32.xlu0 %v554
  %v556 = vpop.xlane.xlu0 %555
  %v557 = vsel %vm161, %v537, 0.0
  %558 = vadd.xlane.f32.xlu0 %v557
  %v559 = vpop.xlane.xlu0 %558
  %v560 = vsel %vm161, %v538, 0.0
  %561 = vadd.xlane.f32.xlu0 %v560
  %v562 = vpop.xlane.xlu0 %561
  %v563 = vmul.f32 %v541, %v186
  %v564 = vmul.f32 %v544, %v186
  %v565 = vmul.f32 %v547, %v186
  %v566 = vmul.f32 %v550, %v186
  %v567 = vmul.f32 %v553, %v186
  %v568 = vmul.f32 %v556, %v186
  %v569 = vmul.f32 %v559, %v186
  %v570 = vmul.f32 %v562, %v186
  %v571 = vsub.f32 %v531, %v563
  %v572 = vsub.f32 %v532, %v564
  %v573 = vsub.f32 %v533, %v565
  %v574 = vsub.f32 %v534, %v566
  %v575 = vsub.f32 %v535, %v567
  %v576 = vsub.f32 %v536, %v568
  %v577 = vsub.f32 %v537, %v569
  %v578 = vsub.f32 %v538, %v570
  %v579 = vmul.f32 %v571, %v571
  %v580 = vmul.f32 %v572, %v572
  %v581 = vmul.f32 %v573, %v573
  %v582 = vmul.f32 %v574, %v574
  %v583 = vmul.f32 %v575, %v575
  %v584 = vmul.f32 %v576, %v576
  %v585 = vmul.f32 %v577, %v577
  %v586 = vmul.f32 %v578, %v578
  %v587 = vsel %vm161, %v579, 0.0
  %588 = vadd.xlane.f32.xlu0 %v587
  %v589 = vpop.xlane.xlu0 %588
  %v590 = vsel %vm161, %v580, 0.0
  %591 = vadd.xlane.f32.xlu0 %v590
  %v592 = vpop.xlane.xlu0 %591
  %v593 = vsel %vm161, %v581, 0.0
  %594 = vadd.xlane.f32.xlu0 %v593
  %v595 = vpop.xlane.xlu0 %594
  %v596 = vsel %vm161, %v582, 0.0
  %597 = vadd.xlane.f32.xlu0 %v596
  %v598 = vpop.xlane.xlu0 %597
  %v599 = vsel %vm161, %v583, 0.0
  %600 = vadd.xlane.f32.xlu0 %v599
  %v601 = vpop.xlane.xlu0 %600
  %v602 = vsel %vm161, %v584, 0.0
  %603 = vadd.xlane.f32.xlu0 %v602
  %v604 = vpop.xlane.xlu0 %603
  %v605 = vsel %vm161, %v585, 0.0
  %606 = vadd.xlane.f32.xlu0 %v605
  %v607 = vpop.xlane.xlu0 %606
  %v608 = vsel %vm161, %v586, 0.0
  %609 = vadd.xlane.f32.xlu0 %v608
  %v610 = vpop.xlane.xlu0 %609
  %v611 = vmul.f32 %v589, %v186
  %v612 = vmul.f32 %v592, %v186
  %v613 = vmul.f32 %v595, %v186
  %v614 = vmul.f32 %v598, %v186
  %v615 = vmul.f32 %v601, %v186
  %v616 = vmul.f32 %v604, %v186
  %v617 = vmul.f32 %v607, %v186
  %v618 = vmul.f32 %v610, %v186
  %v619 = vadd.f32 %v611, 1e-05
  %v620 = vadd.f32 %v612, 1e-05
  %v621 = vadd.f32 %v613, 1e-05
  %v622 = vadd.f32 %v614, 1e-05
  %v623 = vadd.f32 %v615, 1e-05
  %v624 = vadd.f32 %v616, 1e-05
  %v625 = vadd.f32 %v617, 1e-05
  %v626 = vadd.f32 %v618, 1e-05
  %v627 = vrsqrt.pop %v619
  %v628 = vrsqrt.pop %v620
  %v629 = vrsqrt.pop %v621
  %v630 = vrsqrt.pop %v622
  %v631 = vrsqrt.pop %v623
  %v632 = vrsqrt.pop %v624
  %v633 = vrsqrt.pop %v625
  %v634 = vrsqrt.pop %v626
  %v635 = vmul.f32 %v571, %v627
  %v636 = vmul.f32 %v572, %v628
  %v637 = vmul.f32 %v573, %v629
  %v638 = vmul.f32 %v574, %v630
  %v639 = vmul.f32 %v575, %v631
  %v640 = vmul.f32 %v576, %v632
  %v641 = vmul.f32 %v577, %v633
  %v642 = vmul.f32 %v578, %v634
  %v643 = vmul.f32 %v462, %v635
  %v644 = vmul.f32 %v462, %v636
  %v645 = vmul.f32 %v462, %v637
  %v646 = vmul.f32 %v462, %v638
  %v647 = vmul.f32 %v462, %v639
  %v648 = vmul.f32 %v462, %v640
  %v649 = vmul.f32 %v462, %v641
  %v650 = vmul.f32 %v462, %v642
  %v651 = vadd.f32 %v643, %v474
  %v652 = vadd.f32 %v644, %v474
  %v653 = vadd.f32 %v645, %v474
  %v654 = vadd.f32 %v646, %v474
  %v655 = vadd.f32 %v647, %v474
  %v656 = vadd.f32 %v648, %v474
  %v657 = vadd.f32 %v649, %v474
  %v658 = vadd.f32 %v650, %v474
  %v659 = vmax.f32 %v651, 0.0
  %v660 = vmax.f32 %v652, 0.0
  %v661 = vmax.f32 %v653, 0.0
  %v662 = vmax.f32 %v654, 0.0
  %v663 = vmax.f32 %v655, 0.0
  %v664 = vmax.f32 %v656, 0.0
  %v665 = vmax.f32 %v657, 0.0
  %v666 = vmax.f32 %v658, 0.0
  %v668 = vcombine.high %v41, %v41
  %v670 = vunpack.c.l.s4 1966171168
  %v671 = vunpack.c.0.s8 %v670
  %v672 = vlaneseq
  %v673 = vshrl.u32 %v672, 7
  %v674 = vsub.s32 %v671, %v673
  %v675 = vrot.slane %v41, %v674
  %v677 = vunpack.c.l.s4 1966171168
  %v678 = vunpack.c.0.s8 %v677
  %v679 = vlaneseq
  %v680 = vshrl.u32 %v679, 7
  %v681 = vsub.s32 %v678, %v680
  %v682 = vrot.slane %v668, %v681
  %v683 = vcombine.high %v675, %v675
  %v684 = vcombine.high %v682, %v682
  %v686 = vunpack.c.l.s4 1966171168
  %v687 = vunpack.c.0.s8 %v686
  %v688 = vlaneseq
  %v689 = vshrl.u32 %v688, 7
  %v690 = vsub.s32 %v687, %v689
  %v691 = vrot.slane %v675, %v690
  %v693 = vunpack.c.l.s4 1966171168
  %v694 = vunpack.c.0.s8 %v693
  %v695 = vlaneseq
  %v696 = vshrl.u32 %v695, 7
  %v697 = vsub.s32 %v694, %v696
  %v698 = vrot.slane %v682, %v697
  %v700 = vunpack.c.l.s4 1966171168
  %v701 = vunpack.c.0.s8 %v700
  %v702 = vlaneseq
  %v703 = vshrl.u32 %v702, 7
  %v704 = vsub.s32 %v701, %v703
  %v705 = vrot.slane %v683, %v704
  %v707 = vunpack.c.l.s4 1966171168
  %v708 = vunpack.c.0.s8 %v707
  %v709 = vlaneseq
  %v710 = vshrl.u32 %v709, 7
  %v711 = vsub.s32 %v708, %v710
  %v712 = vrot.slane %v684, %v711
  %v713 = vcombine.high %v691, %v691
  %v714 = vcombine.high %v698, %v698
  %v715 = vcombine.high %v705, %v705
  %v716 = vcombine.high %v712, %v712
  %v717 = vlaneseq
  %v718 = vshrl.u32 %v717, 7
  %v719 = vsub.s32 0, %v718
  %v720 = vrot.slane %v691, %v719
  %v721 = vlaneseq
  %v722 = vshrl.u32 %v721, 7
  %v723 = vsub.s32 0, %v722
  %v724 = vrot.slane %v705, %v723
  %v725 = vlaneseq
  %v726 = vshrl.u32 %v725, 7
  %v727 = vsub.s32 0, %v726
  %v728 = vrot.slane %v713, %v727
  %v729 = vlaneseq
  %v730 = vshrl.u32 %v729, 7
  %v731 = vsub.s32 0, %v730
  %v732 = vrot.slane %v715, %v731
  %v733 = vlaneseq
  %v734 = vshrl.u32 %v733, 7
  %v735 = vsub.s32 0, %v734
  %v736 = vrot.slane %v698, %v735
  %v737 = vlaneseq
  %v738 = vshrl.u32 %v737, 7
  %v739 = vsub.s32 0, %v738
  %v740 = vrot.slane %v712, %v739
  %v741 = vlaneseq
  %v742 = vshrl.u32 %v741, 7
  %v743 = vsub.s32 0, %v742
  %v744 = vrot.slane %v714, %v743
  %v745 = vlaneseq
  %v746 = vshrl.u32 %v745, 7
  %v747 = vsub.s32 0, %v746
  %v748 = vrot.slane %v716, %v747
  %v757 = vpack.c.bf16 %v292, %v291
  %v758 = vpack.c.bf16 %v294, %v293
  %v759 = vpack.c.bf16 %v296, %v295
  %v760 = vpack.c.bf16 %v298, %v297
  %761 = vst.msk [vmem:[#allocation2] sm:$0xff] %vm161, %v757
  %762 = vst.msk [vmem:[#allocation2 + $0x10] sm:$0xff] %vm161, %v758
  %763 = vst.msk [vmem:[#allocation2 + $0x20] sm:$0xff] %vm161, %v759
  %764 = vst.msk [vmem:[#allocation2 + $0x30] sm:$0xff] %vm161, %v760
  %v765 = vpack.c.bf16 %v484, %v483
  %v766 = vpack.c.bf16 %v486, %v485
  %v767 = vpack.c.bf16 %v488, %v487
  %v768 = vpack.c.bf16 %v490, %v489
  %773 = vrot.lane.b32.xlu0 %v765, 32
  %v774 = vpop.permute.xlu0 %773
  %775 = vrot.lane.b32.xlu0 %v766, 32
  %v776 = vpop.permute.xlu0 %775
  %777 = vrot.lane.b32.xlu0 %v767, 32
  %v778 = vpop.permute.xlu0 %777
  %779 = vrot.lane.b32.xlu0 %v768, 32
  %v780 = vpop.permute.xlu0 %779
  %vm785 = vcmask 523520
  %786 = vst.msk [vmem:[#allocation2] sm:$0xff] %vm785, %v774
  %787 = vst.msk [vmem:[#allocation2 + $0x10] sm:$0xff] %vm785, %v776
  %788 = vst.msk [vmem:[#allocation2 + $0x20] sm:$0xff] %vm785, %v778
  %789 = vst.msk [vmem:[#allocation2 + $0x30] sm:$0xff] %vm785, %v780
  %v790 = vpack.c.bf16 %v660, %v659
  %v791 = vpack.c.bf16 %v662, %v661
  %v792 = vpack.c.bf16 %v664, %v663
  %v793 = vpack.c.bf16 %v666, %v665
  %798 = vrot.lane.b32.xlu0 %v790, 64
  %v799 = vpop.permute.xlu0 %798
  %800 = vrot.lane.b32.xlu0 %v791, 64
  %v801 = vpop.permute.xlu0 %800
  %802 = vrot.lane.b32.xlu0 %v792, 64
  %v803 = vpop.permute.xlu0 %802
  %804 = vrot.lane.b32.xlu0 %v793, 64
  %v805 = vpop.permute.xlu0 %804
  %vm810 = vcmask 785920
  %811 = vst.msk [vmem:[#allocation2] sm:$0xff] %vm810, %v799
  %812 = vst.msk [vmem:[#allocation2 + $0x10] sm:$0xff] %vm810, %v801
  %813 = vst.msk [vmem:[#allocation2 + $0x20] sm:$0xff] %vm810, %v803
  %814 = vst.msk [vmem:[#allocation2 + $0x30] sm:$0xff] %vm810, %v805
  %v815 = vpack.c.bf16 %v724, %v720
  %v816 = vpack.c.bf16 %v732, %v728
  %v817 = vpack.c.bf16 %v740, %v736
  %v818 = vpack.c.bf16 %v748, %v744
  %823 = vrot.lane.b32.xlu0 %v815, 96
  %v824 = vpop.permute.xlu0 %823
  %825 = vrot.lane.b32.xlu0 %v816, 96
  %v826 = vpop.permute.xlu0 %825
  %827 = vrot.lane.b32.xlu0 %v817, 96
  %v828 = vpop.permute.xlu0 %827
  %829 = vrot.lane.b32.xlu0 %v818, 96
  %v830 = vpop.permute.xlu0 %829
  %vm835 = vcmask 1048320
  %836 = vst.msk [vmem:[#allocation2] sm:$0xff] %vm835, %v824
  %837 = vst.msk [vmem:[#allocation2 + $0x10] sm:$0xff] %vm835, %v826
  %838 = vst.msk [vmem:[#allocation2 + $0x20] sm:$0xff] %vm835, %v828
  %839 = vst.msk [vmem:[#allocation2 + $0x30] sm:$0xff] %vm835, %v830
  %v840 = vpack.c.bf16 %v41, %v41
  %841 = vst.msk [vmem:[#allocation2 + $0x8] sm:$0xff] %vm161, %v840
  %842 = vst.msk [vmem:[#allocation2 + $0x18] sm:$0xff] %vm161, %v840
  %843 = vst.msk [vmem:[#allocation2 + $0x28] sm:$0xff] %vm161, %v840
  %844 = vst.msk [vmem:[#allocation2 + $0x38] sm:$0xff] %vm161, %v840
  %v845 = vld [vmem:[#allocation2] sm:$0xff]
  %v846 = vld [vmem:[#allocation2 + $0x8] sm:$0xff]
  %v847 = vld [vmem:[#allocation2 + $0x10] sm:$0xff]
  %v848 = vld [vmem:[#allocation2 + $0x18] sm:$0xff]
  %v849 = vld [vmem:[#allocation2 + $0x20] sm:$0xff]
  %v850 = vld [vmem:[#allocation2 + $0x28] sm:$0xff]
  %v851 = vld [vmem:[#allocation2 + $0x30] sm:$0xff]
  %v852 = vld [vmem:[#allocation2 + $0x38] sm:$0xff]
  %v853 = vld [vmem:[%s4] sm:$0xff]
  %v854 = vld [vmem:[%s4 + $0x8] sm:$0xf]
  %v855 = vld [vmem:[%s4 + $0xc] sm:$0xff]
  %v856 = vld [vmem:[%s4 + $0x14] sm:$0xf]
  %v857 = vld [vmem:[%s4 + $0x18] sm:$0xff]
  %v858 = vld [vmem:[%s4 + $0x20] sm:$0xf]
  %v859 = vld [vmem:[%s4 + $0x24] sm:$0xff]
  %v860 = vld [vmem:[%s4 + $0x2c] sm:$0xf]
  %v861 = vld [vmem:[%s4 + $0x30] sm:$0xff]
  %v862 = vld [vmem:[%s4 + $0x38] sm:$0xf]
  %v863 = vld [vmem:[%s4 + $0x3c] sm:$0xff]
  %v864 = vld [vmem:[%s4 + $0x44] sm:$0xf]
  %v865 = vld [vmem:[%s4 + $0x48] sm:$0xff]
  %v866 = vld [vmem:[%s4 + $0x50] sm:$0xf]
  %v867 = vld [vmem:[%s4 + $0x54] sm:$0xff]
  %v868 = vld [vmem:[%s4 + $0x5c] sm:$0xf]
  %v869 = vld [vmem:[%s4 + $0x60] sm:$0xff]
  %v870 = vld [vmem:[%s4 + $0x68] sm:$0xf]
  %v871 = vld [vmem:[%s4 + $0x6c] sm:$0xff]
  %v872 = vld [vmem:[%s4 + $0x74] sm:$0xf]
  %v873 = vld [vmem:[%s4 + $0x78] sm:$0xff]
  %v874 = vld [vmem:[%s4 + $0x80] sm:$0xf]
  %v875 = vld [vmem:[%s4 + $0x84] sm:$0xff]
  %v876 = vld [vmem:[%s4 + $0x8c] sm:$0xf]
  %v877 = vld [vmem:[%s4 + $0x90] sm:$0xff]
  %v878 = vld [vmem:[%s4 + $0x98] sm:$0xf]
  %v879 = vld [vmem:[%s4 + $0x9c] sm:$0xff]
  %v880 = vld [vmem:[%s4 + $0xa4] sm:$0xf]
  %v881 = vld [vmem:[%s4 + $0xa8] sm:$0xff]
  %v882 = vld [vmem:[%s4 + $0xb0] sm:$0xf]
  %v883 = vld [vmem:[%s4 + $0xb4] sm:$0xff]
  %v884 = vld [vmem:[%s4 + $0xbc] sm:$0xf]
  %v885 = vld [vmem:[%s4 + $0xc0] sm:$0xff]
  %v886 = vld [vmem:[%s4 + $0xc8] sm:$0xf]
  %v887 = vld [vmem:[%s4 + $0xcc] sm:$0xff]
  %v888 = vld [vmem:[%s4 + $0xd4] sm:$0xf]
  %v889 = vld [vmem:[%s4 + $0xd8] sm:$0xff]
  %v890 = vld [vmem:[%s4 + $0xe0] sm:$0xf]
  %v891 = vld [vmem:[%s4 + $0xe4] sm:$0xff]
  %v892 = vld [vmem:[%s4 + $0xec] sm:$0xf]
  %v893 = vld [vmem:[%s5] sm:$0x7]
  %v895 = vlaneseq
  %v896 = vshrl.u32 %v895, 7
  %v897 = vsub.s32 0, %v896
  %v898 = vrot.slane %v893, %v897
  %v899 = vlaneseq
  %v900 = vshrl.u32 %v899, 7
  %v901 = vsub.s32 1, %v900
  %v902 = vrot.slane %v893, %v901
  %v903 = vlaneseq
  %v904 = vshrl.u32 %v903, 7
  %v905 = vsub.s32 2, %v904
  %v906 = vrot.slane %v893, %v905
  %v950 = vunpack.c.l.b16 %v853
  %v951 = vunpack.c.h.b16 %v853
  %v952 = vunpack.c.l.b16 %v854
  %v953 = vunpack.c.l.b16 %v855
  %v954 = vunpack.c.h.b16 %v855
  %v955 = vunpack.c.l.b16 %v856
  %v956 = vunpack.c.l.b16 %v857
  %v957 = vunpack.c.h.b16 %v857
  %v958 = vunpack.c.l.b16 %v858
  %v959 = vunpack.c.l.b16 %v859
  %v960 = vunpack.c.h.b16 %v859
  %v961 = vunpack.c.l.b16 %v860
  %v962 = vunpack.c.l.b16 %v861
  %v963 = vunpack.c.h.b16 %v861
  %v964 = vunpack.c.l.b16 %v862
  %v965 = vunpack.c.l.b16 %v863
  %v966 = vunpack.c.h.b16 %v863
  %v967 = vunpack.c.l.b16 %v864
  %v968 = vunpack.c.l.b16 %v865
  %v969 = vunpack.c.h.b16 %v865
  %v970 = vunpack.c.l.b16 %v866
  %v971 = vunpack.c.l.b16 %v867
  %v972 = vunpack.c.h.b16 %v867
  %v973 = vunpack.c.l.b16 %v868
  %v974 = vunpack.c.l.b16 %v869
  %v975 = vunpack.c.h.b16 %v869
  %v976 = vunpack.c.l.b16 %v870
  %v977 = vunpack.c.l.b16 %v871
  %v978 = vunpack.c.h.b16 %v871
  %v979 = vunpack.c.l.b16 %v872
  %v980 = vunpack.c.l.b16 %v873
  %v981 = vunpack.c.h.b16 %v873
  %v982 = vunpack.c.l.b16 %v874
  %v983 = vunpack.c.l.b16 %v875
  %v984 = vunpack.c.h.b16 %v875
  %v985 = vunpack.c.l.b16 %v876
  %v986 = vunpack.c.l.b16 %v877
  %v987 = vunpack.c.h.b16 %v877
  %v988 = vunpack.c.l.b16 %v878
  %v989 = vunpack.c.l.b16 %v879
  %v990 = vunpack.c.h.b16 %v879
  %v991 = vunpack.c.l.b16 %v880
  %v992 = vunpack.c.l.b16 %v881
  %v993 = vunpack.c.h.b16 %v881
  %v994 = vunpack.c.l.b16 %v882
  %v995 = vunpack.c.l.b16 %v883
  %v996 = vunpack.c.h.b16 %v883
  %v997 = vunpack.c.l.b16 %v884
  %v998 = vunpack.c.l.b16 %v885
  %v999 = vunpack.c.h.b16 %v885
  %v1000 = vunpack.c.l.b16 %v886
  %v1001 = vunpack.c.l.b16 %v887
  %v1002 = vunpack.c.h.b16 %v887
  %v1003 = vunpack.c.l.b16 %v888
  %v1004 = vunpack.c.l.b16 %v889
  %v1005 = vunpack.c.h.b16 %v889
  %v1006 = vunpack.c.l.b16 %v890
  %v1007 = vunpack.c.l.b16 %v891
  %v1008 = vunpack.c.h.b16 %v891
  %v1009 = vunpack.c.l.b16 %v892
  %v1010 = vpack.c.b16 %v953, %v950
  %v1011 = vpack.c.b16 %v954, %v951
  %v1012 = vpack.c.b16 %v955, %v952
  %v1013 = vpack.c.b16 %v959, %v956
  %v1014 = vpack.c.b16 %v960, %v957
  %v1015 = vpack.c.b16 %v961, %v958
  %v1016 = vpack.c.b16 %v965, %v962
  %v1017 = vpack.c.b16 %v966, %v963
  %v1018 = vpack.c.b16 %v967, %v964
  %v1019 = vpack.c.b16 %v971, %v968
  %v1020 = vpack.c.b16 %v972, %v969
  %v1021 = vpack.c.b16 %v973, %v970
  %v1022 = vpack.c.b16 %v977, %v974
  %v1023 = vpack.c.b16 %v978, %v975
  %v1024 = vpack.c.b16 %v979, %v976
  %v1025 = vpack.c.b16 %v983, %v980
  %v1026 = vpack.c.b16 %v984, %v981
  %v1027 = vpack.c.b16 %v985, %v982
  %v1028 = vpack.c.b16 %v989, %v986
  %v1029 = vpack.c.b16 %v990, %v987
  %v1030 = vpack.c.b16 %v991, %v988
  %v1031 = vpack.c.b16 %v995, %v992
  %v1032 = vpack.c.b16 %v996, %v993
  %v1033 = vpack.c.b16 %v997, %v994
  %v1034 = vpack.c.b16 %v1001, %v998
  %v1035 = vpack.c.b16 %v1002, %v999
  %v1036 = vpack.c.b16 %v1003, %v1000
  %v1037 = vpack.c.b16 %v1007, %v1004
  %v1038 = vpack.c.b16 %v1008, %v1005
  %v1039 = vpack.c.b16 %v1009, %v1006
  %v1071 = vsel %vm161, %v846, 0
  %v1074 = vsel %vm161, %v848, 0
  %v1077 = vsel %vm161, %v850, 0
  %v1080 = vsel %vm161, %v852, 0
  %1082 = vmatprep.subr.bf16.mxu0 %v1011
  %1083 = vmatpush1.bf16.msra.mxu0 %v1010
  %1084 = vmatprep.subr.bf16.mxu0 %v1014
  %1085 = vmatpush1.bf16.msra.mxu0 %v1013
  %1086 = vmatprep.subr.bf16.mxu0 %v1017
  %1087 = vmatpush1.bf16.msra.mxu0 %v1016
  %1088 = vmatprep.subr.bf16.mxu0 %v1020
  %1089 = vmatpush1.bf16.msra.mxu0 %v1019
  %1090 = vmatprep.subr.bf16.mxu0 %v1023
  %1091 = vmatpush1.bf16.msra.mxu0 %v1022
  %1092 = vmatprep.subr.bf16.mxu0 %v1026
  %1093 = vmatpush1.bf16.msra.mxu0 %v1025
  %1094 = vmatprep.subr.bf16.mxu0 %v1029
  %1095 = vmatpush1.bf16.msra.mxu0 %v1028
  %1096 = vmatprep.subr.bf16.mxu0 %v1032
  %1097 = vmatpush1.bf16.msra.mxu0 %v1031
  %1098 = vmatprep.subr.bf16.mxu0 %v1035
  %1099 = vmatpush1.bf16.msra.mxu0 %v1034
  %1100 = vmatprep.subr.bf16.mxu0 %v1038
  %1101 = vmatpush1.bf16.msra.mxu0 %v1037
  %1102 = vmatprep.subr.bf16.mxu0 0
  %1103 = vmatpush1.bf16.msra.mxu0 0
  %1104 = vmatprep.subr.bf16.mxu0 0
  %1105 = vmatpush1.bf16.msra.mxu0 0
  %1106 = vmatprep.subr.bf16.mxu0 0
  %1107 = vmatpush1.bf16.msra.mxu0 0
  %1108 = vmatprep.subr.bf16.mxu0 0
  %1109 = vmatpush1.bf16.msra.mxu0 0
  %1110 = vmatprep.subr.bf16.mxu0 0
  %1111 = vmatpush1.bf16.msra.mxu0 0
  %1112 = vmatprep.subr.bf16.mxu0 0
  %1113 = vmatpush1.bf16.msra.mxu0 0
  %1114 = vmatprep.mubr.bf16.mxu0 %v1071
  %1115 = vmatmul.mubr.bf16.gmra.mrb[0].mxu0 %v845
  %v1116 = vpop.f32.mrb[0].mxu0
  %v1117 = vadd.f32 %v898, %v1116
  %v1118 = vpop.f32.mrb[0].mxu0
  %v1119 = vadd.f32 %v902, %v1118
  %v1120 = vpop.f32.mrb[0].mxu0
  %v1121 = vadd.f32 %v898, %v1120
  %v1122 = vpop.f32.mrb[0].mxu0
  %v1123 = vadd.f32 %v902, %v1122
  %1124 = vmatprep.mubr.bf16.mxu0 %v1074
  %1125 = vmatmul.mubr.bf16.gmra.mrb[0].mxu0 %v847
  %v1126 = vpop.f32.mrb[0].mxu0
  %v1127 = vadd.f32 %v898, %v1126
  %v1128 = vpop.f32.mrb[0].mxu0
  %v1129 = vadd.f32 %v902, %v1128
  %v1130 = vpop.f32.mrb[0].mxu0
  %v1131 = vadd.f32 %v898, %v1130
  %v1132 = vpop.f32.mrb[0].mxu0
  %v1133 = vadd.f32 %v902, %v1132
  %1134 = vmatprep.mubr.bf16.mxu0 %v1077
  %1135 = vmatmul.mubr.bf16.gmra.mrb[0].mxu0 %v849
  %v1136 = vpop.f32.mrb[0].mxu0
  %v1137 = vadd.f32 %v898, %v1136
  %v1138 = vpop.f32.mrb[0].mxu0
  %v1139 = vadd.f32 %v902, %v1138
  %v1140 = vpop.f32.mrb[0].mxu0
  %v1141 = vadd.f32 %v898, %v1140
  %v1142 = vpop.f32.mrb[0].mxu0
  %v1143 = vadd.f32 %v902, %v1142
  %1144 = vmatprep.mubr.bf16.mxu0 %v1080
  %1145 = vmatmul.mubr.bf16.gmra.mrb[0].mxu0 %v851
  %v1146 = vpop.f32.mrb[0].mxu0
  %v1147 = vadd.f32 %v898, %v1146
  %v1148 = vpop.f32.mrb[0].mxu0
  %v1149 = vadd.f32 %v902, %v1148
  %v1150 = vpop.f32.mrb[0].mxu0
  %v1151 = vadd.f32 %v898, %v1150
  %v1152 = vpop.f32.mrb[0].mxu0
  %v1153 = vadd.f32 %v902, %v1152
  %1154 = vdwg.mxu0
  %1155 = vmatprep.subr.bf16.mxu0 0
  %1156 = vmatpush1.bf16.msra.mxu0 %v1012
  %1157 = vmatprep.subr.bf16.mxu0 0
  %1158 = vmatpush1.bf16.msra.mxu0 %v1015
  %1159 = vmatprep.subr.bf16.mxu0 0
  %1160 = vmatpush1.bf16.msra.mxu0 %v1018
  %1161 = vmatprep.subr.bf16.mxu0 0
  %1162 = vmatpush1.bf16.msra.mxu0 %v1021
  %1163 = vmatprep.subr.bf16.mxu0 0
  %1164 = vmatpush1.bf16.msra.mxu0 %v1024
  %1165 = vmatprep.subr.bf16.mxu0 0
  %1166 = vmatpush1.bf16.msra.mxu0 %v1027
  %1167 = vmatprep.subr.bf16.mxu0 0
  %1168 = vmatpush1.bf16.msra.mxu0 %v1030
  %1169 = vmatprep.subr.bf16.mxu0 0
  %1170 = vmatpush1.bf16.msra.mxu0 %v1033
  %1171 = vmatprep.subr.bf16.mxu0 0
  %1172 = vmatpush1.bf16.msra.mxu0 %v1036
  %1173 = vmatprep.subr.bf16.mxu0 0
  %1174 = vmatpush1.bf16.msra.mxu0 %v1039
  %1175 = vmatprep.subr.bf16.mxu0 0
  %1176 = vmatpush1.bf16.msra.mxu0 0
  %1177 = vmatprep.subr.bf16.mxu0 0
  %1178 = vmatpush1.bf16.msra.mxu0 0
  %1179 = vmatprep.subr.bf16.mxu0 0
  %1180 = vmatpush1.bf16.msra.mxu0 0
  %1181 = vmatprep.subr.bf16.mxu0 0
  %1182 = vmatpush1.bf16.msra.mxu0 0
  %1183 = vmatprep.subr.bf16.mxu0 0
  %1184 = vmatpush1.bf16.msra.mxu0 0
  %1185 = vmatprep.subr.bf16.mxu0 0
  %1186 = vmatpush1.bf16.msra.mxu0 0
  %1187 = vmatprep.mubr.bf16.mxu0 %v1071
  %1188 = vmatmul.mubr.bf16.gmra.mrb[0].mxu0 %v845
  %v1189 = vpop.f32.mrb[0].mxu0
  %v1190 = vadd.f32 %v906, %v1189
  %v1191 = vpop.f32.mrb[0].mxu0
  %v1192 = vpop.f32.mrb[0].mxu0
  %v1193 = vadd.f32 %v906, %v1192
  %v1194 = vpop.f32.mrb[0].mxu0
  %1195 = vmatprep.mubr.bf16.mxu0 %v1074
  %1196 = vmatmul.mubr.bf16.gmra.mrb[0].mxu0 %v847
  %v1197 = vpop.f32.mrb[0].mxu0
  %v1198 = vadd.f32 %v906, %v1197
  %v1199 = vpop.f32.mrb[0].mxu0
  %v1200 = vpop.f32.mrb[0].mxu0
  %v1201 = vadd.f32 %v906, %v1200
  %v1202 = vpop.f32.mrb[0].mxu0
  %1203 = vmatprep.mubr.bf16.mxu0 %v1077
  %1204 = vmatmul.mubr.bf16.gmra.mrb[0].mxu0 %v849
  %v1205 = vpop.f32.mrb[0].mxu0
  %v1206 = vadd.f32 %v906, %v1205
  %v1207 = vpop.f32.mrb[0].mxu0
  %v1208 = vpop.f32.mrb[0].mxu0
  %v1209 = vadd.f32 %v906, %v1208
  %v1210 = vpop.f32.mrb[0].mxu0
  %1211 = vmatprep.mubr.bf16.mxu0 %v1080
  %1212 = vmatmul.mubr.bf16.gmra.mrb[0].mxu0 %v851
  %v1213 = vpop.f32.mrb[0].mxu0
  %v1214 = vadd.f32 %v906, %v1213
  %v1215 = vpop.f32.mrb[0].mxu0
  %v1216 = vpop.f32.mrb[0].mxu0
  %v1217 = vadd.f32 %v906, %v1216
  %v1218 = vpop.f32.mrb[0].mxu0
  %1219 = vdwg.mxu0
  %v1220 = vsel %vm161, %v1117, 0.0
  %1221 = vadd.xlane.f32.xlu0 %v1220
  %v1222 = vpop.xlane.xlu0 %1221
  %v1223 = vsel %vm161, %v1121, 0.0
  %1224 = vadd.xlane.f32.xlu0 %v1223
  %v1225 = vpop.xlane.xlu0 %1224
  %v1226 = vsel %vm161, %v1127, 0.0
  %1227 = vadd.xlane.f32.xlu0 %v1226
  %v1228 = vpop.xlane.xlu0 %1227
  %v1229 = vsel %vm161, %v1131, 0.0
  %1230 = vadd.xlane.f32.xlu0 %v1229
  %v1231 = vpop.xlane.xlu0 %1230
  %v1232 = vsel %vm161, %v1137, 0.0
  %1233 = vadd.xlane.f32.xlu0 %v1232
  %v1234 = vpop.xlane.xlu0 %1233
  %v1235 = vsel %vm161, %v1141, 0.0
  %1236 = vadd.xlane.f32.xlu0 %v1235
  %v1237 = vpop.xlane.xlu0 %1236
  %v1238 = vsel %vm161, %v1147, 0.0
  %1239 = vadd.xlane.f32.xlu0 %v1238
  %v1240 = vpop.xlane.xlu0 %1239
  %v1241 = vsel %vm161, %v1151, 0.0
  %1242 = vadd.xlane.f32.xlu0 %v1241
  %v1243 = vpop.xlane.xlu0 %1242
  %v1244 = vmul.f32 %v1222, %v186
  %v1245 = vmul.f32 %v1225, %v186
  %v1246 = vmul.f32 %v1228, %v186
  %v1247 = vmul.f32 %v1231, %v186
  %v1248 = vmul.f32 %v1234, %v186
  %v1249 = vmul.f32 %v1237, %v186
  %v1250 = vmul.f32 %v1240, %v186
  %v1251 = vmul.f32 %v1243, %v186
  %v1252 = vsub.f32 %v1117, %v1244
  %v1253 = vsub.f32 %v1121, %v1245
  %v1254 = vsub.f32 %v1127, %v1246
  %v1255 = vsub.f32 %v1131, %v1247
  %v1256 = vsub.f32 %v1137, %v1248
  %v1257 = vsub.f32 %v1141, %v1249
  %v1258 = vsub.f32 %v1147, %v1250
  %v1259 = vsub.f32 %v1151, %v1251
  %v1260 = vmul.f32 %v1252, %v1252
  %v1261 = vmul.f32 %v1253, %v1253
  %v1262 = vmul.f32 %v1254, %v1254
  %v1263 = vmul.f32 %v1255, %v1255
  %v1264 = vmul.f32 %v1256, %v1256
  %v1265 = vmul.f32 %v1257, %v1257
  %v1266 = vmul.f32 %v1258, %v1258
  %v1267 = vmul.f32 %v1259, %v1259
  %v1268 = vsel %vm161, %v1260, 0.0
  %1269 = vadd.xlane.f32.xlu0 %v1268
  %v1270 = vpop.xlane.xlu0 %1269
  %v1271 = vsel %vm161, %v1261, 0.0
  %1272 = vadd.xlane.f32.xlu0 %v1271
  %v1273 = vpop.xlane.xlu0 %1272
  %v1274 = vsel %vm161, %v1262, 0.0
  %1275 = vadd.xlane.f32.xlu0 %v1274
  %v1276 = vpop.xlane.xlu0 %1275
  %v1277 = vsel %vm161, %v1263, 0.0
  %1278 = vadd.xlane.f32.xlu0 %v1277
  %v1279 = vpop.xlane.xlu0 %1278
  %v1280 = vsel %vm161, %v1264, 0.0
  %1281 = vadd.xlane.f32.xlu0 %v1280
  %v1282 = vpop.xlane.xlu0 %1281
  %v1283 = vsel %vm161, %v1265, 0.0
  %1284 = vadd.xlane.f32.xlu0 %v1283
  %v1285 = vpop.xlane.xlu0 %1284
  %v1286 = vsel %vm161, %v1266, 0.0
  %1287 = vadd.xlane.f32.xlu0 %v1286
  %v1288 = vpop.xlane.xlu0 %1287
  %v1289 = vsel %vm161, %v1267, 0.0
  %1290 = vadd.xlane.f32.xlu0 %v1289
  %v1291 = vpop.xlane.xlu0 %1290
  %v1292 = vmul.f32 %v1270, %v186
  %v1293 = vmul.f32 %v1273, %v186
  %v1294 = vmul.f32 %v1276, %v186
  %v1295 = vmul.f32 %v1279, %v186
  %v1296 = vmul.f32 %v1282, %v186
  %v1297 = vmul.f32 %v1285, %v186
  %v1298 = vmul.f32 %v1288, %v186
  %v1299 = vmul.f32 %v1291, %v186
  %v1300 = vadd.f32 %v1292, 1e-05
  %v1301 = vadd.f32 %v1293, 1e-05
  %v1302 = vadd.f32 %v1294, 1e-05
  %v1303 = vadd.f32 %v1295, 1e-05
  %v1304 = vadd.f32 %v1296, 1e-05
  %v1305 = vadd.f32 %v1297, 1e-05
  %v1306 = vadd.f32 %v1298, 1e-05
  %v1307 = vadd.f32 %v1299, 1e-05
  %v1308 = vrsqrt.pop %v1300
  %v1309 = vrsqrt.pop %v1301
  %v1310 = vrsqrt.pop %v1302
  %v1311 = vrsqrt.pop %v1303
  %v1312 = vrsqrt.pop %v1304
  %v1313 = vrsqrt.pop %v1305
  %v1314 = vrsqrt.pop %v1306
  %v1315 = vrsqrt.pop %v1307
  %v1316 = vmul.f32 %v1252, %v1308
  %v1317 = vmul.f32 %v1253, %v1309
  %v1318 = vmul.f32 %v1254, %v1310
  %v1319 = vmul.f32 %v1255, %v1311
  %v1320 = vmul.f32 %v1256, %v1312
  %v1321 = vmul.f32 %v1257, %v1313
  %v1322 = vmul.f32 %v1258, %v1314
  %v1323 = vmul.f32 %v1259, %v1315
  %v1324 = vlaneseq
  %v1325 = vshrl.u32 %v1324, 7
  %v1326 = vsub.s32 1, %v1325
  %v1327 = vrot.slane %v44, %v1326
  %v1328 = vmul.f32 %v1327, %v1316
  %v1329 = vmul.f32 %v1327, %v1317
  %v1330 = vmul.f32 %v1327, %v1318
  %v1331 = vmul.f32 %v1327, %v1319
  %v1332 = vmul.f32 %v1327, %v1320
  %v1333 = vmul.f32 %v1327, %v1321
  %v1334 = vmul.f32 %v1327, %v1322
  %v1335 = vmul.f32 %v1327, %v1323
  %v1336 = vlaneseq
  %v1337 = vshrl.u32 %v1336, 7
  %v1338 = vsub.s32 2, %v1337
  %v1339 = vrot.slane %v44, %v1338
  %v1340 = vadd.f32 %v1328, %v1339
  %v1341 = vadd.f32 %v1329, %v1339
  %v1342 = vadd.f32 %v1330, %v1339
  %v1343 = vadd.f32 %v1331, %v1339
  %v1344 = vadd.f32 %v1332, %v1339
  %v1345 = vadd.f32 %v1333, %v1339
  %v1346 = vadd.f32 %v1334, %v1339
  %v1347 = vadd.f32 %v1335, %v1339
  %v1348 = vxor.u32 %v1340, 2147483648
  %v1349 = vxor.u32 %v1341, 2147483648
  %v1350 = vxor.u32 %v1342, 2147483648
  %v1351 = vxor.u32 %v1343, 2147483648
  %v1352 = vxor.u32 %v1344, 2147483648
  %v1353 = vxor.u32 %v1345, 2147483648
  %v1354 = vxor.u32 %v1346, 2147483648
  %v1355 = vxor.u32 %v1347, 2147483648
  %v1356 = vmul.f32 %v1348, 1.442695
  %v1357 = vpow.pop %v1356
  %v1358 = vmul.f32 %v1349, 1.442695
  %v1359 = vpow.pop %v1358
  %v1360 = vmul.f32 %v1350, 1.442695
  %v1361 = vpow.pop %v1360
  %v1362 = vmul.f32 %v1351, 1.442695
  %v1363 = vpow.pop %v1362
  %v1364 = vmul.f32 %v1352, 1.442695
  %v1365 = vpow.pop %v1364
  %v1366 = vmul.f32 %v1353, 1.442695
  %v1367 = vpow.pop %v1366
  %v1368 = vmul.f32 %v1354, 1.442695
  %v1369 = vpow.pop %v1368
  %v1370 = vmul.f32 %v1355, 1.442695
  %v1371 = vpow.pop %v1370
  %v1372 = vadd.f32 %v1357, 1.0
  %v1373 = vadd.f32 %v1359, 1.0
  %v1374 = vadd.f32 %v1361, 1.0
  %v1375 = vadd.f32 %v1363, 1.0
  %v1376 = vadd.f32 %v1365, 1.0
  %v1377 = vadd.f32 %v1367, 1.0
  %v1378 = vadd.f32 %v1369, 1.0
  %v1379 = vadd.f32 %v1371, 1.0
  %v1380 = vrcp.pop %v1372
  %v1381 = vmul.f32 1.0, %v1380
  %v1382 = vrcp.pop %v1373
  %v1383 = vmul.f32 1.0, %v1382
  %v1384 = vrcp.pop %v1374
  %v1385 = vmul.f32 1.0, %v1384
  %v1386 = vrcp.pop %v1375
  %v1387 = vmul.f32 1.0, %v1386
  %v1388 = vrcp.pop %v1376
  %v1389 = vmul.f32 1.0, %v1388
  %v1390 = vrcp.pop %v1377
  %v1391 = vmul.f32 1.0, %v1390
  %v1392 = vrcp.pop %v1378
  %v1393 = vmul.f32 1.0, %v1392
  %v1394 = vrcp.pop %v1379
  %v1395 = vmul.f32 1.0, %v1394
  %v1396 = vld [vmem:[%s6] sm:$0xff]
  %v1397 = vld [vmem:[%s6 + $0x8] sm:$0x3]
  %v1398 = vlaneseq
  %v1399 = vshrl.u32 %v1398, 7
  %v1400 = vsub.s32 0, %v1399
  %v1401 = vrot.slane %v1396, %v1400
  %v1402 = vmul.f32 %v48, %v1401
  %v1403 = vmul.f32 %v53, %v1401
  %v1404 = vmul.f32 %v58, %v1401
  %v1405 = vmul.f32 %v63, %v1401
  %v1406 = vmul.f32 %v68, %v1401
  %v1407 = vmul.f32 %v73, %v1401
  %v1408 = vmul.f32 %v78, %v1401
  %v1409 = vmul.f32 %v83, %v1401
  %v1410 = vlaneseq
  %v1411 = vshrl.u32 %v1410, 7
  %v1412 = vsub.s32 1, %v1411
  %v1413 = vrot.slane %v1396, %v1412
  %v1414 = vmul.f32 %v99, %v1413
  %v1415 = vmul.f32 %v103, %v1413
  %v1416 = vmul.f32 %v107, %v1413
  %v1417 = vmul.f32 %v111, %v1413
  %v1418 = vmul.f32 %v115, %v1413
  %v1419 = vmul.f32 %v119, %v1413
  %v1420 = vmul.f32 %v123, %v1413
  %v1421 = vmul.f32 %v127, %v1413
  %v1422 = vadd.f32 %v1402, %v1414
  %v1423 = vadd.f32 %v1403, %v1415
  %v1424 = vadd.f32 %v1404, %v1416
  %v1425 = vadd.f32 %v1405, %v1417
  %v1426 = vadd.f32 %v1406, %v1418
  %v1427 = vadd.f32 %v1407, %v1419
  %v1428 = vadd.f32 %v1408, %v1420
  %v1429 = vadd.f32 %v1409, %v1421
  %v1430 = vlaneseq
  %v1431 = vshrl.u32 %v1430, 7
  %v1432 = vsub.s32 2, %v1431
  %v1433 = vrot.slane %v1396, %v1432
  %v1434 = vadd.f32 %v1422, %v1433
  %v1435 = vadd.f32 %v1423, %v1433
  %v1436 = vadd.f32 %v1424, %v1433
  %v1437 = vadd.f32 %v1425, %v1433
  %v1438 = vadd.f32 %v1426, %v1433
  %v1439 = vadd.f32 %v1427, %v1433
  %v1440 = vadd.f32 %v1428, %v1433
  %v1441 = vadd.f32 %v1429, %v1433
  %v1442 = vmax.f32 %v1434, 0.0
  %v1443 = vmax.f32 %v1435, 0.0
  %v1444 = vmax.f32 %v1436, 0.0
  %v1445 = vmax.f32 %v1437, 0.0
  %v1446 = vmax.f32 %v1438, 0.0
  %v1447 = vmax.f32 %v1439, 0.0
  %v1448 = vmax.f32 %v1440, 0.0
  %v1449 = vmax.f32 %v1441, 0.0
  %v1450 = vlaneseq
  %v1451 = vshrl.u32 %v1450, 7
  %v1452 = vsub.s32 3, %v1451
  %v1453 = vrot.slane %v1396, %v1452
  %v1454 = vmul.f32 %v1442, %v1453
  %v1455 = vmul.f32 %v1443, %v1453
  %v1456 = vmul.f32 %v1444, %v1453
  %v1457 = vmul.f32 %v1445, %v1453
  %v1458 = vmul.f32 %v1446, %v1453
  %v1459 = vmul.f32 %v1447, %v1453
  %v1460 = vmul.f32 %v1448, %v1453
  %v1461 = vmul.f32 %v1449, %v1453
  %vm1462 = vcmask 195584
  %v1463 = vsel %vm1462, %v1454, 0.0
  %1464 = vadd.xlane.f32.xlu0 %v1463
  %v1465 = vpop.xlane.xlu0 %1464
  %v1466 = vsel %vm1462, %v1455, 0.0
  %1467 = vadd.xlane.f32.xlu0 %v1466
  %v1468 = vpop.xlane.xlu0 %1467
  %v1469 = vsel %vm1462, %v1456, 0.0
  %1470 = vadd.xlane.f32.xlu0 %v1469
  %v1471 = vpop.xlane.xlu0 %1470
  %v1472 = vsel %vm1462, %v1457, 0.0
  %1473 = vadd.xlane.f32.xlu0 %v1472
  %v1474 = vpop.xlane.xlu0 %1473
  %v1475 = vsel %vm1462, %v1458, 0.0
  %1476 = vadd.xlane.f32.xlu0 %v1475
  %v1477 = vpop.xlane.xlu0 %1476
  %v1478 = vsel %vm1462, %v1459, 0.0
  %1479 = vadd.xlane.f32.xlu0 %v1478
  %v1480 = vpop.xlane.xlu0 %1479
  %v1481 = vsel %vm1462, %v1460, 0.0
  %1482 = vadd.xlane.f32.xlu0 %v1481
  %v1483 = vpop.xlane.xlu0 %1482
  %v1484 = vsel %vm1462, %v1461, 0.0
  %1485 = vadd.xlane.f32.xlu0 %v1484
  %v1486 = vpop.xlane.xlu0 %1485
  %v1487 = vlaneseq
  %v1488 = vshrl.u32 %v1487, 7
  %v1489 = vsub.s32 1, %v1488
  %v1490 = vrot.slane %v1397, %v1489
  %v1491 = vadd.f32 %v1465, %v1490
  %v1492 = vadd.f32 %v1468, %v1490
  %v1493 = vadd.f32 %v1471, %v1490
  %v1494 = vadd.f32 %v1474, %v1490
  %v1495 = vadd.f32 %v1477, %v1490
  %v1496 = vadd.f32 %v1480, %v1490
  %v1497 = vadd.f32 %v1483, %v1490
  %v1498 = vadd.f32 %v1486, %v1490
  %v1499 = vlaneseq
  %v1500 = vshrl.u32 %v1499, 7
  %v1501 = vsub.s32 4, %v1500
  %v1502 = vrot.slane %v1396, %v1501
  %v1503 = vmul.f32 %v301, %v1502
  %v1504 = vmul.f32 %v305, %v1502
  %v1505 = vmul.f32 %v309, %v1502
  %v1506 = vmul.f32 %v313, %v1502
  %v1507 = vmul.f32 %v317, %v1502
  %v1508 = vmul.f32 %v321, %v1502
  %v1509 = vmul.f32 %v325, %v1502
  %v1510 = vmul.f32 %v329, %v1502
  %v1511 = vlaneseq
  %v1512 = vshrl.u32 %v1511, 7
  %v1513 = vsub.s32 5, %v1512
  %v1514 = vrot.slane %v1396, %v1513
  %v1515 = vmul.f32 %v493, %v1514
  %v1516 = vmul.f32 %v497, %v1514
  %v1517 = vmul.f32 %v501, %v1514
  %v1518 = vmul.f32 %v505, %v1514
  %v1519 = vmul.f32 %v509, %v1514
  %v1520 = vmul.f32 %v513, %v1514
  %v1521 = vmul.f32 %v517, %v1514
  %v1522 = vmul.f32 %v521, %v1514
  %v1523 = vadd.f32 %v1503, %v1515
  %v1524 = vadd.f32 %v1504, %v1516
  %v1525 = vadd.f32 %v1505, %v1517
  %v1526 = vadd.f32 %v1506, %v1518
  %v1527 = vadd.f32 %v1507, %v1519
  %v1528 = vadd.f32 %v1508, %v1520
  %v1529 = vadd.f32 %v1509, %v1521
  %v1530 = vadd.f32 %v1510, %v1522
  %v1531 = vlaneseq
  %v1532 = vshrl.u32 %v1531, 7
  %v1533 = vsub.s32 6, %v1532
  %v1534 = vrot.slane %v1396, %v1533
  %v1535 = vadd.f32 %v1523, %v1534
  %v1536 = vadd.f32 %v1524, %v1534
  %v1537 = vadd.f32 %v1525, %v1534
  %v1538 = vadd.f32 %v1526, %v1534
  %v1539 = vadd.f32 %v1527, %v1534
  %v1540 = vadd.f32 %v1528, %v1534
  %v1541 = vadd.f32 %v1529, %v1534
  %v1542 = vadd.f32 %v1530, %v1534
  %v1543 = vmax.f32 %v1535, 0.0
  %v1544 = vmax.f32 %v1536, 0.0
  %v1545 = vmax.f32 %v1537, 0.0
  %v1546 = vmax.f32 %v1538, 0.0
  %v1547 = vmax.f32 %v1539, 0.0
  %v1548 = vmax.f32 %v1540, 0.0
  %v1549 = vmax.f32 %v1541, 0.0
  %v1550 = vmax.f32 %v1542, 0.0
  %v1551 = vlaneseq
  %v1552 = vshrl.u32 %v1551, 7
  %v1553 = vsub.s32 7, %v1552
  %v1554 = vrot.slane %v1396, %v1553
  %v1555 = vmul.f32 %v1543, %v1554
  %v1556 = vmul.f32 %v1544, %v1554
  %v1557 = vmul.f32 %v1545, %v1554
  %v1558 = vmul.f32 %v1546, %v1554
  %v1559 = vmul.f32 %v1547, %v1554
  %v1560 = vmul.f32 %v1548, %v1554
  %v1561 = vmul.f32 %v1549, %v1554
  %v1562 = vmul.f32 %v1550, %v1554
  %v1563 = vsel %vm1462, %v1555, 0.0
  %1564 = vadd.xlane.f32.xlu0 %v1563
  %v1565 = vpop.xlane.xlu0 %1564
  %v1566 = vsel %vm1462, %v1556, 0.0
  %1567 = vadd.xlane.f32.xlu0 %v1566
  %v1568 = vpop.xlane.xlu0 %1567
  %v1569 = vsel %vm1462, %v1557, 0.0
  %1570 = vadd.xlane.f32.xlu0 %v1569
  %v1571 = vpop.xlane.xlu0 %1570
  %v1572 = vsel %vm1462, %v1558, 0.0
  %1573 = vadd.xlane.f32.xlu0 %v1572
  %v1574 = vpop.xlane.xlu0 %1573
  %v1575 = vsel %vm1462, %v1559, 0.0
  %1576 = vadd.xlane.f32.xlu0 %v1575
  %v1577 = vpop.xlane.xlu0 %1576
  %v1578 = vsel %vm1462, %v1560, 0.0
  %1579 = vadd.xlane.f32.xlu0 %v1578
  %v1580 = vpop.xlane.xlu0 %1579
  %v1581 = vsel %vm1462, %v1561, 0.0
  %1582 = vadd.xlane.f32.xlu0 %v1581
  %v1583 = vpop.xlane.xlu0 %1582
  %v1584 = vsel %vm1462, %v1562, 0.0
  %1585 = vadd.xlane.f32.xlu0 %v1584
  %v1586 = vpop.xlane.xlu0 %1585
  %v1587 = vadd.f32 %v1565, %v1490
  %v1588 = vadd.f32 %v1568, %v1490
  %v1589 = vadd.f32 %v1571, %v1490
  %v1590 = vadd.f32 %v1574, %v1490
  %v1591 = vadd.f32 %v1577, %v1490
  %v1592 = vadd.f32 %v1580, %v1490
  %v1593 = vadd.f32 %v1583, %v1490
  %v1594 = vadd.f32 %v1586, %v1490
  %v1595 = vxor.u32 %v1587, 2147483648
  %v1596 = vxor.u32 %v1588, 2147483648
  %v1597 = vxor.u32 %v1589, 2147483648
  %v1598 = vxor.u32 %v1590, 2147483648
  %v1599 = vxor.u32 %v1591, 2147483648
  %v1600 = vxor.u32 %v1592, 2147483648
  %v1601 = vxor.u32 %v1593, 2147483648
  %v1602 = vxor.u32 %v1594, 2147483648
  %v1603 = vmul.f32 %v1595, 1.442695
  %v1604 = vpow.pop %v1603
  %v1605 = vmul.f32 %v1596, 1.442695
  %v1606 = vpow.pop %v1605
  %v1607 = vmul.f32 %v1597, 1.442695
  %v1608 = vpow.pop %v1607
  %v1609 = vmul.f32 %v1598, 1.442695
  %v1610 = vpow.pop %v1609
  %v1611 = vmul.f32 %v1599, 1.442695
  %v1612 = vpow.pop %v1611
  %v1613 = vmul.f32 %v1600, 1.442695
  %v1614 = vpow.pop %v1613
  %v1615 = vmul.f32 %v1601, 1.442695
  %v1616 = vpow.pop %v1615
  %v1617 = vmul.f32 %v1602, 1.442695
  %v1618 = vpow.pop %v1617
  %v1619 = vadd.f32 %v1604, 1.0
  %v1620 = vadd.f32 %v1606, 1.0
  %v1621 = vadd.f32 %v1608, 1.0
  %v1622 = vadd.f32 %v1610, 1.0
  %v1623 = vadd.f32 %v1612, 1.0
  %v1624 = vadd.f32 %v1614, 1.0
  %v1625 = vadd.f32 %v1616, 1.0
  %v1626 = vadd.f32 %v1618, 1.0
  %v1627 = vrcp.pop %v1619
  %v1628 = vmul.f32 1.0, %v1627
  %v1629 = vrcp.pop %v1620
  %v1630 = vmul.f32 1.0, %v1629
  %v1631 = vrcp.pop %v1621
  %v1632 = vmul.f32 1.0, %v1631
  %v1633 = vrcp.pop %v1622
  %v1634 = vmul.f32 1.0, %v1633
  %v1635 = vrcp.pop %v1623
  %v1636 = vmul.f32 1.0, %v1635
  %v1637 = vrcp.pop %v1624
  %v1638 = vmul.f32 1.0, %v1637
  %v1639 = vrcp.pop %v1625
  %v1640 = vmul.f32 1.0, %v1639
  %v1641 = vrcp.pop %v1626
  %v1642 = vmul.f32 1.0, %v1641
  %v1643 = vlaneseq
  %v1644 = vand.u32 %v1643, 127
  %vm1645 = vcmp.ge.s32.totalorder %v1644, 0
  %vm1646 = vcmp.lt.s32.totalorder %v1644, 24
  %vm1647 = vmand %vm1645, %vm1646
  %v1648 = vsel %vm1647, 1, 0
  %v1649 = vcvt.s32.f32 %v1648
  %vm1650 = vcmp.ge.s32.totalorder %v1644, 24
  %vm1651 = vcmp.lt.s32.totalorder %v1644, 48
  %vm1652 = vmand %vm1650, %vm1651
  %v1653 = vsel %vm1652, 1, 0
  %v1654 = vcvt.s32.f32 %v1653
  %vm1655 = vcmp.ge.s32.totalorder %v1644, 48
  %vm1656 = vcmp.lt.s32.totalorder %v1644, 72
  %vm1657 = vmand %vm1655, %vm1656
  %v1658 = vsel %vm1657, 1, 0
  %v1659 = vcvt.s32.f32 %v1658
  %vm1660 = vcmp.ge.s32.totalorder %v1644, 72
  %vm1661 = vcmp.lt.s32.totalorder %v1644, 96
  %vm1662 = vmand %vm1660, %vm1661
  %v1663 = vsel %vm1662, 1, 0
  %v1664 = vcvt.s32.f32 %v1663
  %1666 = vrot.lane.b32.xlu0 %v1649, 32
  %v1667 = vpop.permute.xlu0 %1666
  %v1669 = vmul.f32 %v1117, %v1667
  %v1670 = vmul.f32 %v1121, %v1667
  %v1671 = vmul.f32 %v1127, %v1667
  %v1672 = vmul.f32 %v1131, %v1667
  %v1673 = vmul.f32 %v1137, %v1667
  %v1674 = vmul.f32 %v1141, %v1667
  %v1675 = vmul.f32 %v1147, %v1667
  %v1676 = vmul.f32 %v1151, %v1667
  %1678 = vrot.lane.b32.xlu0 %v1654, 32
  %v1679 = vpop.permute.xlu0 %1678
  %v1681 = vmul.f32 %v1117, %v1679
  %v1682 = vmul.f32 %v1121, %v1679
  %v1683 = vmul.f32 %v1127, %v1679
  %v1684 = vmul.f32 %v1131, %v1679
  %v1685 = vmul.f32 %v1137, %v1679
  %v1686 = vmul.f32 %v1141, %v1679
  %v1687 = vmul.f32 %v1147, %v1679
  %v1688 = vmul.f32 %v1151, %v1679
  %1690 = vrot.lane.b32.xlu0 %v1659, 32
  %v1691 = vpop.permute.xlu0 %1690
  %v1693 = vmul.f32 %v1117, %v1691
  %v1694 = vmul.f32 %v1121, %v1691
  %v1695 = vmul.f32 %v1127, %v1691
  %v1696 = vmul.f32 %v1131, %v1691
  %v1697 = vmul.f32 %v1137, %v1691
  %v1698 = vmul.f32 %v1141, %v1691
  %v1699 = vmul.f32 %v1147, %v1691
  %v1700 = vmul.f32 %v1151, %v1691
  %1702 = vrot.lane.b32.xlu0 %v1664, 32
  %v1703 = vpop.permute.xlu0 %1702
  %v1705 = vmul.f32 %v1117, %v1703
  %v1706 = vmul.f32 %v1121, %v1703
  %v1707 = vmul.f32 %v1127, %v1703
  %v1708 = vmul.f32 %v1131, %v1703
  %v1709 = vmul.f32 %v1137, %v1703
  %v1710 = vmul.f32 %v1141, %v1703
  %v1711 = vmul.f32 %v1147, %v1703
  %v1712 = vmul.f32 %v1151, %v1703
  %v1713 = vpack.c.bf16 %v1670, %v1669
  %v1714 = vpack.c.bf16 %v1672, %v1671
  %v1715 = vpack.c.bf16 %v1674, %v1673
  %v1716 = vpack.c.bf16 %v1676, %v1675
  %v1717 = vpack.c.bf16 %v1682, %v1681
  %v1718 = vpack.c.bf16 %v1684, %v1683
  %v1719 = vpack.c.bf16 %v1686, %v1685
  %v1720 = vpack.c.bf16 %v1688, %v1687
  %v1721 = vpack.c.bf16 %v1694, %v1693
  %v1722 = vpack.c.bf16 %v1696, %v1695
  %v1723 = vpack.c.bf16 %v1698, %v1697
  %v1724 = vpack.c.bf16 %v1700, %v1699
  %v1725 = vpack.c.bf16 %v1706, %v1705
  %v1726 = vpack.c.bf16 %v1708, %v1707
  %v1727 = vpack.c.bf16 %v1710, %v1709
  %v1728 = vpack.c.bf16 %v1712, %v1711
  %v1729 = vpack.c.bf16 %v1123, %v1119
  %v1730 = vpack.c.bf16 %v1133, %v1129
  %v1731 = vpack.c.bf16 %v1143, %v1139
  %v1732 = vpack.c.bf16 %v1153, %v1149
  %1734 = vset.pattern.permute.xlu0 1
  %1735 = vperm.xlu0 %1734, %v1628
  %v1736 = vpop.permute.xlu0 %1735
  %1739 = vset.pattern.permute.xlu0 1
  %1740 = vperm.xlu0 %1739, %v1630
  %v1741 = vpop.permute.xlu0 %1740
  %1744 = vset.pattern.permute.xlu0 1
  %1745 = vperm.xlu0 %1744, %v1632
  %v1746 = vpop.permute.xlu0 %1745
  %1749 = vset.pattern.permute.xlu0 1
  %1750 = vperm.xlu0 %1749, %v1634
  %v1751 = vpop.permute.xlu0 %1750
  %1754 = vset.pattern.permute.xlu0 1
  %1755 = vperm.xlu0 %1754, %v1636
  %v1756 = vpop.permute.xlu0 %1755
  %1759 = vset.pattern.permute.xlu0 1
  %1760 = vperm.xlu0 %1759, %v1638
  %v1761 = vpop.permute.xlu0 %1760
  %1764 = vset.pattern.permute.xlu0 1
  %1765 = vperm.xlu0 %1764, %v1640
  %v1766 = vpop.permute.xlu0 %1765
  %1769 = vset.pattern.permute.xlu0 1
  %1770 = vperm.xlu0 %1769, %v1642
  %v1771 = vpop.permute.xlu0 %1770
  %v1773 = vmul.f32 %v1119, %v1736
  %v1774 = vmul.f32 %v1190, %v1736
  %v1775 = vmul.f32 %v1123, %v1741
  %v1776 = vmul.f32 %v1193, %v1741
  %v1777 = vmul.f32 %v1129, %v1746
  %v1778 = vmul.f32 %v1198, %v1746
  %v1779 = vmul.f32 %v1133, %v1751
  %v1780 = vmul.f32 %v1201, %v1751
  %v1781 = vmul.f32 %v1139, %v1756
  %v1782 = vmul.f32 %v1206, %v1756
  %v1783 = vmul.f32 %v1143, %v1761
  %v1784 = vmul.f32 %v1209, %v1761
  %v1785 = vmul.f32 %v1149, %v1766
  %v1786 = vmul.f32 %v1214, %v1766
  %v1787 = vmul.f32 %v1153, %v1771
  %v1788 = vmul.f32 %v1217, %v1771
  %v1789 = vpack.c.bf16 %v1775, %v1773
  %v1790 = vpack.c.bf16 %v1776, %v1774
  %v1791 = vpack.c.bf16 %v1779, %v1777
  %v1792 = vpack.c.bf16 %v1780, %v1778
  %v1793 = vpack.c.bf16 %v1783, %v1781
  %v1794 = vpack.c.bf16 %v1784, %v1782
  %v1795 = vpack.c.bf16 %v1787, %v1785
  %v1796 = vpack.c.bf16 %v1788, %v1786
  %1798 = vset.pattern.permute.xlu0 0
  %1799 = vperm.xlu0 %1798, %v1491
  %v1800 = vpop.permute.xlu0 %1799
  %1803 = vset.pattern.permute.xlu0 0
  %1804 = vperm.xlu0 %1803, %v1492
  %v1805 = vpop.permute.xlu0 %1804
  %1808 = vset.pattern.permute.xlu0 0
  %1809 = vperm.xlu0 %1808, %v1493
  %v1810 = vpop.permute.xlu0 %1809
  %1813 = vset.pattern.permute.xlu0 0
  %1814 = vperm.xlu0 %1813, %v1494
  %v1815 = vpop.permute.xlu0 %1814
  %1818 = vset.pattern.permute.xlu0 0
  %1819 = vperm.xlu0 %1818, %v1495
  %v1820 = vpop.permute.xlu0 %1819
  %1823 = vset.pattern.permute.xlu0 0
  %1824 = vperm.xlu0 %1823, %v1496
  %v1825 = vpop.permute.xlu0 %1824
  %1828 = vset.pattern.permute.xlu0 0
  %1829 = vperm.xlu0 %1828, %v1497
  %v1830 = vpop.permute.xlu0 %1829
  %1833 = vset.pattern.permute.xlu0 0
  %1834 = vperm.xlu0 %1833, %v1498
  %v1835 = vpop.permute.xlu0 %1834
  %1853 = vrot.lane.b32.xlu0 %v1713, 96
  %v1854 = vpop.permute.xlu0 %1853
  %1855 = vrot.lane.b32.xlu0 %v1714, 96
  %v1856 = vpop.permute.xlu0 %1855
  %1857 = vrot.lane.b32.xlu0 %v1715, 96
  %v1858 = vpop.permute.xlu0 %1857
  %1859 = vrot.lane.b32.xlu0 %v1716, 96
  %v1860 = vpop.permute.xlu0 %1859
  %1861 = vrot.lane.b32.xlu0 %v1717, 96
  %v1862 = vpop.permute.xlu0 %1861
  %1863 = vrot.lane.b32.xlu0 %v1718, 96
  %v1864 = vpop.permute.xlu0 %1863
  %1865 = vrot.lane.b32.xlu0 %v1719, 96
  %v1866 = vpop.permute.xlu0 %1865
  %1867 = vrot.lane.b32.xlu0 %v1720, 96
  %v1868 = vpop.permute.xlu0 %1867
  %1869 = vrot.lane.b32.xlu0 %v1721, 96
  %v1870 = vpop.permute.xlu0 %1869
  %1871 = vrot.lane.b32.xlu0 %v1722, 96
  %v1872 = vpop.permute.xlu0 %1871
  %1873 = vrot.lane.b32.xlu0 %v1723, 96
  %v1874 = vpop.permute.xlu0 %1873
  %1875 = vrot.lane.b32.xlu0 %v1724, 96
  %v1876 = vpop.permute.xlu0 %1875
  %1877 = vrot.lane.b32.xlu0 %v1725, 96
  %v1878 = vpop.permute.xlu0 %1877
  %1879 = vrot.lane.b32.xlu0 %v1726, 96
  %v1880 = vpop.permute.xlu0 %1879
  %1881 = vrot.lane.b32.xlu0 %v1727, 96
  %v1882 = vpop.permute.xlu0 %1881
  %1883 = vrot.lane.b32.xlu0 %v1728, 96
  %v1884 = vpop.permute.xlu0 %1883
  %vm1885 = vcmask 785408
  %v1887 = vsel %vm1885, %v1854, 0
  %v1890 = vsel %vm1885, %v1856, 0
  %v1893 = vsel %vm1885, %v1858, 0
  %v1896 = vsel %vm1885, %v1860, 0
  %v1899 = vsel %vm1885, %v1862, 0
  %v1902 = vsel %vm1885, %v1864, 0
  %v1905 = vsel %vm1885, %v1866, 0
  %v1908 = vsel %vm1885, %v1868, 0
  %v1911 = vsel %vm1885, %v1870, 0
  %v1914 = vsel %vm1885, %v1872, 0
  %v1917 = vsel %vm1885, %v1874, 0
  %v1920 = vsel %vm1885, %v1876, 0
  %v1923 = vsel %vm1885, %v1878, 0
  %v1926 = vsel %vm1885, %v1880, 0
  %v1929 = vsel %vm1885, %v1882, 0
  %v1932 = vsel %vm1885, %v1884, 0
  %v1935 = vsel %vm1885, %v1729, 0
  %v1938 = vsel %vm1885, %v1730, 0
  %v1941 = vsel %vm1885, %v1731, 0
  %v1944 = vsel %vm1885, %v1732, 0
  %1946 = vmatprep.subr.bf16.mxu0 0
  %1947 = vmatpush1.bf16.xpose.msra.mxu0 %v1935
  %1948 = vmatprep.subr.bf16.mxu0 0
  %1949 = vmatpush1.bf16.xpose.msra.mxu0 %v1938
  %1950 = vmatprep.subr.bf16.mxu0 0
  %1951 = vmatpush1.bf16.xpose.msra.mxu0 %v1941
  %1952 = vmatprep.subr.bf16.mxu0 0
  %1953 = vmatpush1.bf16.xpose.msra.mxu0 %v1944
  %1954 = vmatprep.subr.bf16.mxu0 0
  %1955 = vmatpush1.bf16.xpose.msra.mxu0 0
  %1956 = vmatprep.subr.bf16.mxu0 0
  %1957 = vmatpush1.bf16.xpose.msra.mxu0 0
  %1958 = vmatprep.subr.bf16.mxu0 0
  %1959 = vmatpush1.bf16.xpose.msra.mxu0 0
  %1960 = vmatprep.subr.bf16.mxu0 0
  %1961 = vmatpush1.bf16.xpose.msra.mxu0 0
  %1962 = vmatprep.subr.bf16.mxu0 0
  %1963 = vmatpush1.bf16.xpose.msra.mxu0 0
  %1964 = vmatprep.subr.bf16.mxu0 0
  %1965 = vmatpush1.bf16.xpose.msra.mxu0 0
  %1966 = vmatprep.subr.bf16.mxu0 0
  %1967 = vmatpush1.bf16.xpose.msra.mxu0 0
  %1968 = vmatprep.subr.bf16.mxu0 0
  %1969 = vmatpush1.bf16.xpose.msra.mxu0 0
  %1970 = vmatprep.subr.bf16.mxu0 0
  %1971 = vmatpush1.bf16.xpose.msra.mxu0 0
  %1972 = vmatprep.subr.bf16.mxu0 0
  %1973 = vmatpush1.bf16.xpose.msra.mxu0 0
  %1974 = vmatprep.subr.bf16.mxu0 0
  %1975 = vmatpush1.bf16.xpose.msra.mxu0 0
  %1976 = vmatprep.subr.bf16.mxu0 0
  %1977 = vmatpush1.bf16.xpose.msra.mxu0 0
  %1978 = vmatprep.mubr.bf16.mxu0 0
  %1979 = vmatmul.mubr.bf16.gmra.mrb[0].mxu0 %v1887
  %v1980 = vpop.f32.mrb[0].mxu0
  %v1981 = vadd.f32 %v1800, %v1980
  %v1982 = vpop.f32.mrb[0].mxu0
  %v1983 = vpop.f32.mrb[0].mxu0
  %v1984 = vadd.f32 %v1805, %v1983
  %v1985 = vpop.f32.mrb[0].mxu0
  %1986 = vmatprep.mubr.bf16.mxu0 0
  %1987 = vmatmul.mubr.bf16.gmra.mrb[0].mxu0 %v1890
  %v1988 = vpop.f32.mrb[0].mxu0
  %v1989 = vadd.f32 %v1810, %v1988
  %v1990 = vpop.f32.mrb[0].mxu0
  %v1991 = vpop.f32.mrb[0].mxu0
  %v1992 = vadd.f32 %v1815, %v1991
  %v1993 = vpop.f32.mrb[0].mxu0
  %1994 = vmatprep.mubr.bf16.mxu0 0
  %1995 = vmatmul.mubr.bf16.gmra.mrb[0].mxu0 %v1893
  %v1996 = vpop.f32.mrb[0].mxu0
  %v1997 = vadd.f32 %v1820, %v1996
  %v1998 = vpop.f32.mrb[0].mxu0
  %v1999 = vpop.f32.mrb[0].mxu0
  %v2000 = vadd.f32 %v1825, %v1999
  %v2001 = vpop.f32.mrb[0].mxu0
  %2002 = vmatprep.mubr.bf16.mxu0 0
  %2003 = vmatmul.mubr.bf16.gmra.mrb[0].mxu0 %v1896
  %v2004 = vpop.f32.mrb[0].mxu0
  %v2005 = vadd.f32 %v1830, %v2004
  %v2006 = vpop.f32.mrb[0].mxu0
  %v2007 = vpop.f32.mrb[0].mxu0
  %v2008 = vadd.f32 %v1835, %v2007
  %v2009 = vpop.f32.mrb[0].mxu0
  %2010 = vmatprep.mubr.bf16.mxu0 0
  %2011 = vmatmul.mubr.bf16.gmra.mrb[0].mxu0 %v1899
  %v2012 = vpop.f32.mrb[0].mxu0
  %v2013 = vadd.f32 %v1800, %v2012
  %v2014 = vpop.f32.mrb[0].mxu0
  %v2015 = vpop.f32.mrb[0].mxu0
  %v2016 = vadd.f32 %v1805, %v2015
  %v2017 = vpop.f32.mrb[0].mxu0
  %2018 = vmatprep.mubr.bf16.mxu0 0
  %2019 = vmatmul.mubr.bf16.gmra.mrb[0].mxu0 %v1902
  %v2020 = vpop.f32.mrb[0].mxu0
  %v2021 = vadd.f32 %v1810, %v2020
  %v2022 = vpop.f32.mrb[0].mxu0
  %v2023 = vpop.f32.mrb[0].mxu0
  %v2024 = vadd.f32 %v1815, %v2023
  %v2025 = vpop.f32.mrb[0].mxu0
  %2026 = vmatprep.mubr.bf16.mxu0 0
  %2027 = vmatmul.mubr.bf16.gmra.mrb[0].mxu0 %v1905
  %v2028 = vpop.f32.mrb[0].mxu0
  %v2029 = vadd.f32 %v1820, %v2028
  %v2030 = vpop.f32.mrb[0].mxu0
  %v2031 = vpop.f32.mrb[0].mxu0
  %v2032 = vadd.f32 %v1825, %v2031
  %v2033 = vpop.f32.mrb[0].mxu0
  %2034 = vmatprep.mubr.bf16.mxu0 0
  %2035 = vmatmul.mubr.bf16.gmra.mrb[0].mxu0 %v1908
  %v2036 = vpop.f32.mrb[0].mxu0
  %v2037 = vadd.f32 %v1830, %v2036
  %v2038 = vpop.f32.mrb[0].mxu0
  %v2039 = vpop.f32.mrb[0].mxu0
  %v2040 = vadd.f32 %v1835, %v2039
  %v2041 = vpop.f32.mrb[0].mxu0
  %2042 = vmatprep.mubr.bf16.mxu0 0
  %2043 = vmatmul.mubr.bf16.gmra.mrb[0].mxu0 %v1911
  %v2044 = vpop.f32.mrb[0].mxu0
  %v2045 = vadd.f32 %v1800, %v2044
  %v2046 = vpop.f32.mrb[0].mxu0
  %v2047 = vpop.f32.mrb[0].mxu0
  %v2048 = vadd.f32 %v1805, %v2047
  %v2049 = vpop.f32.mrb[0].mxu0
  %2050 = vmatprep.mubr.bf16.mxu0 0
  %2051 = vmatmul.mubr.bf16.gmra.mrb[0].mxu0 %v1914
  %v2052 = vpop.f32.mrb[0].mxu0
  %v2053 = vadd.f32 %v1810, %v2052
  %v2054 = vpop.f32.mrb[0].mxu0
  %v2055 = vpop.f32.mrb[0].mxu0
  %v2056 = vadd.f32 %v1815, %v2055
  %v2057 = vpop.f32.mrb[0].mxu0
  %2058 = vmatprep.mubr.bf16.mxu0 0
  %2059 = vmatmul.mubr.bf16.gmra.mrb[0].mxu0 %v1917
  %v2060 = vpop.f32.mrb[0].mxu0
  %v2061 = vadd.f32 %v1820, %v2060
  %v2062 = vpop.f32.mrb[0].mxu0
  %v2063 = vpop.f32.mrb[0].mxu0
  %v2064 = vadd.f32 %v1825, %v2063
  %v2065 = vpop.f32.mrb[0].mxu0
  %2066 = vmatprep.mubr.bf16.mxu0 0
  %2067 = vmatmul.mubr.bf16.gmra.mrb[0].mxu0 %v1920
  %v2068 = vpop.f32.mrb[0].mxu0
  %v2069 = vadd.f32 %v1830, %v2068
  %v2070 = vpop.f32.mrb[0].mxu0
  %v2071 = vpop.f32.mrb[0].mxu0
  %v2072 = vadd.f32 %v1835, %v2071
  %v2073 = vpop.f32.mrb[0].mxu0
  %2074 = vmatprep.mubr.bf16.mxu0 0
  %2075 = vmatmul.mubr.bf16.gmra.mrb[0].mxu0 %v1923
  %v2076 = vpop.f32.mrb[0].mxu0
  %v2077 = vadd.f32 %v1800, %v2076
  %v2078 = vpop.f32.mrb[0].mxu0
  %v2079 = vpop.f32.mrb[0].mxu0
  %v2080 = vadd.f32 %v1805, %v2079
  %v2081 = vpop.f32.mrb[0].mxu0
  %2082 = vmatprep.mubr.bf16.mxu0 0
  %2083 = vmatmul.mubr.bf16.gmra.mrb[0].mxu0 %v1926
  %v2084 = vpop.f32.mrb[0].mxu0
  %v2085 = vadd.f32 %v1810, %v2084
  %v2086 = vpop.f32.mrb[0].mxu0
  %v2087 = vpop.f32.mrb[0].mxu0
  %v2088 = vadd.f32 %v1815, %v2087
  %v2089 = vpop.f32.mrb[0].mxu0
  %2090 = vmatprep.mubr.bf16.mxu0 0
  %2091 = vmatmul.mubr.bf16.gmra.mrb[0].mxu0 %v1929
  %v2092 = vpop.f32.mrb[0].mxu0
  %v2093 = vadd.f32 %v1820, %v2092
  %v2094 = vpop.f32.mrb[0].mxu0
  %v2095 = vpop.f32.mrb[0].mxu0
  %v2096 = vadd.f32 %v1825, %v2095
  %v2097 = vpop.f32.mrb[0].mxu0
  %2098 = vmatprep.mubr.bf16.mxu0 0
  %2099 = vmatmul.mubr.bf16.gmra.mrb[0].mxu0 %v1932
  %v2100 = vpop.f32.mrb[0].mxu0
  %v2101 = vadd.f32 %v1830, %v2100
  %v2102 = vpop.f32.mrb[0].mxu0
  %v2103 = vpop.f32.mrb[0].mxu0
  %v2104 = vadd.f32 %v1835, %v2103
  %v2105 = vpop.f32.mrb[0].mxu0
  %2106 = vdwg.mxu0
  %v2108 = vlaneseq
  %v2109 = vshrl.u32 %v2108, 7
  %v2110 = vsub.s32 0, %v2109
  %v2111 = vrot.slane %v40, %v2110
  %v2113 = vadd.f32 %v1981, %v2111
  %v2114 = vadd.f32 %v1984, %v2111
  %v2115 = vadd.f32 %v1989, %v2111
  %v2116 = vadd.f32 %v1992, %v2111
  %v2117 = vadd.f32 %v1997, %v2111
  %v2118 = vadd.f32 %v2000, %v2111
  %v2119 = vadd.f32 %v2005, %v2111
  %v2120 = vadd.f32 %v2008, %v2111
  %v2121 = vadd.f32 %v2013, %v2111
  %v2122 = vadd.f32 %v2016, %v2111
  %v2123 = vadd.f32 %v2021, %v2111
  %v2124 = vadd.f32 %v2024, %v2111
  %v2125 = vadd.f32 %v2029, %v2111
  %v2126 = vadd.f32 %v2032, %v2111
  %v2127 = vadd.f32 %v2037, %v2111
  %v2128 = vadd.f32 %v2040, %v2111
  %v2129 = vadd.f32 %v2045, %v2111
  %v2130 = vadd.f32 %v2048, %v2111
  %v2131 = vadd.f32 %v2053, %v2111
  %v2132 = vadd.f32 %v2056, %v2111
  %v2133 = vadd.f32 %v2061, %v2111
  %v2134 = vadd.f32 %v2064, %v2111
  %v2135 = vadd.f32 %v2069, %v2111
  %v2136 = vadd.f32 %v2072, %v2111
  %v2137 = vadd.f32 %v2077, %v2111
  %v2138 = vadd.f32 %v2080, %v2111
  %v2139 = vadd.f32 %v2085, %v2111
  %v2140 = vadd.f32 %v2088, %v2111
  %v2141 = vadd.f32 %v2093, %v2111
  %v2142 = vadd.f32 %v2096, %v2111
  %v2143 = vadd.f32 %v2101, %v2111
  %v2144 = vadd.f32 %v2104, %v2111
  %vm2145 = vcmask 523264
  %v2146 = vsel %vm2145, %v2113, -inf
  %2147 = vmax.xlane.f32.xlu0 %v2146
  %v2148 = vpop.xlane.xlu0 %2147
  %v2149 = vsel %vm2145, %v2114, -inf
  %2150 = vmax.xlane.f32.xlu0 %v2149
  %v2151 = vpop.xlane.xlu0 %2150
  %v2152 = vsel %vm2145, %v2115, -inf
  %2153 = vmax.xlane.f32.xlu0 %v2152
  %v2154 = vpop.xlane.xlu0 %2153
  %v2155 = vsel %vm2145, %v2116, -inf
  %2156 = vmax.xlane.f32.xlu0 %v2155
  %v2157 = vpop.xlane.xlu0 %2156
  %v2158 = vsel %vm2145, %v2117, -inf
  %2159 = vmax.xlane.f32.xlu0 %v2158
  %v2160 = vpop.xlane.xlu0 %2159
  %v2161 = vsel %vm2145, %v2118, -inf
  %2162 = vmax.xlane.f32.xlu0 %v2161
  %v2163 = vpop.xlane.xlu0 %2162
  %v2164 = vsel %vm2145, %v2119, -inf
  %2165 = vmax.xlane.f32.xlu0 %v2164
  %v2166 = vpop.xlane.xlu0 %2165
  %v2167 = vsel %vm2145, %v2120, -inf
  %2168 = vmax.xlane.f32.xlu0 %v2167
  %v2169 = vpop.xlane.xlu0 %2168
  %v2170 = vsel %vm2145, %v2121, -inf
  %2171 = vmax.xlane.f32.xlu0 %v2170
  %v2172 = vpop.xlane.xlu0 %2171
  %v2173 = vsel %vm2145, %v2122, -inf
  %2174 = vmax.xlane.f32.xlu0 %v2173
  %v2175 = vpop.xlane.xlu0 %2174
  %v2176 = vsel %vm2145, %v2123, -inf
  %2177 = vmax.xlane.f32.xlu0 %v2176
  %v2178 = vpop.xlane.xlu0 %2177
  %v2179 = vsel %vm2145, %v2124, -inf
  %2180 = vmax.xlane.f32.xlu0 %v2179
  %v2181 = vpop.xlane.xlu0 %2180
  %v2182 = vsel %vm2145, %v2125, -inf
  %2183 = vmax.xlane.f32.xlu0 %v2182
  %v2184 = vpop.xlane.xlu0 %2183
  %v2185 = vsel %vm2145, %v2126, -inf
  %2186 = vmax.xlane.f32.xlu0 %v2185
  %v2187 = vpop.xlane.xlu0 %2186
  %v2188 = vsel %vm2145, %v2127, -inf
  %2189 = vmax.xlane.f32.xlu0 %v2188
  %v2190 = vpop.xlane.xlu0 %2189
  %v2191 = vsel %vm2145, %v2128, -inf
  %2192 = vmax.xlane.f32.xlu0 %v2191
  %v2193 = vpop.xlane.xlu0 %2192
  %v2194 = vsel %vm2145, %v2129, -inf
  %2195 = vmax.xlane.f32.xlu0 %v2194
  %v2196 = vpop.xlane.xlu0 %2195
  %v2197 = vsel %vm2145, %v2130, -inf
  %2198 = vmax.xlane.f32.xlu0 %v2197
  %v2199 = vpop.xlane.xlu0 %2198
  %v2200 = vsel %vm2145, %v2131, -inf
  %2201 = vmax.xlane.f32.xlu0 %v2200
  %v2202 = vpop.xlane.xlu0 %2201
  %v2203 = vsel %vm2145, %v2132, -inf
  %2204 = vmax.xlane.f32.xlu0 %v2203
  %v2205 = vpop.xlane.xlu0 %2204
  %v2206 = vsel %vm2145, %v2133, -inf
  %2207 = vmax.xlane.f32.xlu0 %v2206
  %v2208 = vpop.xlane.xlu0 %2207
  %v2209 = vsel %vm2145, %v2134, -inf
  %2210 = vmax.xlane.f32.xlu0 %v2209
  %v2211 = vpop.xlane.xlu0 %2210
  %v2212 = vsel %vm2145, %v2135, -inf
  %2213 = vmax.xlane.f32.xlu0 %v2212
  %v2214 = vpop.xlane.xlu0 %2213
  %v2215 = vsel %vm2145, %v2136, -inf
  %2216 = vmax.xlane.f32.xlu0 %v2215
  %v2217 = vpop.xlane.xlu0 %2216
  %v2218 = vsel %vm2145, %v2137, -inf
  %2219 = vmax.xlane.f32.xlu0 %v2218
  %v2220 = vpop.xlane.xlu0 %2219
  %v2221 = vsel %vm2145, %v2138, -inf
  %2222 = vmax.xlane.f32.xlu0 %v2221
  %v2223 = vpop.xlane.xlu0 %2222
  %v2224 = vsel %vm2145, %v2139, -inf
  %2225 = vmax.xlane.f32.xlu0 %v2224
  %v2226 = vpop.xlane.xlu0 %2225
  %v2227 = vsel %vm2145, %v2140, -inf
  %2228 = vmax.xlane.f32.xlu0 %v2227
  %v2229 = vpop.xlane.xlu0 %2228
  %v2230 = vsel %vm2145, %v2141, -inf
  %2231 = vmax.xlane.f32.xlu0 %v2230
  %v2232 = vpop.xlane.xlu0 %2231
  %v2233 = vsel %vm2145, %v2142, -inf
  %2234 = vmax.xlane.f32.xlu0 %v2233
  %v2235 = vpop.xlane.xlu0 %2234
  %v2236 = vsel %vm2145, %v2143, -inf
  %2237 = vmax.xlane.f32.xlu0 %v2236
  %v2238 = vpop.xlane.xlu0 %2237
  %v2239 = vsel %vm2145, %v2144, -inf
  %2240 = vmax.xlane.f32.xlu0 %v2239
  %v2241 = vpop.xlane.xlu0 %2240
  %v2242 = vsub.f32 %v2113, %v2148
  %v2243 = vsub.f32 %v2114, %v2151
  %v2244 = vsub.f32 %v2115, %v2154
  %v2245 = vsub.f32 %v2116, %v2157
  %v2246 = vsub.f32 %v2117, %v2160
  %v2247 = vsub.f32 %v2118, %v2163
  %v2248 = vsub.f32 %v2119, %v2166
  %v2249 = vsub.f32 %v2120, %v2169
  %v2250 = vsub.f32 %v2121, %v2172
  %v2251 = vsub.f32 %v2122, %v2175
  %v2252 = vsub.f32 %v2123, %v2178
  %v2253 = vsub.f32 %v2124, %v2181
  %v2254 = vsub.f32 %v2125, %v2184
  %v2255 = vsub.f32 %v2126, %v2187
  %v2256 = vsub.f32 %v2127, %v2190
  %v2257 = vsub.f32 %v2128, %v2193
  %v2258 = vsub.f32 %v2129, %v2196
  %v2259 = vsub.f32 %v2130, %v2199
  %v2260 = vsub.f32 %v2131, %v2202
  %v2261 = vsub.f32 %v2132, %v2205
  %v2262 = vsub.f32 %v2133, %v2208
  %v2263 = vsub.f32 %v2134, %v2211
  %v2264 = vsub.f32 %v2135, %v2214
  %v2265 = vsub.f32 %v2136, %v2217
  %v2266 = vsub.f32 %v2137, %v2220
  %v2267 = vsub.f32 %v2138, %v2223
  %v2268 = vsub.f32 %v2139, %v2226
  %v2269 = vsub.f32 %v2140, %v2229
  %v2270 = vsub.f32 %v2141, %v2232
  %v2271 = vsub.f32 %v2142, %v2235
  %v2272 = vsub.f32 %v2143, %v2238
  %v2273 = vsub.f32 %v2144, %v2241
  %v2274 = vmul.f32 %v2242, 1.442695
  %v2275 = vpow.pop %v2274
  %v2276 = vmul.f32 %v2243, 1.442695
  %v2277 = vpow.pop %v2276
  %v2278 = vmul.f32 %v2244, 1.442695
  %v2279 = vpow.pop %v2278
  %v2280 = vmul.f32 %v2245, 1.442695
  %v2281 = vpow.pop %v2280
  %v2282 = vmul.f32 %v2246, 1.442695
  %v2283 = vpow.pop %v2282
  %v2284 = vmul.f32 %v2247, 1.442695
  %v2285 = vpow.pop %v2284
  %v2286 = vmul.f32 %v2248, 1.442695
  %v2287 = vpow.pop %v2286
  %v2288 = vmul.f32 %v2249, 1.442695
  %v2289 = vpow.pop %v2288
  %v2290 = vmul.f32 %v2250, 1.442695
  %v2291 = vpow.pop %v2290
  %v2292 = vmul.f32 %v2251, 1.442695
  %v2293 = vpow.pop %v2292
  %v2294 = vmul.f32 %v2252, 1.442695
  %v2295 = vpow.pop %v2294
  %v2296 = vmul.f32 %v2253, 1.442695
  %v2297 = vpow.pop %v2296
  %v2298 = vmul.f32 %v2254, 1.442695
  %v2299 = vpow.pop %v2298
  %v2300 = vmul.f32 %v2255, 1.442695
  %v2301 = vpow.pop %v2300
  %v2302 = vmul.f32 %v2256, 1.442695
  %v2303 = vpow.pop %v2302
  %v2304 = vmul.f32 %v2257, 1.442695
  %v2305 = vpow.pop %v2304
  %v2306 = vmul.f32 %v2258, 1.442695
  %v2307 = vpow.pop %v2306
  %v2308 = vmul.f32 %v2259, 1.442695
  %v2309 = vpow.pop %v2308
  %v2310 = vmul.f32 %v2260, 1.442695
  %v2311 = vpow.pop %v2310
  %v2312 = vmul.f32 %v2261, 1.442695
  %v2313 = vpow.pop %v2312
  %v2314 = vmul.f32 %v2262, 1.442695
  %v2315 = vpow.pop %v2314
  %v2316 = vmul.f32 %v2263, 1.442695
  %v2317 = vpow.pop %v2316
  %v2318 = vmul.f32 %v2264, 1.442695
  %v2319 = vpow.pop %v2318
  %v2320 = vmul.f32 %v2265, 1.442695
  %v2321 = vpow.pop %v2320
  %v2322 = vmul.f32 %v2266, 1.442695
  %v2323 = vpow.pop %v2322
  %v2324 = vmul.f32 %v2267, 1.442695
  %v2325 = vpow.pop %v2324
  %v2326 = vmul.f32 %v2268, 1.442695
  %v2327 = vpow.pop %v2326
  %v2328 = vmul.f32 %v2269, 1.442695
  %v2329 = vpow.pop %v2328
  %v2330 = vmul.f32 %v2270, 1.442695
  %v2331 = vpow.pop %v2330
  %v2332 = vmul.f32 %v2271, 1.442695
  %v2333 = vpow.pop %v2332
  %v2334 = vmul.f32 %v2272, 1.442695
  %v2335 = vpow.pop %v2334
  %v2336 = vmul.f32 %v2273, 1.442695
  %v2337 = vpow.pop %v2336
  %v2338 = vsel %vm2145, %v2275, 0.0
  %2339 = vadd.xlane.f32.xlu0 %v2338
  %v2340 = vpop.xlane.xlu0 %2339
  %v2341 = vsel %vm2145, %v2277, 0.0
  %2342 = vadd.xlane.f32.xlu0 %v2341
  %v2343 = vpop.xlane.xlu0 %2342
  %v2344 = vsel %vm2145, %v2279, 0.0
  %2345 = vadd.xlane.f32.xlu0 %v2344
  %v2346 = vpop.xlane.xlu0 %2345
  %v2347 = vsel %vm2145, %v2281, 0.0
  %2348 = vadd.xlane.f32.xlu0 %v2347
  %v2349 = vpop.xlane.xlu0 %2348
  %v2350 = vsel %vm2145, %v2283, 0.0
  %2351 = vadd.xlane.f32.xlu0 %v2350
  %v2352 = vpop.xlane.xlu0 %2351
  %v2353 = vsel %vm2145, %v2285, 0.0
  %2354 = vadd.xlane.f32.xlu0 %v2353
  %v2355 = vpop.xlane.xlu0 %2354
  %v2356 = vsel %vm2145, %v2287, 0.0
  %2357 = vadd.xlane.f32.xlu0 %v2356
  %v2358 = vpop.xlane.xlu0 %2357
  %v2359 = vsel %vm2145, %v2289, 0.0
  %2360 = vadd.xlane.f32.xlu0 %v2359
  %v2361 = vpop.xlane.xlu0 %2360
  %v2362 = vsel %vm2145, %v2291, 0.0
  %2363 = vadd.xlane.f32.xlu0 %v2362
  %v2364 = vpop.xlane.xlu0 %2363
  %v2365 = vsel %vm2145, %v2293, 0.0
  %2366 = vadd.xlane.f32.xlu0 %v2365
  %v2367 = vpop.xlane.xlu0 %2366
  %v2368 = vsel %vm2145, %v2295, 0.0
  %2369 = vadd.xlane.f32.xlu0 %v2368
  %v2370 = vpop.xlane.xlu0 %2369
  %v2371 = vsel %vm2145, %v2297, 0.0
  %2372 = vadd.xlane.f32.xlu0 %v2371
  %v2373 = vpop.xlane.xlu0 %2372
  %v2374 = vsel %vm2145, %v2299, 0.0
  %2375 = vadd.xlane.f32.xlu0 %v2374
  %v2376 = vpop.xlane.xlu0 %2375
  %v2377 = vsel %vm2145, %v2301, 0.0
  %2378 = vadd.xlane.f32.xlu0 %v2377
  %v2379 = vpop.xlane.xlu0 %2378
  %v2380 = vsel %vm2145, %v2303, 0.0
  %2381 = vadd.xlane.f32.xlu0 %v2380
  %v2382 = vpop.xlane.xlu0 %2381
  %v2383 = vsel %vm2145, %v2305, 0.0
  %2384 = vadd.xlane.f32.xlu0 %v2383
  %v2385 = vpop.xlane.xlu0 %2384
  %v2386 = vsel %vm2145, %v2307, 0.0
  %2387 = vadd.xlane.f32.xlu0 %v2386
  %v2388 = vpop.xlane.xlu0 %2387
  %v2389 = vsel %vm2145, %v2309, 0.0
  %2390 = vadd.xlane.f32.xlu0 %v2389
  %v2391 = vpop.xlane.xlu0 %2390
  %v2392 = vsel %vm2145, %v2311, 0.0
  %2393 = vadd.xlane.f32.xlu0 %v2392
  %v2394 = vpop.xlane.xlu0 %2393
  %v2395 = vsel %vm2145, %v2313, 0.0
  %2396 = vadd.xlane.f32.xlu0 %v2395
  %v2397 = vpop.xlane.xlu0 %2396
  %v2398 = vsel %vm2145, %v2315, 0.0
  %2399 = vadd.xlane.f32.xlu0 %v2398
  %v2400 = vpop.xlane.xlu0 %2399
  %v2401 = vsel %vm2145, %v2317, 0.0
  %2402 = vadd.xlane.f32.xlu0 %v2401
  %v2403 = vpop.xlane.xlu0 %2402
  %v2404 = vsel %vm2145, %v2319, 0.0
  %2405 = vadd.xlane.f32.xlu0 %v2404
  %v2406 = vpop.xlane.xlu0 %2405
  %v2407 = vsel %vm2145, %v2321, 0.0
  %2408 = vadd.xlane.f32.xlu0 %v2407
  %v2409 = vpop.xlane.xlu0 %2408
  %v2410 = vsel %vm2145, %v2323, 0.0
  %2411 = vadd.xlane.f32.xlu0 %v2410
  %v2412 = vpop.xlane.xlu0 %2411
  %v2413 = vsel %vm2145, %v2325, 0.0
  %2414 = vadd.xlane.f32.xlu0 %v2413
  %v2415 = vpop.xlane.xlu0 %2414
  %v2416 = vsel %vm2145, %v2327, 0.0
  %2417 = vadd.xlane.f32.xlu0 %v2416
  %v2418 = vpop.xlane.xlu0 %2417
  %v2419 = vsel %vm2145, %v2329, 0.0
  %2420 = vadd.xlane.f32.xlu0 %v2419
  %v2421 = vpop.xlane.xlu0 %2420
  %v2422 = vsel %vm2145, %v2331, 0.0
  %2423 = vadd.xlane.f32.xlu0 %v2422
  %v2424 = vpop.xlane.xlu0 %2423
  %v2425 = vsel %vm2145, %v2333, 0.0
  %2426 = vadd.xlane.f32.xlu0 %v2425
  %v2427 = vpop.xlane.xlu0 %2426
  %v2428 = vsel %vm2145, %v2335, 0.0
  %2429 = vadd.xlane.f32.xlu0 %v2428
  %v2430 = vpop.xlane.xlu0 %2429
  %v2431 = vsel %vm2145, %v2337, 0.0
  %2432 = vadd.xlane.f32.xlu0 %v2431
  %v2433 = vpop.xlane.xlu0 %2432
  %v2434 = vrcp.pop %v2340
  %v2435 = vrcp.pop %v2343
  %v2436 = vrcp.pop %v2346
  %v2437 = vrcp.pop %v2349
  %v2438 = vrcp.pop %v2352
  %v2439 = vrcp.pop %v2355
  %v2440 = vrcp.pop %v2358
  %v2441 = vrcp.pop %v2361
  %v2442 = vrcp.pop %v2364
  %v2443 = vrcp.pop %v2367
  %v2444 = vrcp.pop %v2370
  %v2445 = vrcp.pop %v2373
  %v2446 = vrcp.pop %v2376
  %v2447 = vrcp.pop %v2379
  %v2448 = vrcp.pop %v2382
  %v2449 = vrcp.pop %v2385
  %v2450 = vrcp.pop %v2388
  %v2451 = vrcp.pop %v2391
  %v2452 = vrcp.pop %v2394
  %v2453 = vrcp.pop %v2397
  %v2454 = vrcp.pop %v2400
  %v2455 = vrcp.pop %v2403
  %v2456 = vrcp.pop %v2406
  %v2457 = vrcp.pop %v2409
  %v2458 = vrcp.pop %v2412
  %v2459 = vrcp.pop %v2415
  %v2460 = vrcp.pop %v2418
  %v2461 = vrcp.pop %v2421
  %v2462 = vrcp.pop %v2424
  %v2463 = vrcp.pop %v2427
  %v2464 = vrcp.pop %v2430
  %v2465 = vrcp.pop %v2433
  %v2466 = vmul.f32 %v2275, %v2434
  %v2467 = vmul.f32 %v2277, %v2435
  %v2468 = vmul.f32 %v2279, %v2436
  %v2469 = vmul.f32 %v2281, %v2437
  %v2470 = vmul.f32 %v2283, %v2438
  %v2471 = vmul.f32 %v2285, %v2439
  %v2472 = vmul.f32 %v2287, %v2440
  %v2473 = vmul.f32 %v2289, %v2441
  %v2474 = vmul.f32 %v2291, %v2442
  %v2475 = vmul.f32 %v2293, %v2443
  %v2476 = vmul.f32 %v2295, %v2444
  %v2477 = vmul.f32 %v2297, %v2445
  %v2478 = vmul.f32 %v2299, %v2446
  %v2479 = vmul.f32 %v2301, %v2447
  %v2480 = vmul.f32 %v2303, %v2448
  %v2481 = vmul.f32 %v2305, %v2449
  %v2482 = vmul.f32 %v2307, %v2450
  %v2483 = vmul.f32 %v2309, %v2451
  %v2484 = vmul.f32 %v2311, %v2452
  %v2485 = vmul.f32 %v2313, %v2453
  %v2486 = vmul.f32 %v2315, %v2454
  %v2487 = vmul.f32 %v2317, %v2455
  %v2488 = vmul.f32 %v2319, %v2456
  %v2489 = vmul.f32 %v2321, %v2457
  %v2490 = vmul.f32 %v2323, %v2458
  %v2491 = vmul.f32 %v2325, %v2459
  %v2492 = vmul.f32 %v2327, %v2460
  %v2493 = vmul.f32 %v2329, %v2461
  %v2494 = vmul.f32 %v2331, %v2462
  %v2495 = vmul.f32 %v2333, %v2463
  %v2496 = vmul.f32 %v2335, %v2464
  %v2497 = vmul.f32 %v2337, %v2465
  %v2498 = vpack.c.bf16 %v2467, %v2466
  %v2499 = vpack.c.bf16 %v2469, %v2468
  %v2500 = vpack.c.bf16 %v2471, %v2470
  %v2501 = vpack.c.bf16 %v2473, %v2472
  %v2502 = vpack.c.bf16 %v2475, %v2474
  %v2503 = vpack.c.bf16 %v2477, %v2476
  %v2504 = vpack.c.bf16 %v2479, %v2478
  %v2505 = vpack.c.bf16 %v2481, %v2480
  %v2506 = vpack.c.bf16 %v2483, %v2482
  %v2507 = vpack.c.bf16 %v2485, %v2484
  %v2508 = vpack.c.bf16 %v2487, %v2486
  %v2509 = vpack.c.bf16 %v2489, %v2488
  %v2510 = vpack.c.bf16 %v2491, %v2490
  %v2511 = vpack.c.bf16 %v2493, %v2492
  %v2512 = vpack.c.bf16 %v2495, %v2494
  %v2513 = vpack.c.bf16 %v2497, %v2496
  %2522 = vrot.lane.b32.xlu0 %v1789, 32
  %v2523 = vpop.permute.xlu0 %2522
  %2524 = vrot.lane.b32.xlu0 %v1790, 32
  %v2525 = vpop.permute.xlu0 %2524
  %2526 = vrot.lane.b32.xlu0 %v1791, 32
  %v2527 = vpop.permute.xlu0 %2526
  %2528 = vrot.lane.b32.xlu0 %v1792, 32
  %v2529 = vpop.permute.xlu0 %2528
  %2530 = vrot.lane.b32.xlu0 %v1793, 32
  %v2531 = vpop.permute.xlu0 %2530
  %2532 = vrot.lane.b32.xlu0 %v1794, 32
  %v2533 = vpop.permute.xlu0 %2532
  %2534 = vrot.lane.b32.xlu0 %v1795, 32
  %v2535 = vpop.permute.xlu0 %2534
  %2536 = vrot.lane.b32.xlu0 %v1796, 32
  %v2537 = vpop.permute.xlu0 %2536
  %vm2538 = vcmask 261120
  %v2539 = vsel %vm2538, %v2523, %v2525
  %v2540 = vsel %vm2538, %v2527, %v2529
  %v2541 = vsel %vm2538, %v2531, %v2533
  %v2542 = vsel %vm2538, %v2535, %v2537
  %v2548 = vsel %vm2145, %v2498, 0
  %v2551 = vsel %vm2145, %v2499, 0
  %v2554 = vsel %vm2145, %v2500, 0
  %v2557 = vsel %vm2145, %v2501, 0
  %v2560 = vsel %vm2145, %v2502, 0
  %v2563 = vsel %vm2145, %v2503, 0
  %v2566 = vsel %vm2145, %v2504, 0
  %v2569 = vsel %vm2145, %v2505, 0
  %v2572 = vsel %vm2145, %v2506, 0
  %v2575 = vsel %vm2145, %v2507, 0
  %v2578 = vsel %vm2145, %v2508, 0
  %v2581 = vsel %vm2145, %v2509, 0
  %v2584 = vsel %vm2145, %v2510, 0
  %v2587 = vsel %vm2145, %v2511, 0
  %v2590 = vsel %vm2145, %v2512, 0
  %v2593 = vsel %vm2145, %v2513, 0
  %2595 = vmatprep.subr.bf16.mxu0 0
  %2596 = vmatpush1.bf16.msra.mxu0 %v2539
  %2597 = vmatprep.subr.bf16.mxu0 0
  %2598 = vmatpush1.bf16.msra.mxu0 %v2540
  %2599 = vmatprep.subr.bf16.mxu0 0
  %2600 = vmatpush1.bf16.msra.mxu0 %v2541
  %2601 = vmatprep.subr.bf16.mxu0 0
  %2602 = vmatpush1.bf16.msra.mxu0 %v2542
  %2603 = vmatprep.subr.bf16.mxu0 0
  %2604 = vmatpush1.bf16.msra.mxu0 0
  %2605 = vmatprep.subr.bf16.mxu0 0
  %2606 = vmatpush1.bf16.msra.mxu0 0
  %2607 = vmatprep.subr.bf16.mxu0 0
  %2608 = vmatpush1.bf16.msra.mxu0 0
  %2609 = vmatprep.subr.bf16.mxu0 0
  %2610 = vmatpush1.bf16.msra.mxu0 0
  %2611 = vmatprep.subr.bf16.mxu0 0
  %2612 = vmatpush1.bf16.msra.mxu0 0
  %2613 = vmatprep.subr.bf16.mxu0 0
  %2614 = vmatpush1.bf16.msra.mxu0 0
  %2615 = vmatprep.subr.bf16.mxu0 0
  %2616 = vmatpush1.bf16.msra.mxu0 0
  %2617 = vmatprep.subr.bf16.mxu0 0
  %2618 = vmatpush1.bf16.msra.mxu0 0
  %2619 = vmatprep.subr.bf16.mxu0 0
  %2620 = vmatpush1.bf16.msra.mxu0 0
  %2621 = vmatprep.subr.bf16.mxu0 0
  %2622 = vmatpush1.bf16.msra.mxu0 0
  %2623 = vmatprep.subr.bf16.mxu0 0
  %2624 = vmatpush1.bf16.msra.mxu0 0
  %2625 = vmatprep.subr.bf16.mxu0 0
  %2626 = vmatpush1.bf16.msra.mxu0 0
  %2627 = vmatprep.mubr.bf16.mxu0 0
  %2628 = vmatmul.mubr.bf16.gmra.mrb[0].mxu0 %v2548
  %v2629 = vpop.f32.mrb[0].mxu0
  %v2630 = vadd.f32 0.0, %v2629
  %v2631 = vpop.f32.mrb[0].mxu0
  %v2632 = vpop.f32.mrb[0].mxu0
  %v2633 = vadd.f32 0.0, %v2632
  %v2634 = vpop.f32.mrb[0].mxu0
  %2635 = vmatprep.mubr.bf16.mxu0 0
  %2636 = vmatmul.mubr.bf16.gmra.mrb[0].mxu0 %v2551
  %v2637 = vpop.f32.mrb[0].mxu0
  %v2638 = vadd.f32 0.0, %v2637
  %v2639 = vpop.f32.mrb[0].mxu0
  %v2640 = vpop.f32.mrb[0].mxu0
  %v2641 = vadd.f32 0.0, %v2640
  %v2642 = vpop.f32.mrb[0].mxu0
  %2643 = vmatprep.mubr.bf16.mxu0 0
  %2644 = vmatmul.mubr.bf16.gmra.mrb[0].mxu0 %v2554
  %v2645 = vpop.f32.mrb[0].mxu0
  %v2646 = vadd.f32 0.0, %v2645
  %v2647 = vpop.f32.mrb[0].mxu0
  %v2648 = vpop.f32.mrb[0].mxu0
  %v2649 = vadd.f32 0.0, %v2648
  %v2650 = vpop.f32.mrb[0].mxu0
  %2651 = vmatprep.mubr.bf16.mxu0 0
  %2652 = vmatmul.mubr.bf16.gmra.mrb[0].mxu0 %v2557
  %v2653 = vpop.f32.mrb[0].mxu0
  %v2654 = vadd.f32 0.0, %v2653
  %v2655 = vpop.f32.mrb[0].mxu0
  %v2656 = vpop.f32.mrb[0].mxu0
  %v2657 = vadd.f32 0.0, %v2656
  %v2658 = vpop.f32.mrb[0].mxu0
  %2659 = vmatprep.mubr.bf16.mxu0 0
  %2660 = vmatmul.mubr.bf16.gmra.mrb[0].mxu0 %v2560
  %v2661 = vpop.f32.mrb[0].mxu0
  %v2662 = vadd.f32 0.0, %v2661
  %v2663 = vpop.f32.mrb[0].mxu0
  %v2664 = vpop.f32.mrb[0].mxu0
  %v2665 = vadd.f32 0.0, %v2664
  %v2666 = vpop.f32.mrb[0].mxu0
  %2667 = vmatprep.mubr.bf16.mxu0 0
  %2668 = vmatmul.mubr.bf16.gmra.mrb[0].mxu0 %v2563
  %v2669 = vpop.f32.mrb[0].mxu0
  %v2670 = vadd.f32 0.0, %v2669
  %v2671 = vpop.f32.mrb[0].mxu0
  %v2672 = vpop.f32.mrb[0].mxu0
  %v2673 = vadd.f32 0.0, %v2672
  %v2674 = vpop.f32.mrb[0].mxu0
  %2675 = vmatprep.mubr.bf16.mxu0 0
  %2676 = vmatmul.mubr.bf16.gmra.mrb[0].mxu0 %v2566
  %v2677 = vpop.f32.mrb[0].mxu0
  %v2678 = vadd.f32 0.0, %v2677
  %v2679 = vpop.f32.mrb[0].mxu0
  %v2680 = vpop.f32.mrb[0].mxu0
  %v2681 = vadd.f32 0.0, %v2680
  %v2682 = vpop.f32.mrb[0].mxu0
  %2683 = vmatprep.mubr.bf16.mxu0 0
  %2684 = vmatmul.mubr.bf16.gmra.mrb[0].mxu0 %v2569
  %v2685 = vpop.f32.mrb[0].mxu0
  %v2686 = vadd.f32 0.0, %v2685
  %v2687 = vpop.f32.mrb[0].mxu0
  %v2688 = vpop.f32.mrb[0].mxu0
  %v2689 = vadd.f32 0.0, %v2688
  %v2690 = vpop.f32.mrb[0].mxu0
  %2691 = vmatprep.mubr.bf16.mxu0 0
  %2692 = vmatmul.mubr.bf16.gmra.mrb[0].mxu0 %v2572
  %v2693 = vpop.f32.mrb[0].mxu0
  %v2694 = vadd.f32 0.0, %v2693
  %v2695 = vpop.f32.mrb[0].mxu0
  %v2696 = vpop.f32.mrb[0].mxu0
  %v2697 = vadd.f32 0.0, %v2696
  %v2698 = vpop.f32.mrb[0].mxu0
  %2699 = vmatprep.mubr.bf16.mxu0 0
  %2700 = vmatmul.mubr.bf16.gmra.mrb[0].mxu0 %v2575
  %v2701 = vpop.f32.mrb[0].mxu0
  %v2702 = vadd.f32 0.0, %v2701
  %v2703 = vpop.f32.mrb[0].mxu0
  %v2704 = vpop.f32.mrb[0].mxu0
  %v2705 = vadd.f32 0.0, %v2704
  %v2706 = vpop.f32.mrb[0].mxu0
  %2707 = vmatprep.mubr.bf16.mxu0 0
  %2708 = vmatmul.mubr.bf16.gmra.mrb[0].mxu0 %v2578
  %v2709 = vpop.f32.mrb[0].mxu0
  %v2710 = vadd.f32 0.0, %v2709
  %v2711 = vpop.f32.mrb[0].mxu0
  %v2712 = vpop.f32.mrb[0].mxu0
  %v2713 = vadd.f32 0.0, %v2712
  %v2714 = vpop.f32.mrb[0].mxu0
  %2715 = vmatprep.mubr.bf16.mxu0 0
  %2716 = vmatmul.mubr.bf16.gmra.mrb[0].mxu0 %v2581
  %v2717 = vpop.f32.mrb[0].mxu0
  %v2718 = vadd.f32 0.0, %v2717
  %v2719 = vpop.f32.mrb[0].mxu0
  %v2720 = vpop.f32.mrb[0].mxu0
  %v2721 = vadd.f32 0.0, %v2720
  %v2722 = vpop.f32.mrb[0].mxu0
  %2723 = vmatprep.mubr.bf16.mxu0 0
  %2724 = vmatmul.mubr.bf16.gmra.mrb[0].mxu0 %v2584
  %v2725 = vpop.f32.mrb[0].mxu0
  %v2726 = vadd.f32 0.0, %v2725
  %v2727 = vpop.f32.mrb[0].mxu0
  %v2728 = vpop.f32.mrb[0].mxu0
  %v2729 = vadd.f32 0.0, %v2728
  %v2730 = vpop.f32.mrb[0].mxu0
  %2731 = vmatprep.mubr.bf16.mxu0 0
  %2732 = vmatmul.mubr.bf16.gmra.mrb[0].mxu0 %v2587
  %v2733 = vpop.f32.mrb[0].mxu0
  %v2734 = vadd.f32 0.0, %v2733
  %v2735 = vpop.f32.mrb[0].mxu0
  %v2736 = vpop.f32.mrb[0].mxu0
  %v2737 = vadd.f32 0.0, %v2736
  %v2738 = vpop.f32.mrb[0].mxu0
  %2739 = vmatprep.mubr.bf16.mxu0 0
  %2740 = vmatmul.mubr.bf16.gmra.mrb[0].mxu0 %v2590
  %v2741 = vpop.f32.mrb[0].mxu0
  %v2742 = vadd.f32 0.0, %v2741
  %v2743 = vpop.f32.mrb[0].mxu0
  %v2744 = vpop.f32.mrb[0].mxu0
  %v2745 = vadd.f32 0.0, %v2744
  %v2746 = vpop.f32.mrb[0].mxu0
  %2747 = vmatprep.mubr.bf16.mxu0 0
  %2748 = vmatmul.mubr.bf16.gmra.mrb[0].mxu0 %v2593
  %v2749 = vpop.f32.mrb[0].mxu0
  %v2750 = vadd.f32 0.0, %v2749
  %v2751 = vpop.f32.mrb[0].mxu0
  %v2752 = vpop.f32.mrb[0].mxu0
  %v2753 = vadd.f32 0.0, %v2752
  %v2754 = vpop.f32.mrb[0].mxu0
  %2755 = vdwg.mxu0
  %v2756 = vmul.f32 %v2630, %v1649
  %v2757 = vmul.f32 %v2633, %v1649
  %v2758 = vmul.f32 %v2638, %v1649
  %v2759 = vmul.f32 %v2641, %v1649
  %v2760 = vmul.f32 %v2646, %v1649
  %v2761 = vmul.f32 %v2649, %v1649
  %v2762 = vmul.f32 %v2654, %v1649
  %v2763 = vmul.f32 %v2657, %v1649
  %v2764 = vmul.f32 %v2662, %v1654
  %v2765 = vmul.f32 %v2665, %v1654
  %v2766 = vmul.f32 %v2670, %v1654
  %v2767 = vmul.f32 %v2673, %v1654
  %v2768 = vmul.f32 %v2678, %v1654
  %v2769 = vmul.f32 %v2681, %v1654
  %v2770 = vmul.f32 %v2686, %v1654
  %v2771 = vmul.f32 %v2689, %v1654
  %v2772 = vadd.f32 %v2756, %v2764
  %v2773 = vadd.f32 %v2757, %v2765
  %v2774 = vadd.f32 %v2758, %v2766
  %v2775 = vadd.f32 %v2759, %v2767
  %v2776 = vadd.f32 %v2760, %v2768
  %v2777 = vadd.f32 %v2761, %v2769
  %v2778 = vadd.f32 %v2762, %v2770
  %v2779 = vadd.f32 %v2763, %v2771
  %v2780 = vmul.f32 %v2694, %v1659
  %v2781 = vmul.f32 %v2697, %v1659
  %v2782 = vmul.f32 %v2702, %v1659
  %v2783 = vmul.f32 %v2705, %v1659
  %v2784 = vmul.f32 %v2710, %v1659
  %v2785 = vmul.f32 %v2713, %v1659
  %v2786 = vmul.f32 %v2718, %v1659
  %v2787 = vmul.f32 %v2721, %v1659
  %v2788 = vadd.f32 %v2772, %v2780
  %v2789 = vadd.f32 %v2773, %v2781
  %v2790 = vadd.f32 %v2774, %v2782
  %v2791 = vadd.f32 %v2775, %v2783
  %v2792 = vadd.f32 %v2776, %v2784
  %v2793 = vadd.f32 %v2777, %v2785
  %v2794 = vadd.f32 %v2778, %v2786
  %v2795 = vadd.f32 %v2779, %v2787
  %v2796 = vmul.f32 %v2726, %v1664
  %v2797 = vmul.f32 %v2729, %v1664
  %v2798 = vmul.f32 %v2734, %v1664
  %v2799 = vmul.f32 %v2737, %v1664
  %v2800 = vmul.f32 %v2742, %v1664
  %v2801 = vmul.f32 %v2745, %v1664
  %v2802 = vmul.f32 %v2750, %v1664
  %v2803 = vmul.f32 %v2753, %v1664
  %v2804 = vadd.f32 %v2788, %v2796
  %v2805 = vadd.f32 %v2789, %v2797
  %v2806 = vadd.f32 %v2790, %v2798
  %v2807 = vadd.f32 %v2791, %v2799
  %v2808 = vadd.f32 %v2792, %v2800
  %v2809 = vadd.f32 %v2793, %v2801
  %v2810 = vadd.f32 %v2794, %v2802
  %v2811 = vadd.f32 %v2795, %v2803
  %2813 = vset.pattern.permute.xlu0 2
  %2814 = vperm.xlu0 %2813, %v1397
  %v2815 = vpop.permute.xlu0 %2814
  %v2816 = vrot.slane %v2815, 1
  %v2818 = vsel %vm1885, %v1397, 0
  %v2821 = vsel %vm1885, %v2804, 0
  %v2824 = vsel %vm1885, %v2805, 0
  %v2827 = vsel %vm1885, %v2806, 0
  %v2830 = vsel %vm1885, %v2807, 0
  %v2833 = vsel %vm1885, %v2808, 0
  %v2836 = vsel %vm1885, %v2809, 0
  %v2839 = vsel %vm1885, %v2810, 0
  %v2842 = vsel %vm1885, %v2811, 0
  %2844 = vmatprep.subr.mxu0 0.0
  %2845 = vmatpush1.xpose.msra.mxu0 %v2821
  %2846 = vmatprep.subr.mxu0 0.0
  %2847 = vmatpush1.xpose.msra.mxu0 %v2824
  %2848 = vmatprep.subr.mxu0 0.0
  %2849 = vmatpush1.xpose.msra.mxu0 %v2827
  %2850 = vmatprep.subr.mxu0 0.0
  %2851 = vmatpush1.xpose.msra.mxu0 %v2830
  %2852 = vmatprep.subr.mxu0 0.0
  %2853 = vmatpush1.xpose.msra.mxu0 %v2833
  %2854 = vmatprep.subr.mxu0 0.0
  %2855 = vmatpush1.xpose.msra.mxu0 %v2836
  %2856 = vmatprep.subr.mxu0 0.0
  %2857 = vmatpush1.xpose.msra.mxu0 %v2839
  %2858 = vmatprep.subr.mxu0 0.0
  %2859 = vmatpush1.xpose.msra.mxu0 %v2842
  %2860 = vmatprep.subr.mxu0 0.0
  %2861 = vmatpush1.xpose.msra.mxu0 0.0
  %2862 = vmatprep.subr.mxu0 0.0
  %2863 = vmatpush1.xpose.msra.mxu0 0.0
  %2864 = vmatprep.subr.mxu0 0.0
  %2865 = vmatpush1.xpose.msra.mxu0 0.0
  %2866 = vmatprep.subr.mxu0 0.0
  %2867 = vmatpush1.xpose.msra.mxu0 0.0
  %2868 = vmatprep.subr.mxu0 0.0
  %2869 = vmatpush1.xpose.msra.mxu0 0.0
  %2870 = vmatprep.subr.mxu0 0.0
  %2871 = vmatpush1.xpose.msra.mxu0 0.0
  %2872 = vmatprep.subr.mxu0 0.0
  %2873 = vmatpush1.xpose.msra.mxu0 0.0
  %2874 = vmatprep.subr.mxu0 0.0
  %2875 = vmatpush1.xpose.msra.mxu0 0.0
  %2876 = vmatprep.subr.mxu0 0.0
  %2877 = vmatpush1.xpose.msra.mxu0 0.0
  %2878 = vmatprep.subr.mxu0 0.0
  %2879 = vmatpush1.xpose.msra.mxu0 0.0
  %2880 = vmatprep.subr.mxu0 0.0
  %2881 = vmatpush1.xpose.msra.mxu0 0.0
  %2882 = vmatprep.subr.mxu0 0.0
  %2883 = vmatpush1.xpose.msra.mxu0 0.0
  %2884 = vmatprep.subr.mxu0 0.0
  %2885 = vmatpush1.xpose.msra.mxu0 0.0
  %2886 = vmatprep.subr.mxu0 0.0
  %2887 = vmatpush1.xpose.msra.mxu0 0.0
  %2888 = vmatprep.subr.mxu0 0.0
  %2889 = vmatpush1.xpose.msra.mxu0 0.0
  %2890 = vmatprep.subr.mxu0 0.0
  %2891 = vmatpush1.xpose.msra.mxu0 0.0
  %2892 = vmatprep.subr.mxu0 0.0
  %2893 = vmatpush1.xpose.msra.mxu0 0.0
  %2894 = vmatprep.subr.mxu0 0.0
  %2895 = vmatpush1.xpose.msra.mxu0 0.0
  %2896 = vmatprep.subr.mxu0 0.0
  %2897 = vmatpush1.xpose.msra.mxu0 0.0
  %2898 = vmatprep.subr.mxu0 0.0
  %2899 = vmatpush1.xpose.msra.mxu0 0.0
  %2900 = vmatprep.subr.mxu0 0.0
  %2901 = vmatpush1.xpose.msra.mxu0 0.0
  %2902 = vmatprep.subr.mxu0 0.0
  %2903 = vmatpush1.xpose.msra.mxu0 0.0
  %2904 = vmatprep.subr.mxu0 0.0
  %2905 = vmatpush1.xpose.msra.mxu0 0.0
  %2906 = vmatprep.subr.mxu0 0.0
  %2907 = vmatpush1.xpose.msra.mxu0 0.0
  %2908 = vmatprep.mubr.f32.mxu0 0.0
  %2909 = vmatmul.mubr.f32.gmra.mrb[0].mxu0 %v2818
  %v2910 = vpop.f32.mrb[0].mxu0
  %v2911 = vadd.f32 %v2816, %v2910
  %v2912 = vpop.f32.mrb[0].mxu0
  %2913 = vdwg.mxu0
  %v2914 = vsel %vm39, %v2911, 0.0
  %vm2915 = vcmp.eq.f32.partialorder %v2914, 0.0
  %v2916 = vsel %vm2915, -10000.0, %v2914
  %v2917 = vlaneseq
  %v2918 = vshrl.u32 %v2917, 7
  %v2919 = vmul.u32 %v2918, 8
  %vm2920 = vcmp.ge.s32.totalorder %v1644, %v2919
  %v2921 = vadd.s32 %v2918, 1
  %v2922 = vmul.u32 %v2921, 8
  %vm2923 = vcmp.lt.s32.totalorder %v1644, %v2922
  %vm2924 = vmand %vm2920, %vm2923
  %v2926 = vlaneseq
  %v2927 = vshrl.u32 %v2926, 7
  %v2928 = vsub.s32 0, %v2927
  %v2929 = vrot.slane %v2916, %v2928
  %v2931 = vsel %vm2924, %v2929, -1e+30
  %v2932 = vsel %vm2145, %v2931, -inf
  %2933 = vmax.xlane.f32.xlu0 %v2932
  %v2934 = vpop.xlane.xlu0 %2933
  %v2935 = vsub.f32 %v2929, %v2934
  %v2936 = vsel %vm2924, %v2935, -1e+30
  %v2937 = vmul.f32 %v2936, 1.442695
  %v2938 = vpow.pop %v2937
  %v2939 = vsel %vm2145, %v2938, 0.0
  %2940 = vadd.xlane.f32.xlu0 %v2939
  %v2941 = vpop.xlane.xlu0 %2940
  %v2942 = vrcp.pop %v2941
  %v2943 = vmul.f32 %v2938, %v2942
  %2944 = vset.pattern.permute.xlu0 4
  %2945 = vperm.xlu0 %2944, %v30
  %v2946 = vpop.permute.xlu0 %2945
  %2948 = vset.pattern.permute.xlu0 4
  %2949 = vperm.xlu0 %2948, %v31
  %v2950 = vpop.permute.xlu0 %2949
  %2952 = vset.pattern.permute.xlu0 4
  %2953 = vperm.xlu0 %2952, %v32
  %v2954 = vpop.permute.xlu0 %2953
  %2956 = vset.pattern.permute.xlu0 4
  %2957 = vperm.xlu0 %2956, %v33
  %v2958 = vpop.permute.xlu0 %2957
  %2960 = vset.pattern.permute.xlu0 4
  %2961 = vperm.xlu0 %2960, %v34
  %v2962 = vpop.permute.xlu0 %2961
  %2964 = vset.pattern.permute.xlu0 4
  %2965 = vperm.xlu0 %2964, %v35
  %v2966 = vpop.permute.xlu0 %2965
  %2968 = vset.pattern.permute.xlu0 4
  %2969 = vperm.xlu0 %2968, %v36
  %v2970 = vpop.permute.xlu0 %2969
  %2972 = vset.pattern.permute.xlu0 4
  %2973 = vperm.xlu0 %2972, %v37
  %v2974 = vpop.permute.xlu0 %2973
  %v2976 = vmul.f32 %v2946, %v41
  %v2977 = vmul.f32 %v2950, %v41
  %v2978 = vmul.f32 %v2954, %v41
  %v2979 = vmul.f32 %v2958, %v41
  %v2980 = vmul.f32 %v2962, %v41
  %v2981 = vmul.f32 %v2966, %v41
  %v2982 = vmul.f32 %v2970, %v41
  %v2983 = vmul.f32 %v2974, %v41
  %v2984 = vmul.f32 %v2976, %v1381
  %v2985 = vmul.f32 %v2977, %v1383
  %v2986 = vmul.f32 %v2978, %v1385
  %v2987 = vmul.f32 %v2979, %v1387
  %v2988 = vmul.f32 %v2980, %v1389
  %v2989 = vmul.f32 %v2981, %v1391
  %v2990 = vmul.f32 %v2982, %v1393
  %v2991 = vmul.f32 %v2983, %v1395
  %v2993 = vsel %vm2145, %v2943, 0
  %2995 = vmatprep.subr.mxu0 0.0
  %2996 = vmatpush1.msra.mxu0 %v2984
  %2997 = vmatprep.subr.mxu0 0.0
  %2998 = vmatpush1.msra.mxu0 %v2985
  %2999 = vmatprep.subr.mxu0 0.0
  %3000 = vmatpush1.msra.mxu0 %v2986
  %3001 = vmatprep.subr.mxu0 0.0
  %3002 = vmatpush1.msra.mxu0 %v2987
  %3003 = vmatprep.subr.mxu0 0.0
  %3004 = vmatpush1.msra.mxu0 %v2988
  %3005 = vmatprep.subr.mxu0 0.0
  %3006 = vmatpush1.msra.mxu0 %v2989
  %3007 = vmatprep.subr.mxu0 0.0
  %3008 = vmatpush1.msra.mxu0 %v2990
  %3009 = vmatprep.subr.mxu0 0.0
  %3010 = vmatpush1.msra.mxu0 %v2991
  %3011 = vmatprep.subr.mxu0 0.0
  %3012 = vmatpush1.msra.mxu0 0.0
  %3013 = vmatprep.subr.mxu0 0.0
  %3014 = vmatpush1.msra.mxu0 0.0
  %3015 = vmatprep.subr.mxu0 0.0
  %3016 = vmatpush1.msra.mxu0 0.0
  %3017 = vmatprep.subr.mxu0 0.0
  %3018 = vmatpush1.msra.mxu0 0.0
  %3019 = vmatprep.subr.mxu0 0.0
  %3020 = vmatpush1.msra.mxu0 0.0
  %3021 = vmatprep.subr.mxu0 0.0
  %3022 = vmatpush1.msra.mxu0 0.0
  %3023 = vmatprep.subr.mxu0 0.0
  %3024 = vmatpush1.msra.mxu0 0.0
  %3025 = vmatprep.subr.mxu0 0.0
  %3026 = vmatpush1.msra.mxu0 0.0
  %3027 = vmatprep.subr.mxu0 0.0
  %3028 = vmatpush1.msra.mxu0 0.0
  %3029 = vmatprep.subr.mxu0 0.0
  %3030 = vmatpush1.msra.mxu0 0.0
  %3031 = vmatprep.subr.mxu0 0.0
  %3032 = vmatpush1.msra.mxu0 0.0
  %3033 = vmatprep.subr.mxu0 0.0
  %3034 = vmatpush1.msra.mxu0 0.0
  %3035 = vmatprep.subr.mxu0 0.0
  %3036 = vmatpush1.msra.mxu0 0.0
  %3037 = vmatprep.subr.mxu0 0.0
  %3038 = vmatpush1.msra.mxu0 0.0
  %3039 = vmatprep.subr.mxu0 0.0
  %3040 = vmatpush1.msra.mxu0 0.0
  %3041 = vmatprep.subr.mxu0 0.0
  %3042 = vmatpush1.msra.mxu0 0.0
  %3043 = vmatprep.subr.mxu0 0.0
  %3044 = vmatpush1.msra.mxu0 0.0
  %3045 = vmatprep.subr.mxu0 0.0
  %3046 = vmatpush1.msra.mxu0 0.0
  %3047 = vmatprep.subr.mxu0 0.0
  %3048 = vmatpush1.msra.mxu0 0.0
  %3049 = vmatprep.subr.mxu0 0.0
  %3050 = vmatpush1.msra.mxu0 0.0
  %3051 = vmatprep.subr.mxu0 0.0
  %3052 = vmatpush1.msra.mxu0 0.0
  %3053 = vmatprep.subr.mxu0 0.0
  %3054 = vmatpush1.msra.mxu0 0.0
  %3055 = vmatprep.subr.mxu0 0.0
  %3056 = vmatpush1.msra.mxu0 0.0
  %3057 = vmatprep.subr.mxu0 0.0
  %3058 = vmatpush1.msra.mxu0 0.0
  %3059 = vmatprep.mubr.f32.mxu0 0.0
  %3060 = vmatmul.mubr.f32.gmra.mrb[0].mxu0 %v2993
  %v3061 = vpop.f32.mrb[0].mxu0
  %v3062 = vadd.f32 0.0, %v3061
  %v3063 = vpop.f32.mrb[0].mxu0
  %3064 = vdwg.mxu0
  %v3065 = vld [vmem:[%s7] sm:$0xff]
  %v3066 = vld [vmem:[%s7 + $0x8] sm:$0xff]
  %v3067 = vld [vmem:[%s7 + $0x10] sm:$0xff]
  %v3068 = vld [vmem:[%s7 + $0x18] sm:$0xff]
  %v3069 = vlaneseq
  %v3070 = vshrl.u32 %v3069, 7
  %v3071 = vsub.s32 3, %v3070
  %v3072 = vrot.slane %v44, %v3071
  %v3074 = vsel %vm161, %v3062, 0
  %3076 = vmatprep.subr.mxu0 0.0
  %3077 = vmatpush1.msra.mxu0 %v3065
  %3078 = vmatprep.subr.mxu0 0.0
  %3079 = vmatpush1.msra.mxu0 %v3066
  %3080 = vmatprep.subr.mxu0 0.0
  %3081 = vmatpush1.msra.mxu0 %v3067
  %3082 = vmatprep.subr.mxu0 0.0
  %3083 = vmatpush1.msra.mxu0 %v3068
  %3084 = vmatprep.subr.mxu0 0.0
  %3085 = vmatpush1.msra.mxu0 0.0
  %3086 = vmatprep.subr.mxu0 0.0
  %3087 = vmatpush1.msra.mxu0 0.0
  %3088 = vmatprep.subr.mxu0 0.0
  %3089 = vmatpush1.msra.mxu0 0.0
  %3090 = vmatprep.subr.mxu0 0.0
  %3091 = vmatpush1.msra.mxu0 0.0
  %3092 = vmatprep.subr.mxu0 0.0
  %3093 = vmatpush1.msra.mxu0 0.0
  %3094 = vmatprep.subr.mxu0 0.0
  %3095 = vmatpush1.msra.mxu0 0.0
  %3096 = vmatprep.subr.mxu0 0.0
  %3097 = vmatpush1.msra.mxu0 0.0
  %3098 = vmatprep.subr.mxu0 0.0
  %3099 = vmatpush1.msra.mxu0 0.0
  %3100 = vmatprep.subr.mxu0 0.0
  %3101 = vmatpush1.msra.mxu0 0.0
  %3102 = vmatprep.subr.mxu0 0.0
  %3103 = vmatpush1.msra.mxu0 0.0
  %3104 = vmatprep.subr.mxu0 0.0
  %3105 = vmatpush1.msra.mxu0 0.0
  %3106 = vmatprep.subr.mxu0 0.0
  %3107 = vmatpush1.msra.mxu0 0.0
  %3108 = vmatprep.subr.mxu0 0.0
  %3109 = vmatpush1.msra.mxu0 0.0
  %3110 = vmatprep.subr.mxu0 0.0
  %3111 = vmatpush1.msra.mxu0 0.0
  %3112 = vmatprep.subr.mxu0 0.0
  %3113 = vmatpush1.msra.mxu0 0.0
  %3114 = vmatprep.subr.mxu0 0.0
  %3115 = vmatpush1.msra.mxu0 0.0
  %3116 = vmatprep.subr.mxu0 0.0
  %3117 = vmatpush1.msra.mxu0 0.0
  %3118 = vmatprep.subr.mxu0 0.0
  %3119 = vmatpush1.msra.mxu0 0.0
  %3120 = vmatprep.subr.mxu0 0.0
  %3121 = vmatpush1.msra.mxu0 0.0
  %3122 = vmatprep.subr.mxu0 0.0
  %3123 = vmatpush1.msra.mxu0 0.0
  %3124 = vmatprep.subr.mxu0 0.0
  %3125 = vmatpush1.msra.mxu0 0.0
  %3126 = vmatprep.subr.mxu0 0.0
  %3127 = vmatpush1.msra.mxu0 0.0
  %3128 = vmatprep.subr.mxu0 0.0
  %3129 = vmatpush1.msra.mxu0 0.0
  %3130 = vmatprep.subr.mxu0 0.0
  %3131 = vmatpush1.msra.mxu0 0.0
  %3132 = vmatprep.subr.mxu0 0.0
  %3133 = vmatpush1.msra.mxu0 0.0
  %3134 = vmatprep.subr.mxu0 0.0
  %3135 = vmatpush1.msra.mxu0 0.0
  %3136 = vmatprep.subr.mxu0 0.0
  %3137 = vmatpush1.msra.mxu0 0.0
  %3138 = vmatprep.subr.mxu0 0.0
  %3139 = vmatpush1.msra.mxu0 0.0
  %3140 = vmatprep.mubr.f32.mxu0 0.0
  %3141 = vmatmul.mubr.f32.gmra.mrb[0].mxu0 %v3074
  %v3142 = vpop.f32.mrb[0].mxu0
  %v3143 = vadd.f32 %v3072, %v3142
  %v3144 = vpop.f32.mrb[0].mxu0
  %3145 = vdwg.mxu0
  %v3146 = vsel %vm161, %v3143, 0.0
  %3147 = vadd.xlane.f32.xlu0 %v3146
  %v3148 = vpop.xlane.xlu0 %3147
  %v3149 = vmul.f32 %v3148, %v186
  %v3150 = vsub.f32 %v3143, %v3149
  %v3151 = vmul.f32 %v3150, %v3150
  %v3152 = vsel %vm161, %v3151, 0.0
  %3153 = vadd.xlane.f32.xlu0 %v3152
  %v3154 = vpop.xlane.xlu0 %3153
  %v3155 = vmul.f32 %v3154, %v186
  %v3156 = vadd.f32 %v3155, 1e-05
  %v3157 = vrsqrt.pop %v3156
  %v3158 = vmul.f32 %v3150, %v3157
  %v3159 = vlaneseq
  %v3160 = vshrl.u32 %v3159, 7
  %v3161 = vsub.s32 4, %v3160
  %v3162 = vrot.slane %v44, %v3161
  %v3163 = vmul.f32 %v3162, %v3158
  %v3164 = vlaneseq
  %v3165 = vshrl.u32 %v3164, 7
  %v3166 = vsub.s32 5, %v3165
  %v3167 = vrot.slane %v44, %v3166
  %v3168 = vadd.f32 %v3163, %v3167
  %v3169 = vmax.f32 %v3168, 0.0
  %v3170 = vadd.f32 %v3169, %v42
  %v3171 = vtanh.pop %v3170
  %v3172 = vadd.f32 %v41, %v3171
  %3173 = vst.msk [vmem:[%s8] sm:$0xff] %vm161, %v3172
  %3174 = vst.msk [vmem:[%s8 + $0x8] sm:$0xff] %vm161, %v3170
  // Predicated region
  $region34: #{global_interaction.1} parent=0 // pred_check
    _
  $region35: #{global_interaction.1} parent=0 // pred_check_branch
    %3176 = sbr.rel (0) target = $region37
  $region36: #{global_interaction.1} parent=0 // pred_region
    _
  $region37: #{global_interaction.1} parent=0 // pred_fallthru
    _
  // Predicated region
  $region38: #{global_interaction.1} parent=0 // pred_check
    _
  $region39: #{global_interaction.1} parent=0 // pred_check_branch
    %3178 = sbr.rel (0) target = $region41
  $region40: #{global_interaction.1} parent=0 // pred_region
    _
  $region41: #{global_interaction.1} parent=0 // pred_fallthru
    _

</llo_original>
